<compile_context>
chip_gen: v7x
topology: tpu7x:2x2x1
jax: 0.10.0
libtpu: 0.0.40
codegen_flags: <defaults>
</compile_context>

<pallas_src>
import functools

import jax
import jax.numpy as jnp
import numpy as np
from jax.experimental import pallas as pl
from jax.experimental.pallas import tpu as pltpu

LANES = 128     # lane-dense output width for every matmul
C_IN_PAD = 8    # first-layer input channels padded 3 -> 8 (sublane aligned)


def _round_up(x, m):
    return ((x + m - 1) // m) * m


# ----------------------------- Pallas kernels --------------------------------
def _mm_bias_act_kernel(x_ref, w_ref, b_ref, o_ref, *, act):
    """One fused act(x @ w + b) tile on the MXU (f32 accumulation)."""
    acc = jnp.dot(x_ref[...], w_ref[...], preferred_element_type=jnp.float32)
    acc = acc + b_ref[...]
    if act == "relu":
        acc = jnp.maximum(acc, 0.0)
    elif act == "sigmoid":
        # exp on the EUP, approx reciprocal instead of an f32 VPU divide
        acc = pl.reciprocal(1.0 + jnp.exp(-acc), approx=True)
    o_ref[...] = acc.astype(o_ref.dtype)


def _bottleneck_kernel(x_ref, w1_ref, b1_ref, w2_ref, b2_ref, o_ref):
    """Fused e3 + d1: relu((x @ W1 + b1) @ W2 + b2).  Both weights resident."""
    lat = jnp.dot(x_ref[...], w1_ref[...], preferred_element_type=jnp.float32)
    lat = (lat + b1_ref[...]).astype(jnp.bfloat16)
    out = jnp.dot(lat, w2_ref[...], preferred_element_type=jnp.float32)
    out = jnp.maximum(out + b2_ref[...], 0.0)
    o_ref[...] = out.astype(o_ref.dtype)


def matmul_bias_act(x, w, b, act):
    """act(x @ w + b). x:(M,K), w:(K,Np) bf16, b:(1,Np) f32 -> (M,Np) bf16."""
    M, K = x.shape
    Np = w.shape[1]
    x = x.astype(jnp.bfloat16)
    if M >= 256:
        # >= 2 parallel grid steps: keeps both v7x TensorCores busy.
        tm = _round_up(pl.cdiv(M, 2), 8)
    else:
        # single full-M block: no per-step pipeline overhead on v5e/v6e.
        tm = M
    grid = (pl.cdiv(M, tm),)
    n_exp = M * Np if act == "sigmoid" else 0
    return pl.pallas_call(
        functools.partial(_mm_bias_act_kernel, act=act),
        out_shape=jax.ShapeDtypeStruct((M, Np), jnp.bfloat16),
        grid=grid,
        in_specs=[
            pl.BlockSpec((tm, K), lambda i: (i, 0)),   # patch-row tile
            pl.BlockSpec((K, Np), lambda i: (0, 0)),   # resident weight
            pl.BlockSpec((1, Np), lambda i: (0, 0)),   # resident bias
        ],
        out_specs=pl.BlockSpec((tm, Np), lambda i: (i, 0)),
        compiler_params=pltpu.CompilerParams(dimension_semantics=("parallel",)),
        cost_estimate=pl.CostEstimate(
            flops=2 * M * K * Np,
            transcendentals=n_exp,
            bytes_accessed=(M * K + K * Np + M * Np) * 2 + Np * 4),
    )(x, w, b)


def bottleneck(x, layer):
    """Fused e3 (7x7 full-map Conv2d) + d1 (ConvTranspose2d on a 1x1 map)."""
    N, H, W, C = x.shape
    flat = x.reshape(N, H * W * C).astype(jnp.bfloat16)        # (i, j, c) order
    M, K1 = flat.shape
    N1 = layer["w1"].shape[1]
    N2 = layer["w2"].shape[1]
    out = pl.pallas_call(
        _bottleneck_kernel,
        out_shape=jax.ShapeDtypeStruct((M, N2), jnp.bfloat16),
        grid=(1,),
        in_specs=[
            pl.BlockSpec((M, K1), lambda i: (0, 0)),
            pl.BlockSpec((K1, N1), lambda i: (0, 0)),
            pl.BlockSpec((1, N1), lambda i: (0, 0)),
            pl.BlockSpec((N1, N2), lambda i: (0, 0)),
            pl.BlockSpec((1, N2), lambda i: (0, 0)),
        ],
        out_specs=pl.BlockSpec((M, N2), lambda i: (0, 0)),
        compiler_params=pltpu.CompilerParams(dimension_semantics=("arbitrary",)),
        cost_estimate=pl.CostEstimate(
            flops=2 * M * K1 * N1 + 2 * M * N1 * N2,
            transcendentals=0,
            bytes_accessed=(M * K1 + K1 * N1 + N1 * N2 + M * N2) * 2 + (N1 + N2) * 4),
    )(flat, layer["w1"], layer["b1"], layer["w2"], layer["b2"])
    kh, kw, oc = layer["kh"], layer["kw"], layer["oc"]
    return out[:, :layer["n2"]].reshape(N, kh, kw, oc)


# ------------------------------ conv glue (NHWC) -----------------------------
def _im2col_nhwc(x, kh, kw, stride):
    """x: (N, H, W, C) already padded -> ((N*OH*OW, kh*kw*C), OH, OW)."""
    N, H, W, C = x.shape
    OH = (H - kh) // stride + 1
    OW = (W - kw) // stride + 1
    cols = []
    for i in range(kh):
        for j in range(kw):
            cols.append(x[:, i:i + stride * OH:stride, j:j + stride * OW:stride, :])
    p = jnp.stack(cols, axis=3)        # (N, OH, OW, kh*kw, C)
    return p.reshape(N * OH * OW, kh * kw * C), OH, OW


def conv2d_nhwc(x, layer, stride, pad, act):
    """nn.Conv2d semantics. x: (N, H, W, C)."""
    N = x.shape[0]
    kh, kw, oc = layer["kh"], layer["kw"], layer["oc"]
    if pad:
        x = jnp.pad(x, ((0, 0), (pad, pad), (pad, pad), (0, 0)))
    patches, OH, OW = _im2col_nhwc(x, kh, kw, stride)
    out = matmul_bias_act(patches, layer["w"], layer["b"], act)
    return out[:, :oc].reshape(N, OH, OW, oc)


def conv_transpose2d_subpixel(x, layer, pad, act):
    """nn.ConvTranspose2d(k=3, stride=2, padding=pad, output_padding=1) via the
    output-parity (subpixel) decomposition: one matmul over 2x2 neighbourhoods
    produces all four output parities; no dilated input, no zero MACs."""
    assert pad in (1, 2)
    N, H, W, IC = x.shape
    oc = layer["oc"]
    if pad == 1:
        xp = jnp.pad(x, ((0, 0), (0, 1), (0, 1), (0, 0)))   # zero row/col at H
        A = H
    else:                                                    # pad == 2
        xp = x
        A = H - 1
    g00 = xp[:, 0:A,     0:A,     :]
    g01 = xp[:, 0:A,     1:A + 1, :]
    g10 = xp[:, 1:A + 1, 0:A,     :]
    g11 = xp[:, 1:A + 1, 1:A + 1, :]
    patches = jnp.concatenate([g00, g01, g10, g11], axis=-1).reshape(N * A * A, 4 * IC)
    out = matmul_bias_act(patches, layer["w"], layer["b"], act)   # (N*A*A, Np)
    out = out[:, :4 * oc].reshape(N, A, A, 2, 2, oc)              # [a,b,r,c,oc]
    out = out.transpose(0, 1, 3, 2, 4, 5).reshape(N, 2 * A, 2 * A, oc)
    return out


# --------------------- one-time weight preprocessing -------------------------
def _prep_matmul_weights(w_oihw, b):
    """(OC, IC, KH, KW) -> bf16 (KH*KW*IC, Np) weight + f32 (1, Np) bias."""
    OC, IC, KH, KW = w_oihw.shape
    K = KH * KW * IC
    Np = _round_up(OC, LANES)
    wmat = w_oihw.transpose(2, 3, 1, 0).reshape(K, OC)      # rows ordered (i, j, c)
    wp = jnp.zeros((K, Np), jnp.bfloat16).at[:, :OC].set(wmat.astype(jnp.bfloat16))
    bp = jnp.zeros((1, Np), jnp.float32).at[0, :OC].set(b)
    return {"w": wp, "b": bp, "oc": OC, "kh": KH, "kw": KW}


def prep_conv(w, b):
    return _prep_matmul_weights(w, b)


def prep_bottleneck(e3w, e3b, d1w, d1b):
    """Fused weights for e3 (Conv2d 32->64, k=7 on a 7x7 map) and d1
    (ConvTranspose2d 64->32, k=7 on a 1x1 map)."""
    OC1, IC1, KH1, KW1 = e3w.shape                 # (64, 32, 7, 7)
    K1 = KH1 * KW1 * IC1                           # 1568, rows ordered (i, j, c)
    N1 = _round_up(OC1, LANES)                     # 128
    w1 = e3w.transpose(2, 3, 1, 0).reshape(K1, OC1)
    w1p = jnp.zeros((K1, N1), jnp.bfloat16).at[:, :OC1].set(w1.astype(jnp.bfloat16))
    b1p = jnp.zeros((1, N1), jnp.float32).at[0, :OC1].set(e3b)

    IC2, OC2, KH2, KW2 = d1w.shape                 # (64, 32, 7, 7)
    N2raw = KH2 * KW2 * OC2                        # 1568, cols ordered (i, j, oc)
    N2 = _round_up(N2raw, LANES)                   # 1664
    w2 = d1w.transpose(0, 2, 3, 1).reshape(IC2, N2raw)
    w2p = jnp.zeros((N1, N2), jnp.bfloat16).at[:IC2, :N2raw].set(w2.astype(jnp.bfloat16))
    b2p = jnp.zeros((1, N2), jnp.float32).at[0, :N2raw].set(jnp.tile(d1b, KH2 * KW2))
    return {"w1": w1p, "b1": b1p, "w2": w2p, "b2": b2p,
            "n2": N2raw, "kh": KH2, "kw": KW2, "oc": OC2}


def prep_convT_subpixel(w, b, pad):
    """PyTorch ConvTranspose2d(IC, OC, 3, stride=2, padding=pad) weight
    (IC, OC, 3, 3) -> a single (4*IC, Np) matmul weight over the 2x2 input
    neighbourhood {x[a+dy, b+dx]} producing the 4 output parities (r, c):
      out[2a+r, 2b+c, oc] += x[a+dy, b+dx, ic] * w[ic, oc, kh, kw]
      with kh = r + pad - 2*dy, kw = c + pad - 2*dx (when in range)."""
    IC, OC, KH, KW = w.shape
    w_np = np.asarray(w, np.float32)
    K, Nout = 4 * IC, 4 * OC
    Np = _round_up(Nout, LANES)
    Wm = np.zeros((K, Np), np.float32)
    for r in range(2):               # output row parity
        for c in range(2):           # output col parity
            pr = 2 * r + c
            for dy in range(2):      # input neighbourhood offset
                for dx in range(2):
                    kh = r + pad - 2 * dy
                    kw_ = c + pad - 2 * dx
                    if 0 <= kh < KH and 0 <= kw_ < KW:
                        g = 2 * dy + dx
                        Wm[g * IC:(g + 1) * IC, pr * OC:(pr + 1) * OC] = w_np[:, :, kh, kw_]
    bp = np.zeros((1, Np), np.float32)
    bp[0, :Nout] = np.tile(np.asarray(b, np.float32), 4)
    return {"w": jnp.asarray(Wm, jnp.bfloat16), "b": jnp.asarray(bp), "oc": OC}


def prepare_params(p):
    # e1 input channels padded 3 -> 8 (zero weight rows; free at init)
    e1w = jnp.pad(p["e1w"], ((0, 0), (0, C_IN_PAD - p["e1w"].shape[1]), (0, 0), (0, 0)))
    return {
        "e1": prep_conv(e1w, p["e1b"]),
        "e2": prep_conv(p["e2w"], p["e2b"]),
        "e3d1": prep_bottleneck(p["e3w"], p["e3b"], p["d1w"], p["d1b"]),
        "d2": prep_convT_subpixel(p["d2w"], p["d2b"], pad=1),
        "d3": prep_convT_subpixel(p["d3w"], p["d3b"], pad=2),
    }


# ------------------------------ model ---------------------------------------
def init_params(key):
    ks = jax.random.split(key, 12)

    def w_conv(k, oc, ic, kk):
        return jax.random.normal(k, (oc, ic, kk, kk), jnp.float32) / np.sqrt(ic * kk * kk)

    def w_convT(k, ic, oc, kk):
        return jax.random.normal(k, (ic, oc, kk, kk), jnp.float32) / np.sqrt(ic * kk * kk)

    def bias(k, n):
        return 0.01 * jax.random.normal(k, (n,), jnp.float32)

    return {
        "e1w": w_conv(ks[0], 16, 3, 3),   "e1b": bias(ks[1], 16),
        "e2w": w_conv(ks[2], 32, 16, 3),  "e2b": bias(ks[3], 32),
        "e3w": w_conv(ks[4], 64, 32, 7),  "e3b": bias(ks[5], 64),
        "d1w": w_convT(ks[6], 64, 32, 7), "d1b": bias(ks[7], 32),
        "d2w": w_convT(ks[8], 32, 16, 3), "d2b": bias(ks[9], 16),
        "d3w": w_convT(ks[10], 16, 3, 3), "d3b": bias(ks[11], 3),
    }


def autoencoder_forward(x_nchw, prep):
    h = x_nchw.transpose(0, 2, 3, 1).astype(jnp.bfloat16)            # NCHW -> NHWC once
    h = jnp.pad(h, ((0, 0), (0, 0), (0, 0), (0, C_IN_PAD - h.shape[-1])))
    # encoder
    h = conv2d_nhwc(h, prep["e1"], stride=2, pad=1, act="relu")       # (N,14,14,16)
    h = conv2d_nhwc(h, prep["e2"], stride=2, pad=1, act="relu")       # (N, 7, 7,32)
    # fused bottleneck: e3 (no act) + d1 (relu)
    h = bottleneck(h, prep["e3d1"])                                   # (N, 7, 7,32)
    # decoder (subpixel ConvTranspose)
    h = conv_transpose2d_subpixel(h, prep["d2"], pad=1, act="relu")   # (N,14,14,16)
    h = conv_transpose2d_subpixel(h, prep["d3"], pad=2, act="sigmoid")  # (N,26,26,3)
    return h.transpose(0, 3, 1, 2).astype(jnp.float32)                # NHWC -> NCHW once


# ------------------------------ pure-JAX reference ---------------------------
def _ref_forward(x, p):
    dn = ("NCHW", "OIHW", "NCHW")

    def conv(x, w, b, s, pad):
        y = jax.lax.conv_general_dilated(x, w, (s, s), [(pad, pad), (pad, pad)],
                                         dimension_numbers=dn)
        return y + b[None, :, None, None]

    def convT(x, w, b, s, pad, op):
        ic, oc, kh, kw = w.shape
        wc = jnp.flip(w, (2, 3)).transpose(1, 0, 2, 3)
        y = jax.lax.conv_general_dilated(
            x, wc, (1, 1),
            [(kh - 1 - pad, kh - 1 - pad + op), (kw - 1 - pad, kw - 1 - pad + op)],
            lhs_dilation=(s, s), dimension_numbers=dn)
        return y + b[None, :, None, None]

    h = jax.nn.relu(conv(x, p["e1w"], p["e1b"], 2, 1))
    h = jax.nn.relu(conv(h, p["e2w"], p["e2b"], 2, 1))
    h = conv(h, p["e3w"], p["e3b"], 1, 0)
    h = jax.nn.relu(convT(h, p["d1w"], p["d1b"], 1, 0, 0))
    h = jax.nn.relu(convT(h, p["d2w"], p["d2b"], 2, 1, 1))
    h = jax.nn.sigmoid(convT(h, p["d3w"], p["d3b"], 2, 2, 1))
    return h


if __name__ == "__main__":
    key = jax.random.PRNGKey(0)
    kx, kp = jax.random.split(key)
    # 28x28 input so the 7x7 bottleneck conv sees a 7x7 map (MNIST-style module).
    x = jax.random.normal(kx, (2, 3, 28, 28), jnp.float32)
    raw_params = init_params(kp)
    prep = prepare_params(raw_params)          # one-time weight prep (hoisted)

    fwd = jax.jit(lambda inp: autoencoder_forward(inp, prep))
    out = jax.block_until_ready(fwd(x))

    ref = _ref_forward(x, raw_params)
    # bf16 matmul path -> loosened tolerance vs the f32 XLA reference
    np.testing.assert_allclose(np.asarray(out), np.asarray(ref), rtol=5e-2, atol=5e-2)
    assert out.shape == (2, 3, 26, 26), out.shape  # matches PyTorch module output shape
    print("KERNEL_OK")
</pallas_src>

<mosaic_0001>
module attributes {stable_mosaic.version = 11 : i64} {
  func.func @_mm_bias_act_kernel(%arg0: i32, %arg1: memref<200x72xbf16, #tpu.memory_space<vmem>>, %arg2: memref<72x128xbf16, #tpu.memory_space<vmem>>, %arg3: memref<1x128xf32, #tpu.memory_space<vmem>>, %arg4: memref<200x128xbf16, #tpu.memory_space<vmem>>) attributes {dimension_semantics = [#tpu.dimension_semantics<parallel>], iteration_bounds = array<i64: 2>, scalar_prefetch = 0 : i64, scratch_operands = 0 : i64, tpu.core_type = #tpu.core_type<tc>, window_params = [{transform_indices = @transform_0, window_bounds = array<i64: 200, 72>}, {pipeline_mode = #tpu.pipeline_mode<synchronous>, transform_indices = @transform_1, window_bounds = array<i64: 72, 128>}, {pipeline_mode = #tpu.pipeline_mode<synchronous>, transform_indices = @transform_2, window_bounds = array<i64: 1, 128>}, {transform_indices = @transform_3, window_bounds = array<i64: 200, 128>}]} {
    %c0 = arith.constant 0 : index
    %c0_0 = arith.constant 0 : index
    %0 = vector.load %arg1[%c0, %c0_0] : memref<200x72xbf16, #tpu.memory_space<vmem>>, vector<200x72xbf16>
    %c0_1 = arith.constant 0 : index
    %c0_2 = arith.constant 0 : index
    %1 = vector.load %arg2[%c0_1, %c0_2] : memref<72x128xbf16, #tpu.memory_space<vmem>>, vector<72x128xbf16>
    %cst = arith.constant dense<0.000000e+00> : vector<200x128xf32>
    %2 = tpu.matmul %0, %1, %cst {dimension_numbers = #tpu.dot_dimension_numbers<[1], [0], [0], [1], [0, 0, 1, 1], [], []>} : vector<200x72xbf16>, vector<72x128xbf16>, vector<200x128xf32> -> vector<200x128xf32>
    %c0_3 = arith.constant 0 : index
    %c0_4 = arith.constant 0 : index
    %3 = vector.load %arg3[%c0_3, %c0_4] : memref<1x128xf32, #tpu.memory_space<vmem>>, vector<1x128xf32>
    %4 = vector.broadcast %3 : vector<1x128xf32> to vector<200x128xf32>
    %5 = arith.addf %2, %4 : vector<200x128xf32>
    %cst_5 = arith.constant 0.000000e+00 : f32
    %6 = vector.broadcast %cst_5 : f32 to vector<200x128xf32>
    %7 = arith.maximumf %5, %6 : vector<200x128xf32>
    %8 = arith.truncf %7 : vector<200x128xf32> to vector<200x128xbf16>
    %c0_6 = arith.constant 0 : index
    %c0_7 = arith.constant 0 : index
    %9 = vector.load %arg4[%c0_6, %c0_7] : memref<200x128xbf16, #tpu.memory_space<vmem>>, vector<200x128xbf16>
    tpu.vector_store %arg4[%c0_6, %c0_7], %8 {strides = array<i32>} : memref<200x128xbf16, #tpu.memory_space<vmem>>, vector<200x128xbf16>,
    return
  }
  func.func @transform_0(%arg0: i32) -> (i32, i32) {
    %c0_i32 = arith.constant 0 : i32
    %c0_i32_0 = arith.constant 0 : i32
    return %arg0, %c0_i32 : i32, i32
  }
  func.func @transform_1(%arg0: i32) -> (i32, i32) {
    %c0_i32 = arith.constant 0 : i32
    %c0_i32_0 = arith.constant 0 : i32
    %c0_i32_1 = arith.constant 0 : i32
    return %c0_i32, %c0_i32_0 : i32, i32
  }
  func.func @transform_2(%arg0: i32) -> (i32, i32) {
    %c0_i32 = arith.constant 0 : i32
    %c0_i32_0 = arith.constant 0 : i32
    %c0_i32_1 = arith.constant 0 : i32
    return %c0_i32, %c0_i32_0 : i32, i32
  }
  func.func @transform_3(%arg0: i32) -> (i32, i32) {
    %c0_i32 = arith.constant 0 : i32
    %c0_i32_0 = arith.constant 0 : i32
    return %arg0, %c0_i32 : i32, i32
  }
}

module attributes {stable_mosaic.version = 11 : i64} {
  func.func @_mm_bias_act_kernel(%arg0: i32, %arg1: memref<98x144xbf16, #tpu.memory_space<vmem>>, %arg2: memref<144x128xbf16, #tpu.memory_space<vmem>>, %arg3: memref<1x128xf32, #tpu.memory_space<vmem>>, %arg4: memref<98x128xbf16, #tpu.memory_space<vmem>>) attributes {dimension_semantics = [#tpu.dimension_semantics<parallel>], iteration_bounds = array<i64: 1>, scalar_prefetch = 0 : i64, scratch_operands = 0 : i64, tpu.core_type = #tpu.core_type<tc>, window_params = [{transform_indices = @transform_0, window_bounds = array<i64: 98, 144>}, {pipeline_mode = #tpu.pipeline_mode<synchronous>, transform_indices = @transform_1, window_bounds = array<i64: 144, 128>}, {pipeline_mode = #tpu.pipeline_mode<synchronous>, transform_indices = @transform_2, window_bounds = array<i64: 1, 128>}, {transform_indices = @transform_3, window_bounds = array<i64: 98, 128>}]} {
    %c0 = arith.constant 0 : index
    %c0_0 = arith.constant 0 : index
    %0 = vector.load %arg1[%c0, %c0_0] : memref<98x144xbf16, #tpu.memory_space<vmem>>, vector<98x144xbf16>
    %c0_1 = arith.constant 0 : index
    %c0_2 = arith.constant 0 : index
    %1 = vector.load %arg2[%c0_1, %c0_2] : memref<144x128xbf16, #tpu.memory_space<vmem>>, vector<144x128xbf16>
    %cst = arith.constant dense<0.000000e+00> : vector<98x128xf32>
    %2 = tpu.matmul %0, %1, %cst {dimension_numbers = #tpu.dot_dimension_numbers<[1], [0], [0], [1], [0, 0, 1, 1], [], []>} : vector<98x144xbf16>, vector<144x128xbf16>, vector<98x128xf32> -> vector<98x128xf32>
    %c0_3 = arith.constant 0 : index
    %c0_4 = arith.constant 0 : index
    %3 = vector.load %arg3[%c0_3, %c0_4] : memref<1x128xf32, #tpu.memory_space<vmem>>, vector<1x128xf32>
    %4 = vector.broadcast %3 : vector<1x128xf32> to vector<98x128xf32>
    %5 = arith.addf %2, %4 : vector<98x128xf32>
    %cst_5 = arith.constant 0.000000e+00 : f32
    %6 = vector.broadcast %cst_5 : f32 to vector<98x128xf32>
    %7 = arith.maximumf %5, %6 : vector<98x128xf32>
    %8 = arith.truncf %7 : vector<98x128xf32> to vector<98x128xbf16>
    %c0_6 = arith.constant 0 : index
    %c0_7 = arith.constant 0 : index
    %9 = vector.load %arg4[%c0_6, %c0_7] : memref<98x128xbf16, #tpu.memory_space<vmem>>, vector<98x128xbf16>
    tpu.vector_store %arg4[%c0_6, %c0_7], %8 {strides = array<i32>} : memref<98x128xbf16, #tpu.memory_space<vmem>>, vector<98x128xbf16>,
    return
  }
  func.func @transform_0(%arg0: i32) -> (i32, i32) {
    %c0_i32 = arith.constant 0 : i32
    %c0_i32_0 = arith.constant 0 : i32
    return %arg0, %c0_i32 : i32, i32
  }
  func.func @transform_1(%arg0: i32) -> (i32, i32) {
    %c0_i32 = arith.constant 0 : i32
    %c0_i32_0 = arith.constant 0 : i32
    %c0_i32_1 = arith.constant 0 : i32
    return %c0_i32, %c0_i32_0 : i32, i32
  }
  func.func @transform_2(%arg0: i32) -> (i32, i32) {
    %c0_i32 = arith.constant 0 : i32
    %c0_i32_0 = arith.constant 0 : i32
    %c0_i32_1 = arith.constant 0 : i32
    return %c0_i32, %c0_i32_0 : i32, i32
  }
  func.func @transform_3(%arg0: i32) -> (i32, i32) {
    %c0_i32 = arith.constant 0 : i32
    %c0_i32_0 = arith.constant 0 : i32
    return %arg0, %c0_i32 : i32, i32
  }
}

module attributes {stable_mosaic.version = 11 : i64} {
  func.func @_bottleneck_kernel(%arg0: i32, %arg1: memref<2x1568xbf16, #tpu.memory_space<vmem>>, %arg2: memref<1568x128xbf16, #tpu.memory_space<vmem>>, %arg3: memref<1x128xf32, #tpu.memory_space<vmem>>, %arg4: memref<128x1664xbf16, #tpu.memory_space<vmem>>, %arg5: memref<1x1664xf32, #tpu.memory_space<vmem>>, %arg6: memref<2x1664xbf16, #tpu.memory_space<vmem>>) attributes {dimension_semantics = [#tpu.dimension_semantics<arbitrary>], iteration_bounds = array<i64: 1>, scalar_prefetch = 0 : i64, scratch_operands = 0 : i64, tpu.core_type = #tpu.core_type<tc>, window_params = [{pipeline_mode = #tpu.pipeline_mode<synchronous>, transform_indices = @transform_0, window_bounds = array<i64: 2, 1568>}, {pipeline_mode = #tpu.pipeline_mode<synchronous>, transform_indices = @transform_1, window_bounds = array<i64: 1568, 128>}, {pipeline_mode = #tpu.pipeline_mode<synchronous>, transform_indices = @transform_2, window_bounds = array<i64: 1, 128>}, {pipeline_mode = #tpu.pipeline_mode<synchronous>, transform_indices = @transform_3, window_bounds = array<i64: 128, 1664>}, {pipeline_mode = #tpu.pipeline_mode<synchronous>, transform_indices = @transform_4, window_bounds = array<i64: 1, 1664>}, {pipeline_mode = #tpu.pipeline_mode<synchronous>, transform_indices = @transform_5, window_bounds = array<i64: 2, 1664>}]} {
    %c0 = arith.constant 0 : index
    %c0_0 = arith.constant 0 : index
    %0 = vector.load %arg1[%c0, %c0_0] : memref<2x1568xbf16, #tpu.memory_space<vmem>>, vector<2x1568xbf16>
    %c0_1 = arith.constant 0 : index
    %c0_2 = arith.constant 0 : index
    %1 = vector.load %arg2[%c0_1, %c0_2] : memref<1568x128xbf16, #tpu.memory_space<vmem>>, vector<1568x128xbf16>
    %cst = arith.constant dense<0.000000e+00> : vector<2x128xf32>
    %2 = tpu.matmul %0, %1, %cst {dimension_numbers = #tpu.dot_dimension_numbers<[1], [0], [0], [1], [0, 0, 1, 1], [], []>} : vector<2x1568xbf16>, vector<1568x128xbf16>, vector<2x128xf32> -> vector<2x128xf32>
    %c0_3 = arith.constant 0 : index
    %c0_4 = arith.constant 0 : index
    %3 = vector.load %arg3[%c0_3, %c0_4] : memref<1x128xf32, #tpu.memory_space<vmem>>, vector<1x128xf32>
    %4 = vector.broadcast %3 : vector<1x128xf32> to vector<2x128xf32>
    %5 = arith.addf %2, %4 : vector<2x128xf32>
    %6 = arith.truncf %5 : vector<2x128xf32> to vector<2x128xbf16>
    %c0_5 = arith.constant 0 : index
    %c0_6 = arith.constant 0 : index
    %7 = vector.load %arg4[%c0_5, %c0_6] : memref<128x1664xbf16, #tpu.memory_space<vmem>>, vector<128x1664xbf16>
    %cst_7 = arith.constant dense<0.000000e+00> : vector<2x1664xf32>
    %8 = tpu.matmul %6, %7, %cst_7 {dimension_numbers = #tpu.dot_dimension_numbers<[1], [0], [0], [1], [0, 0, 1, 1], [], []>} : vector<2x128xbf16>, vector<128x1664xbf16>, vector<2x1664xf32> -> vector<2x1664xf32>
    %c0_8 = arith.constant 0 : index
    %c0_9 = arith.constant 0 : index
    %9 = vector.load %arg5[%c0_8, %c0_9] : memref<1x1664xf32, #tpu.memory_space<vmem>>, vector<1x1664xf32>
    %10 = vector.broadcast %9 : vector<1x1664xf32> to vector<2x1664xf32>
    %11 = arith.addf %8, %10 : vector<2x1664xf32>
    %cst_10 = arith.constant 0.000000e+00 : f32
    %12 = vector.broadcast %cst_10 : f32 to vector<2x1664xf32>
    %13 = arith.maximumf %11, %12 : vector<2x1664xf32>
    %14 = arith.truncf %13 : vector<2x1664xf32> to vector<2x1664xbf16>
    %c0_11 = arith.constant 0 : index
    %c0_12 = arith.constant 0 : index
    %15 = vector.load %arg6[%c0_11, %c0_12] : memref<2x1664xbf16, #tpu.memory_space<vmem>>, vector<2x1664xbf16>
    tpu.vector_store %arg6[%c0_11, %c0_12], %14 {strides = array<i32>} : memref<2x1664xbf16, #tpu.memory_space<vmem>>, vector<2x1664xbf16>,
    return
  }
  func.func @transform_0(%arg0: i32) -> (i32, i32) {
    %c0_i32 = arith.constant 0 : i32
    %c0_i32_0 = arith.constant 0 : i32
    %c0_i32_1 = arith.constant 0 : i32
    return %c0_i32, %c0_i32_0 : i32, i32
  }
  func.func @transform_1(%arg0: i32) -> (i32, i32) {
    %c0_i32 = arith.constant 0 : i32
    %c0_i32_0 = arith.constant 0 : i32
    %c0_i32_1 = arith.constant 0 : i32
    return %c0_i32, %c0_i32_0 : i32, i32
  }
  func.func @transform_2(%arg0: i32) -> (i32, i32) {
    %c0_i32 = arith.constant 0 : i32
    %c0_i32_0 = arith.constant 0 : i32
    %c0_i32_1 = arith.constant 0 : i32
    return %c0_i32, %c0_i32_0 : i32, i32
  }
  func.func @transform_3(%arg0: i32) -> (i32, i32) {
    %c0_i32 = arith.constant 0 : i32
    %c0_i32_0 = arith.constant 0 : i32
    %c0_i32_1 = arith.constant 0 : i32
    return %c0_i32, %c0_i32_0 : i32, i32
  }
  func.func @transform_4(%arg0: i32) -> (i32, i32) {
    %c0_i32 = arith.constant 0 : i32
    %c0_i32_0 = arith.constant 0 : i32
    %c0_i32_1 = arith.constant 0 : i32
    return %c0_i32, %c0_i32_0 : i32, i32
  }
  func.func @transform_5(%arg0: i32) -> (i32, i32) {
    %c0_i32 = arith.constant 0 : i32
    %c0_i32_0 = arith.constant 0 : i32
    %c0_i32_1 = arith.constant 0 : i32
    return %c0_i32, %c0_i32_0 : i32, i32
  }
}

module attributes {stable_mosaic.version = 11 : i64} {
  func.func @_mm_bias_act_kernel(%arg0: i32, %arg1: memref<98x128xbf16, #tpu.memory_space<vmem>>, %arg2: memref<128x128xbf16, #tpu.memory_space<vmem>>, %arg3: memref<1x128xf32, #tpu.memory_space<vmem>>, %arg4: memref<98x128xbf16, #tpu.memory_space<vmem>>) attributes {dimension_semantics = [#tpu.dimension_semantics<parallel>], iteration_bounds = array<i64: 1>, scalar_prefetch = 0 : i64, scratch_operands = 0 : i64, tpu.core_type = #tpu.core_type<tc>, window_params = [{transform_indices = @transform_0, window_bounds = array<i64: 98, 128>}, {pipeline_mode = #tpu.pipeline_mode<synchronous>, transform_indices = @transform_1, window_bounds = array<i64: 128, 128>}, {pipeline_mode = #tpu.pipeline_mode<synchronous>, transform_indices = @transform_2, window_bounds = array<i64: 1, 128>}, {transform_indices = @transform_3, window_bounds = array<i64: 98, 128>}]} {
    %c0 = arith.constant 0 : index
    %c0_0 = arith.constant 0 : index
    %0 = vector.load %arg1[%c0, %c0_0] : memref<98x128xbf16, #tpu.memory_space<vmem>>, vector<98x128xbf16>
    %c0_1 = arith.constant 0 : index
    %c0_2 = arith.constant 0 : index
    %1 = vector.load %arg2[%c0_1, %c0_2] : memref<128x128xbf16, #tpu.memory_space<vmem>>, vector<128x128xbf16>
    %cst = arith.constant dense<0.000000e+00> : vector<98x128xf32>
    %2 = tpu.matmul %0, %1, %cst {dimension_numbers = #tpu.dot_dimension_numbers<[1], [0], [0], [1], [0, 0, 1, 1], [], []>} : vector<98x128xbf16>, vector<128x128xbf16>, vector<98x128xf32> -> vector<98x128xf32>
    %c0_3 = arith.constant 0 : index
    %c0_4 = arith.constant 0 : index
    %3 = vector.load %arg3[%c0_3, %c0_4] : memref<1x128xf32, #tpu.memory_space<vmem>>, vector<1x128xf32>
    %4 = vector.broadcast %3 : vector<1x128xf32> to vector<98x128xf32>
    %5 = arith.addf %2, %4 : vector<98x128xf32>
    %cst_5 = arith.constant 0.000000e+00 : f32
    %6 = vector.broadcast %cst_5 : f32 to vector<98x128xf32>
    %7 = arith.maximumf %5, %6 : vector<98x128xf32>
    %8 = arith.truncf %7 : vector<98x128xf32> to vector<98x128xbf16>
    %c0_6 = arith.constant 0 : index
    %c0_7 = arith.constant 0 : index
    %9 = vector.load %arg4[%c0_6, %c0_7] : memref<98x128xbf16, #tpu.memory_space<vmem>>, vector<98x128xbf16>
    tpu.vector_store %arg4[%c0_6, %c0_7], %8 {strides = array<i32>} : memref<98x128xbf16, #tpu.memory_space<vmem>>, vector<98x128xbf16>,
    return
  }
  func.func @transform_0(%arg0: i32) -> (i32, i32) {
    %c0_i32 = arith.constant 0 : i32
    %c0_i32_0 = arith.constant 0 : i32
    return %arg0, %c0_i32 : i32, i32
  }
  func.func @transform_1(%arg0: i32) -> (i32, i32) {
    %c0_i32 = arith.constant 0 : i32
    %c0_i32_0 = arith.constant 0 : i32
    %c0_i32_1 = arith.constant 0 : i32
    return %c0_i32, %c0_i32_0 : i32, i32
  }
  func.func @transform_2(%arg0: i32) -> (i32, i32) {
    %c0_i32 = arith.constant 0 : i32
    %c0_i32_0 = arith.constant 0 : i32
    %c0_i32_1 = arith.constant 0 : i32
    return %c0_i32, %c0_i32_0 : i32, i32
  }
  func.func @transform_3(%arg0: i32) -> (i32, i32) {
    %c0_i32 = arith.constant 0 : i32
    %c0_i32_0 = arith.constant 0 : i32
    return %arg0, %c0_i32 : i32, i32
  }
}

module attributes {stable_mosaic.version = 11 : i64} {
  func.func @_mm_bias_act_kernel(%arg0: i32, %arg1: memref<176x64xbf16, #tpu.memory_space<vmem>>, %arg2: memref<64x128xbf16, #tpu.memory_space<vmem>>, %arg3: memref<1x128xf32, #tpu.memory_space<vmem>>, %arg4: memref<176x128xbf16, #tpu.memory_space<vmem>>) attributes {dimension_semantics = [#tpu.dimension_semantics<parallel>], iteration_bounds = array<i64: 2>, scalar_prefetch = 0 : i64, scratch_operands = 0 : i64, tpu.core_type = #tpu.core_type<tc>, window_params = [{transform_indices = @transform_0, window_bounds = array<i64: 176, 64>}, {pipeline_mode = #tpu.pipeline_mode<synchronous>, transform_indices = @transform_1, window_bounds = array<i64: 64, 128>}, {pipeline_mode = #tpu.pipeline_mode<synchronous>, transform_indices = @transform_2, window_bounds = array<i64: 1, 128>}, {transform_indices = @transform_3, window_bounds = array<i64: 176, 128>}]} {
    %c0 = arith.constant 0 : index
    %c0_0 = arith.constant 0 : index
    %0 = vector.load %arg1[%c0, %c0_0] : memref<176x64xbf16, #tpu.memory_space<vmem>>, vector<176x64xbf16>
    %c0_1 = arith.constant 0 : index
    %c0_2 = arith.constant 0 : index
    %1 = vector.load %arg2[%c0_1, %c0_2] : memref<64x128xbf16, #tpu.memory_space<vmem>>, vector<64x128xbf16>
    %cst = arith.constant dense<0.000000e+00> : vector<176x128xf32>
    %2 = tpu.matmul %0, %1, %cst {dimension_numbers = #tpu.dot_dimension_numbers<[1], [0], [0], [1], [0, 0, 1, 1], [], []>} : vector<176x64xbf16>, vector<64x128xbf16>, vector<176x128xf32> -> vector<176x128xf32>
    %c0_3 = arith.constant 0 : index
    %c0_4 = arith.constant 0 : index
    %3 = vector.load %arg3[%c0_3, %c0_4] : memref<1x128xf32, #tpu.memory_space<vmem>>, vector<1x128xf32>
    %4 = vector.broadcast %3 : vector<1x128xf32> to vector<176x128xf32>
    %5 = arith.addf %2, %4 : vector<176x128xf32>
    %cst_5 = arith.constant 0.000000e+00 : f32
    %6 = vector.broadcast %cst_5 : f32 to vector<176x128xf32>
    %7 = arith.subf %6, %5 : vector<176x128xf32>
    %8 = math.exp %7 : vector<176x128xf32>
    %cst_6 = arith.constant 1.000000e+00 : f32
    %9 = vector.broadcast %cst_6 : f32 to vector<176x128xf32>
    %10 = arith.addf %9, %8 : vector<176x128xf32>
    %11 = tpu.reciprocal %10 {approx = true} : vector<176x128xf32> -> vector<176x128xf32>
    %12 = arith.truncf %11 : vector<176x128xf32> to vector<176x128xbf16>
    %c0_7 = arith.constant 0 : index
    %c0_8 = arith.constant 0 : index
    %13 = vector.load %arg4[%c0_7, %c0_8] : memref<176x128xbf16, #tpu.memory_space<vmem>>, vector<176x128xbf16>
    tpu.vector_store %arg4[%c0_7, %c0_8], %12 {strides = array<i32>} : memref<176x128xbf16, #tpu.memory_space<vmem>>, vector<176x128xbf16>,
    return
  }
  func.func @transform_0(%arg0: i32) -> (i32, i32) {
    %c0_i32 = arith.constant 0 : i32
    %c0_i32_0 = arith.constant 0 : i32
    return %arg0, %c0_i32 : i32, i32
  }
  func.func @transform_1(%arg0: i32) -> (i32, i32) {
    %c0_i32 = arith.constant 0 : i32
    %c0_i32_0 = arith.constant 0 : i32
    %c0_i32_1 = arith.constant 0 : i32
    return %c0_i32, %c0_i32_0 : i32, i32
  }
  func.func @transform_2(%arg0: i32) -> (i32, i32) {
    %c0_i32 = arith.constant 0 : i32
    %c0_i32_0 = arith.constant 0 : i32
    %c0_i32_1 = arith.constant 0 : i32
    return %c0_i32, %c0_i32_0 : i32, i32
  }
  func.func @transform_3(%arg0: i32) -> (i32, i32) {
    %c0_i32 = arith.constant 0 : i32
    %c0_i32_0 = arith.constant 0 : i32
    return %arg0, %c0_i32 : i32, i32
  }
}

</mosaic_0001>

<llo_original>
// kernel: _lambda_.5
$region0: #{_lambda_.5}
  #allocation0 [shape = 'u32[]', space=smem, size = 0x4, offset = 0x4, fixed_abs, tag = 'smem constant byte address 0x4 - core index']
  #allocation1 [shape = 'u32[144,128]{1,0:T(1,128)}', space=vmem, size = 0x12000, scoped, tag = 'internal scratch']
  %s0 = inlined_call_operand.vmem [shape: bf16[392,72], index: 0, kind: input, shape index: {}]
  %s1 = inlined_call_operand.vmem [shape: bf16[72,128], index: 1, kind: input, shape index: {}]
  %s2 = inlined_call_operand.vmem [shape: f32[1,128], index: 2, kind: input, shape index: {}]
  %s3 = inlined_call_operand.vmem [shape: bf16[392,128], index: 3, kind: output, shape index: {}]
  %s4 = sld [smem:[#allocation0]]
  $region89: #{_lambda_.5} parent=0
    _
  %s6 = ssub.s32 1, %s4
  %s7 = scalar_select 0, %s6, %s4
  $region1: #{_lambda_.5} parent=0
    #allocation2 [shape = 'u8[102400]{0}', space=vmem, size = 0x19000, scoped, tag = 'output window, operand 0']
    loop: start=0, step=1, limit=4
    $region2: #{_lambda_.5} parent=1 // loop_pre_header
      _
    $region3: #{_lambda_.5} parent=1 // loop_header
      %s9 = sphi 0, %s13
      %p10 = scmp.ge.s32.totalorder %s9, 4
      %s19 = sphi 0, %s21
      %s22 = sphi 0, %s19
      %s23 = sphi 0, %s22
      %s39 = sphi 0, %s23
      %s43 = sphi 0, %s43
      %s45 = sphi 0, %s43
      %s46 = sphi 0, %s45
      %s60 = sphi 0, %s46
      %s64 = sphi 0, %s64
      %s66 = sphi 0, %s64
      %s67 = sphi 0, %s66
      %s81 = sphi 0, %s67
      %s87 = sphi 0, %s89
      %s90 = sphi 0, %s87
      %s91 = sphi 0, %s90
      %s107 = sphi 0, %s91
    $region4: #{_lambda_.5} parent=1 // loop_header_branch
      %12 = sbr.rel (%p10) target = $region8
    $region5: #{_lambda_.5} parent=1 // loop_body
      %s14 = ssub.s32 %s9, 1
      %s15 = ssub.s32 %s9, 2
      %s16 = sadd.s32 %s9, 1
      %s17 = ssub.s32 %s9, %s16
      %p18 = scmp.eq.s32.totalorder %s17, 0
      %s20 = sadd.s32 %s19, 1
      %s21 = scalar_select %p18, %s19, %s20
      %p24 = pneg %p18
      %p25 = scmp.eq.s32.totalorder %s9, 1
      %p26 = por %p24, %p25
      %p27 = scmp.ne.s32.totalorder %s19, %s22
      %p28 = scmp.eq.s32.totalorder %s9, 0
      %p29 = por %p27, %p28
      %p30 = scmp.ne.s32.totalorder %s19, %s22
      %p31 = scmp.eq.s32.totalorder %s14, 1
      %p32 = por %p30, %p31
      %p33 = scmp.ne.s32.totalorder %s22, %s23
      %p34 = scmp.eq.s32.totalorder %s14, 0
      %p35 = por %p33, %p34
      %p36 = scmp.ne.s32.totalorder %s22, %s23
      %p37 = scmp.eq.s32.totalorder %s15, 1
      %p38 = por %p36, %p37
      %p40 = scmp.ne.s32.totalorder %s23, %s39
      %p41 = scmp.eq.s32.totalorder %s15, 0
      %p42 = por %p40, %p41
      %s44 = sadd.s32 %s43, 1
      %p47 = scmp.eq.s32.totalorder %s9, 1
      %p48 = scmp.ne.s32.totalorder %s43, %s45
      %p49 = scmp.eq.s32.totalorder %s9, 0
      %p50 = por %p48, %p49
      %p51 = scmp.ne.s32.totalorder %s43, %s45
      %p52 = scmp.eq.s32.totalorder %s14, 1
      %p53 = por %p51, %p52
      %p54 = scmp.ne.s32.totalorder %s45, %s46
      %p55 = scmp.eq.s32.totalorder %s14, 0
      %p56 = por %p54, %p55
      %p57 = scmp.ne.s32.totalorder %s45, %s46
      %p58 = scmp.eq.s32.totalorder %s15, 1
      %p59 = por %p57, %p58
      %p61 = scmp.ne.s32.totalorder %s46, %s60
      %p62 = scmp.eq.s32.totalorder %s15, 0
      %p63 = por %p61, %p62
      %s65 = sadd.s32 %s64, 1
      %p68 = scmp.eq.s32.totalorder %s9, 1
      %p69 = scmp.ne.s32.totalorder %s64, %s66
      %p70 = scmp.eq.s32.totalorder %s9, 0
      %p71 = por %p69, %p70
      %p72 = scmp.ne.s32.totalorder %s64, %s66
      %p73 = scmp.eq.s32.totalorder %s14, 1
      %p74 = por %p72, %p73
      %p75 = scmp.ne.s32.totalorder %s66, %s67
      %p76 = scmp.eq.s32.totalorder %s14, 0
      %p77 = por %p75, %p76
      %p78 = scmp.ne.s32.totalorder %s66, %s67
      %p79 = scmp.eq.s32.totalorder %s15, 1
      %p80 = por %p78, %p79
      %p82 = scmp.ne.s32.totalorder %s67, %s81
      %p83 = scmp.eq.s32.totalorder %s15, 0
      %p84 = por %p82, %p83
      %s85 = ssub.s32 %s9, %s16
      %p86 = scmp.eq.s32.totalorder %s85, 0
      %s88 = sadd.s32 %s87, 1
      %s89 = scalar_select %p86, %s87, %s88
      %p92 = pneg %p86
      %p93 = scmp.eq.s32.totalorder %s9, 1
      %p94 = por %p92, %p93
      %p95 = scmp.ne.s32.totalorder %s87, %s90
      %p96 = scmp.eq.s32.totalorder %s9, 0
      %p97 = por %p95, %p96
      %p98 = scmp.ne.s32.totalorder %s87, %s90
      %p99 = scmp.eq.s32.totalorder %s14, 1
      %p100 = por %p98, %p99
      %p101 = scmp.ne.s32.totalorder %s90, %s91
      %p102 = scmp.eq.s32.totalorder %s14, 0
      %p103 = por %p101, %p102
      %p104 = scmp.ne.s32.totalorder %s90, %s91
      %p105 = scmp.eq.s32.totalorder %s15, 1
      %p106 = por %p104, %p105
      %p108 = scmp.ne.s32.totalorder %s91, %s107
      %p109 = scmp.eq.s32.totalorder %s15, 0
      %p110 = por %p108, %p109
      %p111 = scmp.le.s32.totalorder 1, %s9
      %p112 = scmp.lt.s32.totalorder %s9, 3
      %p113 = pnand %p111, %p112
      %p114 = pneg %p113
      // Predicated region
      $region9: #{_lambda_.5} parent=5 // pred_check
        _
      $region10: #{_lambda_.5} parent=5 // pred_check_branch
        %116 = sbr.rel (%p113) target = $region12
      $region11: #{_lambda_.5} parent=5 // pred_region
        %s117 = ssub.s32 %s9, 1
        // Predicated region
        $region13: #{_lambda_.5} parent=11 // pred_check
          %p118 = pneg %p56
        $region14: #{_lambda_.5} parent=11 // pred_check_branch
          %120 = sbr.rel (%p118) target = $region16
        $region15: #{_lambda_.5} parent=11 // pred_region
          _
        $region16: #{_lambda_.5} parent=11 // pred_fallthru
          _
        // Predicated region
        $region17: #{_lambda_.5} parent=11 // pred_check
          %p121 = pneg %p77
        $region18: #{_lambda_.5} parent=11 // pred_check_branch
          %123 = sbr.rel (%p121) target = $region20
        $region19: #{_lambda_.5} parent=11 // pred_region
          _
        $region20: #{_lambda_.5} parent=11 // pred_fallthru
          _
      $region12: #{_lambda_.5} parent=5 // pred_fallthru
        _
      %p124 = scmp.lt.s32.totalorder %s9, 2
      // Predicated region
      $region21: #{_lambda_.5} parent=5 // pred_check
        %p125 = pneg %p124
      $region22: #{_lambda_.5} parent=5 // pred_check_branch
        %127 = sbr.rel (%p125) target = $region24
      $region23: #{_lambda_.5} parent=5 // pred_region
        // Predicated region
        $region25: #{_lambda_.5} parent=23 // pred_check
          %p128 = pneg %p29
        $region26: #{_lambda_.5} parent=23 // pred_check_branch
          %130 = sbr.rel (%p128) target = $region28
        $region27: #{_lambda_.5} parent=23 // pred_region
          %s131 = smul.u32 25, %s9
          %s132 = ssub.s32 49, %s131
          %p133 = scmp.lt.s32.totalorder %s132, 25
          %s134 = scalar_select %p133, %s132, 25
          %s135 = smul.u32 64, %s134
          %p136 = scmp.lt.s32.totalorder %s131, 48
          %s137 = scalar_select %p136, %s131, 48
          %s138 = smul.addr %s137, 4
          %s139 = scalar_lea.vmem %s0, %s138
          %s140 = smul.u32 25, %s9
          %s141 = ssub.s32 49, %s140
          %p142 = scmp.lt.s32.totalorder %s141, 25
          %s143 = scalar_select %p142, %s141, 25
          %s144 = smul.u32 64, %s143
        $region28: #{_lambda_.5} parent=23 // pred_fallthru
          _
      $region24: #{_lambda_.5} parent=5 // pred_fallthru
        _
      %p145 = scmp.le.s32.totalorder 1, %s9
      %p146 = scmp.lt.s32.totalorder %s9, 3
      %p147 = pnand %p145, %p146
      %p148 = pneg %p147
      // Predicated region
      $region29: #{_lambda_.5} parent=5 // pred_check
        _
      $region30: #{_lambda_.5} parent=5 // pred_check_branch
        %150 = sbr.rel (%p147) target = $region32
      $region31: #{_lambda_.5} parent=5 // pred_region
        %s151 = ssub.s32 %s9, 1
        %s152 = smul.u32 25, %s14
        %s153 = ssub.s32 49, %s152
        %p154 = scmp.lt.s32.totalorder %s153, 25
        %s155 = scalar_select %p154, %s153, 25
        %s156 = smul.u32 64, %s155
        %p157 = scmp.lt.s32.totalorder %s152, 48
        %s158 = scalar_select %p157, %s152, 48
        %s159 = smul.addr %s158, 4
        %s160 = scalar_lea.vmem %s0, %s159
        %p161 = pneg %p35
        %p162 = pneg %p32
        %p163 = pneg %p56
        %p164 = pneg %p53
        %p165 = pneg %p77
        %p166 = pneg %p74
        %p167 = pneg %p103
        %p168 = pneg %p100
        %s169 = sand.u32 %s90, 1
        %s170 = sand.u32 %s90, 1
        %s171 = smul.addr %s170, 100
        %s172 = scalar_lea.vmem [#allocation2], %s171
        %s173 = smul.u32 25, %s14
        %s174 = ssub.s32 49, %s173
        %p175 = scmp.lt.s32.totalorder %s174, 25
        %s176 = scalar_select %p175, %s174, 25
        %s177 = smul.u32 64, %s176
        %p178 = scmp.lt.s32.totalorder %s173, 48
        %s179 = scalar_select %p178, %s173, 48
        %s180 = smul.addr %s179, 4
        %s181 = scalar_lea.vmem %s0, %s180
        %s182 = smul.u32 25, %s14
        %s183 = ssub.s32 49, %s182
        %p184 = scmp.lt.s32.totalorder %s183, 25
        %s185 = scalar_select %p184, %s183, 25
        %s186 = smul.u32 64, %s185
        %s187 = smul.u32 25, %s14
        %s188 = ssub.s32 49, %s187
        %p189 = scmp.lt.s32.totalorder %s188, 25
        %s190 = scalar_select %p189, %s188, 25
        %s191 = smul.u32 64, %s190
        %v193 = vld [vmem:[%s181] sm:$0xf]
        %v194 = vld [vmem:[%s181 + $0x4] sm:$0xf]
        %v195 = vld [vmem:[%s181 + $0x8] sm:$0xf]
        %v196 = vld [vmem:[%s181 + $0xc] sm:$0xf]
        %v197 = vld [vmem:[%s181 + $0x10] sm:$0xf]
        %v198 = vld [vmem:[%s181 + $0x14] sm:$0xf]
        %v199 = vld [vmem:[%s181 + $0x18] sm:$0xf]
        %v200 = vld [vmem:[%s181 + $0x1c] sm:$0xf]
        %v201 = vld [vmem:[%s181 + $0x20] sm:$0xf]
        %v202 = vld [vmem:[%s181 + $0x24] sm:$0xf]
        %v203 = vld [vmem:[%s181 + $0x28] sm:$0xf]
        %v204 = vld [vmem:[%s181 + $0x2c] sm:$0xf]
        %v205 = vld [vmem:[%s181 + $0x30] sm:$0xf]
        %v206 = vld [vmem:[%s181 + $0x34] sm:$0xf]
        %v207 = vld [vmem:[%s181 + $0x38] sm:$0xf]
        %v208 = vld [vmem:[%s181 + $0x3c] sm:$0xf]
        %v209 = vld [vmem:[%s181 + $0x40] sm:$0xf]
        %v210 = vld [vmem:[%s181 + $0x44] sm:$0xf]
        %v211 = vld [vmem:[%s181 + $0x48] sm:$0xf]
        %v212 = vld [vmem:[%s181 + $0x4c] sm:$0xf]
        %v213 = vld [vmem:[%s181 + $0x50] sm:$0xf]
        %v214 = vld [vmem:[%s181 + $0x54] sm:$0xf]
        %v215 = vld [vmem:[%s181 + $0x58] sm:$0xf]
        %v216 = vld [vmem:[%s181 + $0x5c] sm:$0xf]
        %v217 = vld [vmem:[%s181 + $0x60] sm:$0xf]
        %v218 = vld [vmem:[%s1] sm:$0xf]
        %v219 = vld [vmem:[%s1 + $0x4] sm:$0xf]
        %v220 = vld [vmem:[%s1 + $0x8] sm:$0xf]
        %v221 = vld [vmem:[%s1 + $0xc] sm:$0xf]
        %v222 = vld [vmem:[%s1 + $0x10] sm:$0xf]
        %v223 = vld [vmem:[%s1 + $0x14] sm:$0xf]
        %v224 = vld [vmem:[%s1 + $0x18] sm:$0xf]
        %v225 = vld [vmem:[%s1 + $0x1c] sm:$0xf]
        %v226 = vld [vmem:[%s1 + $0x20] sm:$0xf]
        %v227 = vld [vmem:[%s2] sm:$0x1]
        %v229 = vlaneseq
        %v230 = vshrl.u32 %v229, 7
        %v231 = vsub.s32 0, %v230
        %v232 = vrot.slane %v227, %v231
        %v259 = vunpack.c.l.b16 %v193
        %v260 = vunpack.c.l.b16 %v194
        %v261 = vunpack.c.l.b16 %v195
        %v262 = vunpack.c.l.b16 %v196
        %v263 = vunpack.c.l.b16 %v197
        %v264 = vunpack.c.l.b16 %v198
        %v265 = vunpack.c.l.b16 %v199
        %v266 = vunpack.c.l.b16 %v200
        %v267 = vunpack.c.l.b16 %v201
        %v268 = vunpack.c.l.b16 %v202
        %v269 = vunpack.c.l.b16 %v203
        %v270 = vunpack.c.l.b16 %v204
        %v271 = vunpack.c.l.b16 %v205
        %v272 = vunpack.c.l.b16 %v206
        %v273 = vunpack.c.l.b16 %v207
        %v274 = vunpack.c.l.b16 %v208
        %v275 = vunpack.c.l.b16 %v209
        %v276 = vunpack.c.l.b16 %v210
        %v277 = vunpack.c.l.b16 %v211
        %v278 = vunpack.c.l.b16 %v212
        %v279 = vunpack.c.l.b16 %v213
        %v280 = vunpack.c.l.b16 %v214
        %v281 = vunpack.c.l.b16 %v215
        %v282 = vunpack.c.l.b16 %v216
        %v283 = vunpack.c.l.b16 %v217
        %v284 = vpack.c.b16 %v260, %v259
        %v285 = vpack.c.b16 %v262, %v261
        %v286 = vpack.c.b16 %v264, %v263
        %v287 = vpack.c.b16 %v266, %v265
        %v288 = vpack.c.b16 %v268, %v267
        %v289 = vpack.c.b16 %v270, %v269
        %v290 = vpack.c.b16 %v272, %v271
        %v291 = vpack.c.b16 %v274, %v273
        %v292 = vpack.c.b16 %v276, %v275
        %v293 = vpack.c.b16 %v278, %v277
        %v294 = vpack.c.b16 %v280, %v279
        %v295 = vpack.c.b16 %v282, %v281
        %v296 = vpack.c.b16 %v283, %v283
        %v306 = vunpack.c.l.b16 %v218
        %v307 = vunpack.c.l.b16 %v219
        %v308 = vunpack.c.l.b16 %v220
        %v309 = vunpack.c.l.b16 %v221
        %v310 = vunpack.c.l.b16 %v222
        %v311 = vunpack.c.l.b16 %v223
        %v312 = vunpack.c.l.b16 %v224
        %v313 = vunpack.c.l.b16 %v225
        %v314 = vunpack.c.l.b16 %v226
        %v315 = vpack.c.b16 %v307, %v306
        %v316 = vpack.c.b16 %v309, %v308
        %v317 = vpack.c.b16 %v311, %v310
        %v318 = vpack.c.b16 %v313, %v312
        %v319 = vpack.c.b16 %v314, %v314
        %vm324 = vcmask 588800
        %v326 = vsel %vm324, %v284, 0
        %v329 = vsel %vm324, %v285, 0
        %v332 = vsel %vm324, %v286, 0
        %v335 = vsel %vm324, %v287, 0
        %v338 = vsel %vm324, %v288, 0
        %v341 = vsel %vm324, %v289, 0
        %v344 = vsel %vm324, %v290, 0
        %v347 = vsel %vm324, %v291, 0
        %v350 = vsel %vm324, %v292, 0
        %v353 = vsel %vm324, %v293, 0
        %v356 = vsel %vm324, %v294, 0
        %v359 = vsel %vm324, %v295, 0
        %v362 = vsel %vm324, %v296, 0
        %vm364 = vcmask 1043456
        %v366 = vsel %vm364, %v319, 0
        %368 = vmatprep.subr.bf16.mxu0 0
        %369 = vmatpush1.bf16.msra.mxu0 %v315
        %370 = vmatprep.subr.bf16.mxu0 0
        %371 = vmatpush1.bf16.msra.mxu0 %v316
        %372 = vmatprep.subr.bf16.mxu0 0
        %373 = vmatpush1.bf16.msra.mxu0 %v317
        %374 = vmatprep.subr.bf16.mxu0 0
        %375 = vmatpush1.bf16.msra.mxu0 %v318
        %376 = vmatprep.subr.bf16.mxu0 0
        %377 = vmatpush1.bf16.msra.mxu0 %v366
        %378 = vmatprep.subr.bf16.mxu0 0
        %379 = vmatpush1.bf16.msra.mxu0 0
        %380 = vmatprep.subr.bf16.mxu0 0
        %381 = vmatpush1.bf16.msra.mxu0 0
        %382 = vmatprep.subr.bf16.mxu0 0
        %383 = vmatpush1.bf16.msra.mxu0 0
        %384 = vmatprep.subr.bf16.mxu0 0
        %385 = vmatpush1.bf16.msra.mxu0 0
        %386 = vmatprep.subr.bf16.mxu0 0
        %387 = vmatpush1.bf16.msra.mxu0 0
        %388 = vmatprep.subr.bf16.mxu0 0
        %389 = vmatpush1.bf16.msra.mxu0 0
        %390 = vmatprep.subr.bf16.mxu0 0
        %391 = vmatpush1.bf16.msra.mxu0 0
        %392 = vmatprep.subr.bf16.mxu0 0
        %393 = vmatpush1.bf16.msra.mxu0 0
        %394 = vmatprep.subr.bf16.mxu0 0
        %395 = vmatpush1.bf16.msra.mxu0 0
        %396 = vmatprep.subr.bf16.mxu0 0
        %397 = vmatpush1.bf16.msra.mxu0 0
        %398 = vmatprep.subr.bf16.mxu0 0
        %399 = vmatpush1.bf16.msra.mxu0 0
        %400 = vmatprep.mubr.bf16.mxu0 0
        %401 = vmatmul.mubr.bf16.gmra.mrb[0].mxu0 %v326
        %v402 = vpop.f32.mrb[0].mxu0
        %v403 = vadd.f32 %v232, %v402
        %v404 = vpop.f32.mrb[0].mxu0
        %v405 = vpop.f32.mrb[0].mxu0
        %v406 = vadd.f32 %v232, %v405
        %v407 = vpop.f32.mrb[0].mxu0
        %408 = vmatprep.mubr.bf16.mxu0 0
        %409 = vmatmul.mubr.bf16.gmra.mrb[0].mxu0 %v329
        %v410 = vpop.f32.mrb[0].mxu0
        %v411 = vadd.f32 %v232, %v410
        %v412 = vpop.f32.mrb[0].mxu0
        %v413 = vpop.f32.mrb[0].mxu0
        %v414 = vadd.f32 %v232, %v413
        %v415 = vpop.f32.mrb[0].mxu0
        %416 = vmatprep.mubr.bf16.mxu0 0
        %417 = vmatmul.mubr.bf16.gmra.mrb[0].mxu0 %v332
        %v418 = vpop.f32.mrb[0].mxu0
        %v419 = vadd.f32 %v232, %v418
        %v420 = vpop.f32.mrb[0].mxu0
        %v421 = vpop.f32.mrb[0].mxu0
        %v422 = vadd.f32 %v232, %v421
        %v423 = vpop.f32.mrb[0].mxu0
        %424 = vmatprep.mubr.bf16.mxu0 0
        %425 = vmatmul.mubr.bf16.gmra.mrb[0].mxu0 %v335
        %v426 = vpop.f32.mrb[0].mxu0
        %v427 = vadd.f32 %v232, %v426
        %v428 = vpop.f32.mrb[0].mxu0
        %v429 = vpop.f32.mrb[0].mxu0
        %v430 = vadd.f32 %v232, %v429
        %v431 = vpop.f32.mrb[0].mxu0
        %432 = vmatprep.mubr.bf16.mxu0 0
        %433 = vmatmul.mubr.bf16.gmra.mrb[0].mxu0 %v338
        %v434 = vpop.f32.mrb[0].mxu0
        %v435 = vadd.f32 %v232, %v434
        %v436 = vpop.f32.mrb[0].mxu0
        %v437 = vpop.f32.mrb[0].mxu0
        %v438 = vadd.f32 %v232, %v437
        %v439 = vpop.f32.mrb[0].mxu0
        %440 = vmatprep.mubr.bf16.mxu0 0
        %441 = vmatmul.mubr.bf16.gmra.mrb[0].mxu0 %v341
        %v442 = vpop.f32.mrb[0].mxu0
        %v443 = vadd.f32 %v232, %v442
        %v444 = vpop.f32.mrb[0].mxu0
        %v445 = vpop.f32.mrb[0].mxu0
        %v446 = vadd.f32 %v232, %v445
        %v447 = vpop.f32.mrb[0].mxu0
        %448 = vmatprep.mubr.bf16.mxu0 0
        %449 = vmatmul.mubr.bf16.gmra.mrb[0].mxu0 %v344
        %v450 = vpop.f32.mrb[0].mxu0
        %v451 = vadd.f32 %v232, %v450
        %v452 = vpop.f32.mrb[0].mxu0
        %v453 = vpop.f32.mrb[0].mxu0
        %v454 = vadd.f32 %v232, %v453
        %v455 = vpop.f32.mrb[0].mxu0
        %456 = vmatprep.mubr.bf16.mxu0 0
        %457 = vmatmul.mubr.bf16.gmra.mrb[0].mxu0 %v347
        %v458 = vpop.f32.mrb[0].mxu0
        %v459 = vadd.f32 %v232, %v458
        %v460 = vpop.f32.mrb[0].mxu0
        %v461 = vpop.f32.mrb[0].mxu0
        %v462 = vadd.f32 %v232, %v461
        %v463 = vpop.f32.mrb[0].mxu0
        %464 = vmatprep.mubr.bf16.mxu0 0
        %465 = vmatmul.mubr.bf16.gmra.mrb[0].mxu0 %v350
        %v466 = vpop.f32.mrb[0].mxu0
        %v467 = vadd.f32 %v232, %v466
        %v468 = vpop.f32.mrb[0].mxu0
        %v469 = vpop.f32.mrb[0].mxu0
        %v470 = vadd.f32 %v232, %v469
        %v471 = vpop.f32.mrb[0].mxu0
        %472 = vmatprep.mubr.bf16.mxu0 0
        %473 = vmatmul.mubr.bf16.gmra.mrb[0].mxu0 %v353
        %v474 = vpop.f32.mrb[0].mxu0
        %v475 = vadd.f32 %v232, %v474
        %v476 = vpop.f32.mrb[0].mxu0
        %v477 = vpop.f32.mrb[0].mxu0
        %v478 = vadd.f32 %v232, %v477
        %v479 = vpop.f32.mrb[0].mxu0
        %480 = vmatprep.mubr.bf16.mxu0 0
        %481 = vmatmul.mubr.bf16.gmra.mrb[0].mxu0 %v356
        %v482 = vpop.f32.mrb[0].mxu0
        %v483 = vadd.f32 %v232, %v482
        %v484 = vpop.f32.mrb[0].mxu0
        %v485 = vpop.f32.mrb[0].mxu0
        %v486 = vadd.f32 %v232, %v485
        %v487 = vpop.f32.mrb[0].mxu0
        %488 = vmatprep.mubr.bf16.mxu0 0
        %489 = vmatmul.mubr.bf16.gmra.mrb[0].mxu0 %v359
        %v490 = vpop.f32.mrb[0].mxu0
        %v491 = vadd.f32 %v232, %v490
        %v492 = vpop.f32.mrb[0].mxu0
        %v493 = vpop.f32.mrb[0].mxu0
        %v494 = vadd.f32 %v232, %v493
        %v495 = vpop.f32.mrb[0].mxu0
        %496 = vmatprep.mubr.bf16.mxu0 0
        %497 = vmatmul.mubr.bf16.gmra.mrb[0].mxu0 %v362
        %v498 = vpop.f32.mrb[0].mxu0
        %v499 = vadd.f32 %v232, %v498
        %v500 = vpop.f32.mrb[0].mxu0
        %v501 = vpop.f32.mrb[0].mxu0
        %v502 = vpop.f32.mrb[0].mxu0
        %503 = vdwg.mxu0
        %v504 = vmax.f32 %v403, 0.0
        %v505 = vmax.f32 %v406, 0.0
        %v506 = vmax.f32 %v411, 0.0
        %v507 = vmax.f32 %v414, 0.0
        %v508 = vmax.f32 %v419, 0.0
        %v509 = vmax.f32 %v422, 0.0
        %v510 = vmax.f32 %v427, 0.0
        %v511 = vmax.f32 %v430, 0.0
        %v512 = vmax.f32 %v435, 0.0
        %v513 = vmax.f32 %v438, 0.0
        %v514 = vmax.f32 %v443, 0.0
        %v515 = vmax.f32 %v446, 0.0
        %v516 = vmax.f32 %v451, 0.0
        %v517 = vmax.f32 %v454, 0.0
        %v518 = vmax.f32 %v459, 0.0
        %v519 = vmax.f32 %v462, 0.0
        %v520 = vmax.f32 %v467, 0.0
        %v521 = vmax.f32 %v470, 0.0
        %v522 = vmax.f32 %v475, 0.0
        %v523 = vmax.f32 %v478, 0.0
        %v524 = vmax.f32 %v483, 0.0
        %v525 = vmax.f32 %v486, 0.0
        %v526 = vmax.f32 %v491, 0.0
        %v527 = vmax.f32 %v494, 0.0
        %v528 = vmax.f32 %v499, 0.0
        %v529 = vpack.c.bf16 %v505, %v504
        %v530 = vpack.c.bf16 %v507, %v506
        %v531 = vpack.c.bf16 %v509, %v508
        %v532 = vpack.c.bf16 %v511, %v510
        %v533 = vpack.c.bf16 %v513, %v512
        %v534 = vpack.c.bf16 %v515, %v514
        %v535 = vpack.c.bf16 %v517, %v516
        %v536 = vpack.c.bf16 %v519, %v518
        %v537 = vpack.c.bf16 %v521, %v520
        %v538 = vpack.c.bf16 %v523, %v522
        %v539 = vpack.c.bf16 %v525, %v524
        %v540 = vpack.c.bf16 %v527, %v526
        %v541 = vpack.c.bf16 %v528, %v528
        %v555 = vunpack.c.l.b16 %v529
        %v556 = vunpack.c.h.b16 %v529
        %v557 = vunpack.c.l.b16 %v530
        %v558 = vunpack.c.h.b16 %v530
        %v559 = vunpack.c.l.b16 %v531
        %v560 = vunpack.c.h.b16 %v531
        %v561 = vunpack.c.l.b16 %v532
        %v562 = vunpack.c.h.b16 %v532
        %v563 = vunpack.c.l.b16 %v533
        %v564 = vunpack.c.h.b16 %v533
        %v565 = vunpack.c.l.b16 %v534
        %v566 = vunpack.c.h.b16 %v534
        %v567 = vunpack.c.l.b16 %v535
        %v568 = vunpack.c.h.b16 %v535
        %v569 = vunpack.c.l.b16 %v536
        %v570 = vunpack.c.h.b16 %v536
        %v571 = vunpack.c.l.b16 %v537
        %v572 = vunpack.c.h.b16 %v537
        %v573 = vunpack.c.l.b16 %v538
        %v574 = vunpack.c.h.b16 %v538
        %v575 = vunpack.c.l.b16 %v539
        %v576 = vunpack.c.h.b16 %v539
        %v577 = vunpack.c.l.b16 %v540
        %v578 = vunpack.c.h.b16 %v540
        %v579 = vunpack.c.l.b16 %v541
        %v580 = vpack.c.b16 %v555, %v555
        %v581 = vpack.c.b16 %v556, %v556
        %v582 = vpack.c.b16 %v557, %v557
        %v583 = vpack.c.b16 %v558, %v558
        %v584 = vpack.c.b16 %v559, %v559
        %v585 = vpack.c.b16 %v560, %v560
        %v586 = vpack.c.b16 %v561, %v561
        %v587 = vpack.c.b16 %v562, %v562
        %v588 = vpack.c.b16 %v563, %v563
        %v589 = vpack.c.b16 %v564, %v564
        %v590 = vpack.c.b16 %v565, %v565
        %v591 = vpack.c.b16 %v566, %v566
        %v592 = vpack.c.b16 %v567, %v567
        %v593 = vpack.c.b16 %v568, %v568
        %v594 = vpack.c.b16 %v569, %v569
        %v595 = vpack.c.b16 %v570, %v570
        %v596 = vpack.c.b16 %v571, %v571
        %v597 = vpack.c.b16 %v572, %v572
        %v598 = vpack.c.b16 %v573, %v573
        %v599 = vpack.c.b16 %v574, %v574
        %v600 = vpack.c.b16 %v575, %v575
        %v601 = vpack.c.b16 %v576, %v576
        %v602 = vpack.c.b16 %v577, %v577
        %v603 = vpack.c.b16 %v578, %v578
        %v604 = vpack.c.b16 %v579, %v579
        %630 = vst [vmem:[%s172] sm:$0xf] %v580
        %631 = vst [vmem:[%s172 + $0x4] sm:$0xf] %v581
        %632 = vst [vmem:[%s172 + $0x8] sm:$0xf] %v582
        %633 = vst [vmem:[%s172 + $0xc] sm:$0xf] %v583
        %634 = vst [vmem:[%s172 + $0x10] sm:$0xf] %v584
        %635 = vst [vmem:[%s172 + $0x14] sm:$0xf] %v585
        %636 = vst [vmem:[%s172 + $0x18] sm:$0xf] %v586
        %637 = vst [vmem:[%s172 + $0x1c] sm:$0xf] %v587
        %638 = vst [vmem:[%s172 + $0x20] sm:$0xf] %v588
        %639 = vst [vmem:[%s172 + $0x24] sm:$0xf] %v589
        %640 = vst [vmem:[%s172 + $0x28] sm:$0xf] %v590
        %641 = vst [vmem:[%s172 + $0x2c] sm:$0xf] %v591
        %642 = vst [vmem:[%s172 + $0x30] sm:$0xf] %v592
        %643 = vst [vmem:[%s172 + $0x34] sm:$0xf] %v593
        %644 = vst [vmem:[%s172 + $0x38] sm:$0xf] %v594
        %645 = vst [vmem:[%s172 + $0x3c] sm:$0xf] %v595
        %646 = vst [vmem:[%s172 + $0x40] sm:$0xf] %v596
        %647 = vst [vmem:[%s172 + $0x44] sm:$0xf] %v597
        %648 = vst [vmem:[%s172 + $0x48] sm:$0xf] %v598
        %649 = vst [vmem:[%s172 + $0x4c] sm:$0xf] %v599
        %650 = vst [vmem:[%s172 + $0x50] sm:$0xf] %v600
        %651 = vst [vmem:[%s172 + $0x54] sm:$0xf] %v601
        %652 = vst [vmem:[%s172 + $0x58] sm:$0xf] %v602
        %653 = vst [vmem:[%s172 + $0x5c] sm:$0xf] %v603
        %654 = vst [vmem:[%s172 + $0x60] sm:$0xf] %v604
        %s655 = sand.u32 %s90, 1
        %s656 = sand.u32 %s90, 1
        %s657 = smul.addr %s656, 100
        %s658 = scalar_lea.vmem [#allocation2], %s657
        // Predicated region
        $region33: #{_lambda_.5} parent=31 // pred_check
          %p659 = pneg %p100
        $region34: #{_lambda_.5} parent=31 // pred_check_branch
          %661 = sbr.rel (%p659) target = $region36
        $region35: #{_lambda_.5} parent=31 // pred_region
          %s662 = smul.u32 25, %s14
          %s663 = ssub.s32 49, %s662
          %p664 = scmp.lt.s32.totalorder %s663, 25
          %s665 = scalar_select %p664, %s663, 25
          %s666 = smul.u32 64, %s665
          %p667 = scmp.ne.s32.totalorder 0, %s666
          %s668 = smul.addr %s662, 4
          %s669 = scalar_lea.vmem %s3, %s668
          // Predicated region
          $region37: #{_lambda_.5} parent=35 // pred_check
            %p670 = pneg %p667
          $region38: #{_lambda_.5} parent=35 // pred_check_branch
            %672 = sbr.rel (%p670) target = $region40
          $region39: #{_lambda_.5} parent=35 // pred_region
            // Predicated region
            $region41: #{_lambda_.5} parent=39 // pred_check
              _
            $region42: #{_lambda_.5} parent=39 // pred_check_branch
              %674 = sbr.rel target = $region44
            $region43: #{_lambda_.5} parent=39 // pred_region
              // Predicated region
              $region63: #{_lambda_.5} parent=43 // pred_check
                _
              $region64: #{_lambda_.5} parent=43 // pred_check_branch
                %772 = sbr.rel (0) target = $region66
              $region65: #{_lambda_.5} parent=43 // pred_region
                %s774 = sdiv.u32.pop %s665, 25
                %s775 = srem.u32.pop %s665, 25
                // While loop
                $region67: #{_lambda_.5} parent=65 // loop_pre_header
                  _
                $region68: #{_lambda_.5} parent=65 // loop_header
                  %s777 = sphi 0, %s779
                  %p778 = scmp.ge.s32.totalorder %s777, %s774
                  %s782 = sphi 0, %s837
                  %s783 = sphi %s658, %s840
                  %s784 = sphi %s669, %s841
                $region69: #{_lambda_.5} parent=65 // loop_header_branch
                  %781 = sbr.rel (%p778) target = $region73
                $region70: #{_lambda_.5} parent=65 // loop_body
                  %v785 = vld [vmem:[%s783] sm:$0xf]
                  %786 = vst [vmem:[%s784] sm:$0xf] %v785
                  %v787 = vld [vmem:[%s783 + $0x4] sm:$0xf]
                  %788 = vst [vmem:[%s784 + $0x4] sm:$0xf] %v787
                  %v789 = vld [vmem:[%s783 + $0x8] sm:$0xf]
                  %790 = vst [vmem:[%s784 + $0x8] sm:$0xf] %v789
                  %v791 = vld [vmem:[%s783 + $0xc] sm:$0xf]
                  %792 = vst [vmem:[%s784 + $0xc] sm:$0xf] %v791
                  %v793 = vld [vmem:[%s783 + $0x10] sm:$0xf]
                  %794 = vst [vmem:[%s784 + $0x10] sm:$0xf] %v793
                  %v795 = vld [vmem:[%s783 + $0x14] sm:$0xf]
                  %796 = vst [vmem:[%s784 + $0x14] sm:$0xf] %v795
                  %v797 = vld [vmem:[%s783 + $0x18] sm:$0xf]
                  %798 = vst [vmem:[%s784 + $0x18] sm:$0xf] %v797
                  %v799 = vld [vmem:[%s783 + $0x1c] sm:$0xf]
                  %800 = vst [vmem:[%s784 + $0x1c] sm:$0xf] %v799
                  %v801 = vld [vmem:[%s783 + $0x20] sm:$0xf]
                  %802 = vst [vmem:[%s784 + $0x20] sm:$0xf] %v801
                  %v803 = vld [vmem:[%s783 + $0x24] sm:$0xf]
                  %804 = vst [vmem:[%s784 + $0x24] sm:$0xf] %v803
                  %v805 = vld [vmem:[%s783 + $0x28] sm:$0xf]
                  %806 = vst [vmem:[%s784 + $0x28] sm:$0xf] %v805
                  %v807 = vld [vmem:[%s783 + $0x2c] sm:$0xf]
                  %808 = vst [vmem:[%s784 + $0x2c] sm:$0xf] %v807
                  %v809 = vld [vmem:[%s783 + $0x30] sm:$0xf]
                  %810 = vst [vmem:[%s784 + $0x30] sm:$0xf] %v809
                  %v811 = vld [vmem:[%s783 + $0x34] sm:$0xf]
                  %812 = vst [vmem:[%s784 + $0x34] sm:$0xf] %v811
                  %v813 = vld [vmem:[%s783 + $0x38] sm:$0xf]
                  %814 = vst [vmem:[%s784 + $0x38] sm:$0xf] %v813
                  %v815 = vld [vmem:[%s783 + $0x3c] sm:$0xf]
                  %816 = vst [vmem:[%s784 + $0x3c] sm:$0xf] %v815
                  %v817 = vld [vmem:[%s783 + $0x40] sm:$0xf]
                  %818 = vst [vmem:[%s784 + $0x40] sm:$0xf] %v817
                  %v819 = vld [vmem:[%s783 + $0x44] sm:$0xf]
                  %820 = vst [vmem:[%s784 + $0x44] sm:$0xf] %v819
                  %v821 = vld [vmem:[%s783 + $0x48] sm:$0xf]
                  %822 = vst [vmem:[%s784 + $0x48] sm:$0xf] %v821
                  %v823 = vld [vmem:[%s783 + $0x4c] sm:$0xf]
                  %824 = vst [vmem:[%s784 + $0x4c] sm:$0xf] %v823
                  %v825 = vld [vmem:[%s783 + $0x50] sm:$0xf]
                  %826 = vst [vmem:[%s784 + $0x50] sm:$0xf] %v825
                  %v827 = vld [vmem:[%s783 + $0x54] sm:$0xf]
                  %828 = vst [vmem:[%s784 + $0x54] sm:$0xf] %v827
                  %v829 = vld [vmem:[%s783 + $0x58] sm:$0xf]
                  %830 = vst [vmem:[%s784 + $0x58] sm:$0xf] %v829
                  %v831 = vld [vmem:[%s783 + $0x5c] sm:$0xf]
                  %832 = vst [vmem:[%s784 + $0x5c] sm:$0xf] %v831
                  %v833 = vld [vmem:[%s783 + $0x60] sm:$0xf]
                  %834 = vst [vmem:[%s784 + $0x60] sm:$0xf] %v833
                  %s835 = sadd.s32 1, %s782
                  %p836 = scmp.ge.s32.totalorder %s835, %s774
                  %s837 = scalar_select %p836, 0, %s835
                  %s838 = smul.u32 %s837, 100
                  %s839 = smul.u32 %s837, 100
                  %s840 = scalar_lea.vmem %s658, %s838 [#allocation2]
                  %s841 = scalar_lea.vmem %s669, %s839
                $region71: #{_lambda_.5} parent=65 // loop_footer
                  %s779 = sadd.s32 %s777, 1
                $region72: #{_lambda_.5} parent=65 // loop_footer_branch
                  %776 = sbr.rel target = $region68
                $region73: #{_lambda_.5} parent=65 // loop_exit
                  _
                %s842 = sdiv.u32.pop %s665, 25
                %s843 = srem.u32.pop %s665, 25
                %s844 = smul.u32 %s842, 25
                %s845 = smul.u32 4, %s844
                %s846 = scalar_lea.vmem %s658, %s845 [#allocation2]
                %s847 = smul.u32 4, %s844
                %s848 = scalar_lea.vmem %s669, %s847
                // While loop
                $region74: #{_lambda_.5} parent=65 // loop_pre_header
                  _
                $region75: #{_lambda_.5} parent=65 // loop_header
                  %s850 = sphi 0, %s852
                  %p851 = scmp.ge.s32.totalorder %s850, %s843
                  %s855 = sphi 0, %s862
                  %s856 = sphi %s846, %s865
                  %s857 = sphi %s848, %s866
                $region76: #{_lambda_.5} parent=65 // loop_header_branch
                  %854 = sbr.rel (%p851) target = $region80
                $region77: #{_lambda_.5} parent=65 // loop_body
                  %v858 = vld [vmem:[%s856] sm:$0xf]
                  %859 = vst [vmem:[%s857] sm:$0xf] %v858
                  %s860 = sadd.s32 1, %s855
                  %p861 = scmp.ge.s32.totalorder %s860, %s843
                  %s862 = scalar_select %p861, 0, %s860
                  %s863 = smul.u32 %s862, 4
                  %s864 = smul.u32 %s862, 4
                  %s865 = scalar_lea.vmem %s846, %s863 [#allocation2]
                  %s866 = scalar_lea.vmem %s848, %s864
                $region78: #{_lambda_.5} parent=65 // loop_footer
                  %s852 = sadd.s32 %s850, 1
                $region79: #{_lambda_.5} parent=65 // loop_footer_branch
                  %849 = sbr.rel target = $region75
                $region80: #{_lambda_.5} parent=65 // loop_exit
                  _
              $region66: #{_lambda_.5} parent=43 // pred_fallthru
                _
            $region44: #{_lambda_.5} parent=39 // pred_fallthru
              _
            // Predicated region
            $region45: #{_lambda_.5} parent=39 // pred_check
              _
            $region46: #{_lambda_.5} parent=39 // pred_check_branch
              %676 = sbr.rel (0) target = $region48
            $region47: #{_lambda_.5} parent=39 // pred_region
              %s678 = sdiv.u32.pop %s665, 25
              %s679 = srem.u32.pop %s665, 25
              // While loop
              $region49: #{_lambda_.5} parent=47 // loop_pre_header
                _
              $region50: #{_lambda_.5} parent=47 // loop_header
                %s681 = sphi 0, %s683
                %p682 = scmp.ge.s32.totalorder %s681, %s678
                %s686 = sphi 0, %s741
                %s687 = sphi %s658, %s744
                %s688 = sphi %s669, %s745
              $region51: #{_lambda_.5} parent=47 // loop_header_branch
                %685 = sbr.rel (%p682) target = $region55
              $region52: #{_lambda_.5} parent=47 // loop_body
                %v689 = vld [vmem:[%s687] sm:$0xf]
                %690 = vst [vmem:[%s688] sm:$0xf] %v689
                %v691 = vld [vmem:[%s687 + $0x4] sm:$0xf]
                %692 = vst [vmem:[%s688 + $0x4] sm:$0xf] %v691
                %v693 = vld [vmem:[%s687 + $0x8] sm:$0xf]
                %694 = vst [vmem:[%s688 + $0x8] sm:$0xf] %v693
                %v695 = vld [vmem:[%s687 + $0xc] sm:$0xf]
                %696 = vst [vmem:[%s688 + $0xc] sm:$0xf] %v695
                %v697 = vld [vmem:[%s687 + $0x10] sm:$0xf]
                %698 = vst [vmem:[%s688 + $0x10] sm:$0xf] %v697
                %v699 = vld [vmem:[%s687 + $0x14] sm:$0xf]
                %700 = vst [vmem:[%s688 + $0x14] sm:$0xf] %v699
                %v701 = vld [vmem:[%s687 + $0x18] sm:$0xf]
                %702 = vst [vmem:[%s688 + $0x18] sm:$0xf] %v701
                %v703 = vld [vmem:[%s687 + $0x1c] sm:$0xf]
                %704 = vst [vmem:[%s688 + $0x1c] sm:$0xf] %v703
                %v705 = vld [vmem:[%s687 + $0x20] sm:$0xf]
                %706 = vst [vmem:[%s688 + $0x20] sm:$0xf] %v705
                %v707 = vld [vmem:[%s687 + $0x24] sm:$0xf]
                %708 = vst [vmem:[%s688 + $0x24] sm:$0xf] %v707
                %v709 = vld [vmem:[%s687 + $0x28] sm:$0xf]
                %710 = vst [vmem:[%s688 + $0x28] sm:$0xf] %v709
                %v711 = vld [vmem:[%s687 + $0x2c] sm:$0xf]
                %712 = vst [vmem:[%s688 + $0x2c] sm:$0xf] %v711
                %v713 = vld [vmem:[%s687 + $0x30] sm:$0xf]
                %714 = vst [vmem:[%s688 + $0x30] sm:$0xf] %v713
                %v715 = vld [vmem:[%s687 + $0x34] sm:$0xf]
                %716 = vst [vmem:[%s688 + $0x34] sm:$0xf] %v715
                %v717 = vld [vmem:[%s687 + $0x38] sm:$0xf]
                %718 = vst [vmem:[%s688 + $0x38] sm:$0xf] %v717
                %v719 = vld [vmem:[%s687 + $0x3c] sm:$0xf]
                %720 = vst [vmem:[%s688 + $0x3c] sm:$0xf] %v719
                %v721 = vld [vmem:[%s687 + $0x40] sm:$0xf]
                %722 = vst [vmem:[%s688 + $0x40] sm:$0xf] %v721
                %v723 = vld [vmem:[%s687 + $0x44] sm:$0xf]
                %724 = vst [vmem:[%s688 + $0x44] sm:$0xf] %v723
                %v725 = vld [vmem:[%s687 + $0x48] sm:$0xf]
                %726 = vst [vmem:[%s688 + $0x48] sm:$0xf] %v725
                %v727 = vld [vmem:[%s687 + $0x4c] sm:$0xf]
                %728 = vst [vmem:[%s688 + $0x4c] sm:$0xf] %v727
                %v729 = vld [vmem:[%s687 + $0x50] sm:$0xf]
                %730 = vst [vmem:[%s688 + $0x50] sm:$0xf] %v729
                %v731 = vld [vmem:[%s687 + $0x54] sm:$0xf]
                %732 = vst [vmem:[%s688 + $0x54] sm:$0xf] %v731
                %v733 = vld [vmem:[%s687 + $0x58] sm:$0xf]
                %734 = vst [vmem:[%s688 + $0x58] sm:$0xf] %v733
                %v735 = vld [vmem:[%s687 + $0x5c] sm:$0xf]
                %736 = vst [vmem:[%s688 + $0x5c] sm:$0xf] %v735
                %v737 = vld [vmem:[%s687 + $0x60] sm:$0xf]
                %738 = vst [vmem:[%s688 + $0x60] sm:$0xf] %v737
                %s739 = sadd.s32 1, %s686
                %p740 = scmp.ge.s32.totalorder %s739, %s678
                %s741 = scalar_select %p740, 0, %s739
                %s742 = smul.u32 %s741, 100
                %s743 = smul.u32 %s741, 100
                %s744 = scalar_lea.vmem %s658, %s742 [#allocation2]
                %s745 = scalar_lea.vmem %s669, %s743
              $region53: #{_lambda_.5} parent=47 // loop_footer
                %s683 = sadd.s32 %s681, 1
              $region54: #{_lambda_.5} parent=47 // loop_footer_branch
                %680 = sbr.rel target = $region50
              $region55: #{_lambda_.5} parent=47 // loop_exit
                _
              %s746 = sdiv.u32.pop %s665, 25
              %s747 = srem.u32.pop %s665, 25
              %s748 = smul.u32 %s746, 25
              %s749 = smul.u32 4, %s748
              %s750 = scalar_lea.vmem %s658, %s749 [#allocation2]
              %s751 = smul.u32 4, %s748
              %s752 = scalar_lea.vmem %s669, %s751
              // While loop
              $region56: #{_lambda_.5} parent=47 // loop_pre_header
                _
              $region57: #{_lambda_.5} parent=47 // loop_header
                %s754 = sphi 0, %s756
                %p755 = scmp.ge.s32.totalorder %s754, %s747
                %s759 = sphi 0, %s766
                %s760 = sphi %s750, %s769
                %s761 = sphi %s752, %s770
              $region58: #{_lambda_.5} parent=47 // loop_header_branch
                %758 = sbr.rel (%p755) target = $region62
              $region59: #{_lambda_.5} parent=47 // loop_body
                %v762 = vld [vmem:[%s760] sm:$0xf]
                %763 = vst [vmem:[%s761] sm:$0xf] %v762
                %s764 = sadd.s32 1, %s759
                %p765 = scmp.ge.s32.totalorder %s764, %s747
                %s766 = scalar_select %p765, 0, %s764
                %s767 = smul.u32 %s766, 4
                %s768 = smul.u32 %s766, 4
                %s769 = scalar_lea.vmem %s750, %s767 [#allocation2]
                %s770 = scalar_lea.vmem %s752, %s768
              $region60: #{_lambda_.5} parent=47 // loop_footer
                %s756 = sadd.s32 %s754, 1
              $region61: #{_lambda_.5} parent=47 // loop_footer_branch
                %753 = sbr.rel target = $region57
              $region62: #{_lambda_.5} parent=47 // loop_exit
                _
            $region48: #{_lambda_.5} parent=39 // pred_fallthru
              _
          $region40: #{_lambda_.5} parent=35 // pred_fallthru
            _
          %867 = vnop
        $region36: #{_lambda_.5} parent=31 // pred_fallthru
          _
      $region32: #{_lambda_.5} parent=5 // pred_fallthru
        _
      %p868 = scmp.le.s32.totalorder 2, %s9
      // Predicated region
      $region81: #{_lambda_.5} parent=5 // pred_check
        %p869 = pneg %p868
      $region82: #{_lambda_.5} parent=5 // pred_check_branch
        %871 = sbr.rel (%p869) target = $region84
      $region83: #{_lambda_.5} parent=5 // pred_region
        %s872 = ssub.s32 %s9, 2
        // Predicated region
        $region85: #{_lambda_.5} parent=83 // pred_check
          %p873 = pneg %p106
        $region86: #{_lambda_.5} parent=83 // pred_check_branch
          %875 = sbr.rel (%p873) target = $region88
        $region87: #{_lambda_.5} parent=83 // pred_region
          %s876 = sand.u32 %s91, 1
          %s877 = sand.u32 %s91, 1
          %s878 = smul.addr %s877, 100
          %s879 = scalar_lea.vmem [#allocation2], %s878
        $region88: #{_lambda_.5} parent=83 // pred_fallthru
          _
      $region84: #{_lambda_.5} parent=5 // pred_fallthru
        _
    $region6: #{_lambda_.5} parent=1 // loop_footer
      %s13 = sadd.s32 1, %s9
    $region7: #{_lambda_.5} parent=1 // loop_footer_branch
      %8 = sbr.rel target = $region3
    $region8: #{_lambda_.5} parent=1 // loop_exit
      _

// kernel: _lambda_.6
$region0: #{_lambda_.6}
  #allocation0 [shape = 'u32[]', space=smem, size = 0x4, offset = 0x4, fixed_abs, tag = 'smem constant byte address 0x4 - core index']
  #allocation1 [shape = 'u32[144,128]{1,0:T(1,128)}', space=vmem, size = 0x12000, scoped, tag = 'internal scratch']
  %s0 = inlined_call_operand.vmem [shape: bf16[98,144], index: 0, kind: input, shape index: {}]
  %s1 = inlined_call_operand.vmem [shape: bf16[144,128], index: 1, kind: input, shape index: {}]
  %s2 = inlined_call_operand.vmem [shape: f32[1,128], index: 2, kind: input, shape index: {}]
  %s3 = inlined_call_operand.vmem [shape: bf16[98,128], index: 3, kind: output, shape index: {}]
  %s4 = sld [smem:[#allocation0]]
  $region22: #{_lambda_.6} parent=0
    _
  %s6 = ssub.s32 1, %s4
  %s7 = scalar_select 0, %s6, %s4
  // Predicated region
  $region2: #{_lambda_.6} parent=0 // pred_check
    _
  $region3: #{_lambda_.6} parent=0 // pred_check_branch
    %9 = sbr.rel (0) target = $region5
  $region4: #{_lambda_.6} parent=0 // pred_region
    _
  $region5: #{_lambda_.6} parent=0 // pred_fallthru
    _
  // Predicated region
  $region6: #{_lambda_.6} parent=0 // pred_check
    _
  $region7: #{_lambda_.6} parent=0 // pred_check_branch
    %11 = sbr.rel (0) target = $region9
  $region8: #{_lambda_.6} parent=0 // pred_region
    _
  $region9: #{_lambda_.6} parent=0 // pred_fallthru
    _
  // Predicated region
  $region10: #{_lambda_.6} parent=0 // pred_check
    _
  $region11: #{_lambda_.6} parent=0 // pred_check_branch
    %13 = sbr.rel (0) target = $region13
  $region12: #{_lambda_.6} parent=0 // pred_region
    _
  $region13: #{_lambda_.6} parent=0 // pred_fallthru
    _
  %v15 = vld [vmem:[%s0] sm:$0xff]
  %v16 = vld [vmem:[%s0 + $0x8] sm:$0xff]
  %v17 = vld [vmem:[%s0 + $0x10] sm:$0xff]
  %v18 = vld [vmem:[%s0 + $0x18] sm:$0xff]
  %v19 = vld [vmem:[%s0 + $0x20] sm:$0xff]
  %v20 = vld [vmem:[%s0 + $0x28] sm:$0xff]
  %v21 = vld [vmem:[%s0 + $0x30] sm:$0xff]
  %v22 = vld [vmem:[%s0 + $0x38] sm:$0xff]
  %v23 = vld [vmem:[%s0 + $0x40] sm:$0xff]
  %v24 = vld [vmem:[%s0 + $0x48] sm:$0xff]
  %v25 = vld [vmem:[%s0 + $0x50] sm:$0xff]
  %v26 = vld [vmem:[%s0 + $0x58] sm:$0xff]
  %v27 = vld [vmem:[%s0 + $0x60] sm:$0x11]
  %v28 = vld [vmem:[%s1] sm:$0xf]
  %v29 = vld [vmem:[%s1 + $0x4] sm:$0xf]
  %v30 = vld [vmem:[%s1 + $0x8] sm:$0xf]
  %v31 = vld [vmem:[%s1 + $0xc] sm:$0xf]
  %v32 = vld [vmem:[%s1 + $0x10] sm:$0xf]
  %v33 = vld [vmem:[%s1 + $0x14] sm:$0xf]
  %v34 = vld [vmem:[%s1 + $0x18] sm:$0xf]
  %v35 = vld [vmem:[%s1 + $0x1c] sm:$0xf]
  %v36 = vld [vmem:[%s1 + $0x20] sm:$0xf]
  %v37 = vld [vmem:[%s1 + $0x24] sm:$0xf]
  %v38 = vld [vmem:[%s1 + $0x28] sm:$0xf]
  %v39 = vld [vmem:[%s1 + $0x2c] sm:$0xf]
  %v40 = vld [vmem:[%s1 + $0x30] sm:$0xf]
  %v41 = vld [vmem:[%s1 + $0x34] sm:$0xf]
  %v42 = vld [vmem:[%s1 + $0x38] sm:$0xf]
  %v43 = vld [vmem:[%s1 + $0x3c] sm:$0xf]
  %v44 = vld [vmem:[%s1 + $0x40] sm:$0xf]
  %v45 = vld [vmem:[%s1 + $0x44] sm:$0xf]
  %v46 = vld [vmem:[%s2] sm:$0x1]
  %v48 = vlaneseq
  %v49 = vshrl.u32 %v48, 7
  %v50 = vsub.s32 0, %v49
  %v51 = vrot.slane %v46, %v50
  %v66 = vunpack.c.l.b16 %v15
  %v67 = vunpack.c.h.b16 %v15
  %v68 = vunpack.c.l.b16 %v16
  %v69 = vunpack.c.h.b16 %v16
  %v70 = vunpack.c.l.b16 %v17
  %v71 = vunpack.c.h.b16 %v17
  %v72 = vunpack.c.l.b16 %v18
  %v73 = vunpack.c.h.b16 %v18
  %v74 = vunpack.c.l.b16 %v19
  %v75 = vunpack.c.h.b16 %v19
  %v76 = vunpack.c.l.b16 %v20
  %v77 = vunpack.c.h.b16 %v20
  %v78 = vunpack.c.l.b16 %v21
  %v79 = vunpack.c.h.b16 %v21
  %v80 = vunpack.c.l.b16 %v22
  %v81 = vunpack.c.h.b16 %v22
  %v82 = vunpack.c.l.b16 %v23
  %v83 = vunpack.c.h.b16 %v23
  %v84 = vunpack.c.l.b16 %v24
  %v85 = vunpack.c.h.b16 %v24
  %v86 = vunpack.c.l.b16 %v25
  %v87 = vunpack.c.h.b16 %v25
  %v88 = vunpack.c.l.b16 %v26
  %v89 = vunpack.c.h.b16 %v26
  %v90 = vunpack.c.l.b16 %v27
  %v91 = vunpack.c.h.b16 %v27
  %v92 = vpack.c.b16 %v68, %v66
  %v93 = vpack.c.b16 %v69, %v67
  %v94 = vpack.c.b16 %v72, %v70
  %v95 = vpack.c.b16 %v73, %v71
  %v96 = vpack.c.b16 %v76, %v74
  %v97 = vpack.c.b16 %v77, %v75
  %v98 = vpack.c.b16 %v80, %v78
  %v99 = vpack.c.b16 %v81, %v79
  %v100 = vpack.c.b16 %v84, %v82
  %v101 = vpack.c.b16 %v85, %v83
  %v102 = vpack.c.b16 %v88, %v86
  %v103 = vpack.c.b16 %v89, %v87
  %v104 = vpack.c.b16 %v90, %v90
  %v105 = vpack.c.b16 %v91, %v91
  %v131 = vunpack.c.l.b16 %v28
  %v132 = vunpack.c.l.b16 %v29
  %v133 = vunpack.c.l.b16 %v30
  %v134 = vunpack.c.l.b16 %v31
  %v135 = vunpack.c.l.b16 %v32
  %v136 = vunpack.c.l.b16 %v33
  %v137 = vunpack.c.l.b16 %v34
  %v138 = vunpack.c.l.b16 %v35
  %v139 = vunpack.c.l.b16 %v36
  %v140 = vunpack.c.l.b16 %v37
  %v141 = vunpack.c.l.b16 %v38
  %v142 = vunpack.c.l.b16 %v39
  %v143 = vunpack.c.l.b16 %v40
  %v144 = vunpack.c.l.b16 %v41
  %v145 = vunpack.c.l.b16 %v42
  %v146 = vunpack.c.l.b16 %v43
  %v147 = vunpack.c.l.b16 %v44
  %v148 = vunpack.c.l.b16 %v45
  %v149 = vpack.c.b16 %v132, %v131
  %v150 = vpack.c.b16 %v134, %v133
  %v151 = vpack.c.b16 %v136, %v135
  %v152 = vpack.c.b16 %v138, %v137
  %v153 = vpack.c.b16 %v140, %v139
  %v154 = vpack.c.b16 %v142, %v141
  %v155 = vpack.c.b16 %v144, %v143
  %v156 = vpack.c.b16 %v146, %v145
  %v157 = vpack.c.b16 %v148, %v147
  %vm167 = vcmask 130048
  %v169 = vsel %vm167, %v93, 0
  %v172 = vsel %vm167, %v95, 0
  %v175 = vsel %vm167, %v97, 0
  %v178 = vsel %vm167, %v99, 0
  %v181 = vsel %vm167, %v101, 0
  %v184 = vsel %vm167, %v103, 0
  %v187 = vsel %vm167, %v105, 0
  %189 = vmatprep.subr.bf16.mxu0 0
  %190 = vmatpush1.bf16.msra.mxu0 %v149
  %191 = vmatprep.subr.bf16.mxu0 0
  %192 = vmatpush1.bf16.msra.mxu0 %v150
  %193 = vmatprep.subr.bf16.mxu0 0
  %194 = vmatpush1.bf16.msra.mxu0 %v151
  %195 = vmatprep.subr.bf16.mxu0 0
  %196 = vmatpush1.bf16.msra.mxu0 %v152
  %197 = vmatprep.subr.bf16.mxu0 0
  %198 = vmatpush1.bf16.msra.mxu0 %v153
  %199 = vmatprep.subr.bf16.mxu0 0
  %200 = vmatpush1.bf16.msra.mxu0 %v154
  %201 = vmatprep.subr.bf16.mxu0 0
  %202 = vmatpush1.bf16.msra.mxu0 %v155
  %203 = vmatprep.subr.bf16.mxu0 0
  %204 = vmatpush1.bf16.msra.mxu0 %v156
  %205 = vmatprep.subr.bf16.mxu0 0
  %206 = vmatpush1.bf16.msra.mxu0 %v157
  %207 = vmatprep.subr.bf16.mxu0 0
  %208 = vmatpush1.bf16.msra.mxu0 0
  %209 = vmatprep.subr.bf16.mxu0 0
  %210 = vmatpush1.bf16.msra.mxu0 0
  %211 = vmatprep.subr.bf16.mxu0 0
  %212 = vmatpush1.bf16.msra.mxu0 0
  %213 = vmatprep.subr.bf16.mxu0 0
  %214 = vmatpush1.bf16.msra.mxu0 0
  %215 = vmatprep.subr.bf16.mxu0 0
  %216 = vmatpush1.bf16.msra.mxu0 0
  %217 = vmatprep.subr.bf16.mxu0 0
  %218 = vmatpush1.bf16.msra.mxu0 0
  %219 = vmatprep.subr.bf16.mxu0 0
  %220 = vmatpush1.bf16.msra.mxu0 0
  %221 = vmatprep.mubr.bf16.mxu0 %v169
  %222 = vmatmul.mubr.bf16.gmra.mrb[0].mxu0 %v92
  %v223 = vpop.f32.mrb[0].mxu0
  %v224 = vadd.f32 %v51, %v223
  %v225 = vpop.f32.mrb[0].mxu0
  %v226 = vpop.f32.mrb[0].mxu0
  %v227 = vadd.f32 %v51, %v226
  %v228 = vpop.f32.mrb[0].mxu0
  %229 = vmatprep.mubr.bf16.mxu0 %v172
  %230 = vmatmul.mubr.bf16.gmra.mrb[0].mxu0 %v94
  %v231 = vpop.f32.mrb[0].mxu0
  %v232 = vadd.f32 %v51, %v231
  %v233 = vpop.f32.mrb[0].mxu0
  %v234 = vpop.f32.mrb[0].mxu0
  %v235 = vadd.f32 %v51, %v234
  %v236 = vpop.f32.mrb[0].mxu0
  %237 = vmatprep.mubr.bf16.mxu0 %v175
  %238 = vmatmul.mubr.bf16.gmra.mrb[0].mxu0 %v96
  %v239 = vpop.f32.mrb[0].mxu0
  %v240 = vadd.f32 %v51, %v239
  %v241 = vpop.f32.mrb[0].mxu0
  %v242 = vpop.f32.mrb[0].mxu0
  %v243 = vadd.f32 %v51, %v242
  %v244 = vpop.f32.mrb[0].mxu0
  %245 = vmatprep.mubr.bf16.mxu0 %v178
  %246 = vmatmul.mubr.bf16.gmra.mrb[0].mxu0 %v98
  %v247 = vpop.f32.mrb[0].mxu0
  %v248 = vadd.f32 %v51, %v247
  %v249 = vpop.f32.mrb[0].mxu0
  %v250 = vpop.f32.mrb[0].mxu0
  %v251 = vadd.f32 %v51, %v250
  %v252 = vpop.f32.mrb[0].mxu0
  %253 = vmatprep.mubr.bf16.mxu0 %v181
  %254 = vmatmul.mubr.bf16.gmra.mrb[0].mxu0 %v100
  %v255 = vpop.f32.mrb[0].mxu0
  %v256 = vadd.f32 %v51, %v255
  %v257 = vpop.f32.mrb[0].mxu0
  %v258 = vpop.f32.mrb[0].mxu0
  %v259 = vadd.f32 %v51, %v258
  %v260 = vpop.f32.mrb[0].mxu0
  %261 = vmatprep.mubr.bf16.mxu0 %v184
  %262 = vmatmul.mubr.bf16.gmra.mrb[0].mxu0 %v102
  %v263 = vpop.f32.mrb[0].mxu0
  %v264 = vadd.f32 %v51, %v263
  %v265 = vpop.f32.mrb[0].mxu0
  %v266 = vpop.f32.mrb[0].mxu0
  %v267 = vadd.f32 %v51, %v266
  %v268 = vpop.f32.mrb[0].mxu0
  %269 = vmatprep.mubr.bf16.mxu0 %v187
  %270 = vmatmul.mubr.bf16.gmra.mrb[0].mxu0 %v104
  %v271 = vpop.f32.mrb[0].mxu0
  %v272 = vadd.f32 %v51, %v271
  %v273 = vpop.f32.mrb[0].mxu0
  %v274 = vpop.f32.mrb[0].mxu0
  %v275 = vpop.f32.mrb[0].mxu0
  %276 = vdwg.mxu0
  %v277 = vmax.f32 %v224, 0.0
  %v278 = vmax.f32 %v227, 0.0
  %v279 = vmax.f32 %v232, 0.0
  %v280 = vmax.f32 %v235, 0.0
  %v281 = vmax.f32 %v240, 0.0
  %v282 = vmax.f32 %v243, 0.0
  %v283 = vmax.f32 %v248, 0.0
  %v284 = vmax.f32 %v251, 0.0
  %v285 = vmax.f32 %v256, 0.0
  %v286 = vmax.f32 %v259, 0.0
  %v287 = vmax.f32 %v264, 0.0
  %v288 = vmax.f32 %v267, 0.0
  %v289 = vmax.f32 %v272, 0.0
  %v290 = vpack.c.bf16 %v278, %v277
  %v291 = vpack.c.bf16 %v280, %v279
  %v292 = vpack.c.bf16 %v282, %v281
  %v293 = vpack.c.bf16 %v284, %v283
  %v294 = vpack.c.bf16 %v286, %v285
  %v295 = vpack.c.bf16 %v288, %v287
  %v296 = vpack.c.bf16 %v289, %v289
  %v304 = vunpack.c.l.b16 %v290
  %v305 = vunpack.c.h.b16 %v290
  %v306 = vunpack.c.l.b16 %v291
  %v307 = vunpack.c.h.b16 %v291
  %v308 = vunpack.c.l.b16 %v292
  %v309 = vunpack.c.h.b16 %v292
  %v310 = vunpack.c.l.b16 %v293
  %v311 = vunpack.c.h.b16 %v293
  %v312 = vunpack.c.l.b16 %v294
  %v313 = vunpack.c.h.b16 %v294
  %v314 = vunpack.c.l.b16 %v295
  %v315 = vunpack.c.h.b16 %v295
  %v316 = vunpack.c.l.b16 %v296
  %v317 = vpack.c.b16 %v304, %v304
  %v318 = vpack.c.b16 %v305, %v305
  %v319 = vpack.c.b16 %v306, %v306
  %v320 = vpack.c.b16 %v307, %v307
  %v321 = vpack.c.b16 %v308, %v308
  %v322 = vpack.c.b16 %v309, %v309
  %v323 = vpack.c.b16 %v310, %v310
  %v324 = vpack.c.b16 %v311, %v311
  %v325 = vpack.c.b16 %v312, %v312
  %v326 = vpack.c.b16 %v313, %v313
  %v327 = vpack.c.b16 %v314, %v314
  %v328 = vpack.c.b16 %v315, %v315
  %v329 = vpack.c.b16 %v316, %v316
  %343 = vst [vmem:[%s3] sm:$0xf] %v317
  %344 = vst [vmem:[%s3 + $0x4] sm:$0xf] %v318
  %345 = vst [vmem:[%s3 + $0x8] sm:$0xf] %v319
  %346 = vst [vmem:[%s3 + $0xc] sm:$0xf] %v320
  %347 = vst [vmem:[%s3 + $0x10] sm:$0xf] %v321
  %348 = vst [vmem:[%s3 + $0x14] sm:$0xf] %v322
  %349 = vst [vmem:[%s3 + $0x18] sm:$0xf] %v323
  %350 = vst [vmem:[%s3 + $0x1c] sm:$0xf] %v324
  %351 = vst [vmem:[%s3 + $0x20] sm:$0xf] %v325
  %352 = vst [vmem:[%s3 + $0x24] sm:$0xf] %v326
  %353 = vst [vmem:[%s3 + $0x28] sm:$0xf] %v327
  %354 = vst [vmem:[%s3 + $0x2c] sm:$0xf] %v328
  %355 = vst [vmem:[%s3 + $0x30] sm:$0x1] %v329
  // Predicated region
  $region14: #{_lambda_.6} parent=0 // pred_check
    _
  $region15: #{_lambda_.6} parent=0 // pred_check_branch
    %357 = sbr.rel (0) target = $region17
  $region16: #{_lambda_.6} parent=0 // pred_region
    _
  $region17: #{_lambda_.6} parent=0 // pred_fallthru
    _
  // Predicated region
  $region18: #{_lambda_.6} parent=0 // pred_check
    _
  $region19: #{_lambda_.6} parent=0 // pred_check_branch
    %359 = sbr.rel (0) target = $region21
  $region20: #{_lambda_.6} parent=0 // pred_region
    _
  $region21: #{_lambda_.6} parent=0 // pred_fallthru
    _

// kernel: _lambda_.8
$region0: #{_lambda_.8}
  #allocation0 [shape = 'u32[]', space=smem, size = 0x4, offset = 0x4, fixed_abs, tag = 'smem constant byte address 0x4 - core index']
  #allocation1 [shape = 'u32[144,128]{1,0:T(1,128)}', space=vmem, size = 0x12000, scoped, tag = 'internal scratch']
  %s0 = inlined_call_operand.vmem [shape: bf16[98,128], index: 0, kind: input, shape index: {}]
  %s1 = inlined_call_operand.vmem [shape: bf16[128,128], index: 1, kind: input, shape index: {}]
  %s2 = inlined_call_operand.vmem [shape: f32[1,128], index: 2, kind: input, shape index: {}]
  %s3 = inlined_call_operand.vmem [shape: bf16[98,128], index: 3, kind: output, shape index: {}]
  %s4 = sld [smem:[#allocation0]]
  $region22: #{_lambda_.8} parent=0
    _
  %s6 = ssub.s32 1, %s4
  %s7 = scalar_select 0, %s6, %s4
  // Predicated region
  $region2: #{_lambda_.8} parent=0 // pred_check
    _
  $region3: #{_lambda_.8} parent=0 // pred_check_branch
    %9 = sbr.rel (0) target = $region5
  $region4: #{_lambda_.8} parent=0 // pred_region
    _
  $region5: #{_lambda_.8} parent=0 // pred_fallthru
    _
  // Predicated region
  $region6: #{_lambda_.8} parent=0 // pred_check
    _
  $region7: #{_lambda_.8} parent=0 // pred_check_branch
    %11 = sbr.rel (0) target = $region9
  $region8: #{_lambda_.8} parent=0 // pred_region
    _
  $region9: #{_lambda_.8} parent=0 // pred_fallthru
    _
  // Predicated region
  $region10: #{_lambda_.8} parent=0 // pred_check
    _
  $region11: #{_lambda_.8} parent=0 // pred_check_branch
    %13 = sbr.rel (0) target = $region13
  $region12: #{_lambda_.8} parent=0 // pred_region
    _
  $region13: #{_lambda_.8} parent=0 // pred_fallthru
    _
  %v15 = vld [vmem:[%s0] sm:$0xf]
  %v16 = vld [vmem:[%s0 + $0x4] sm:$0xf]
  %v17 = vld [vmem:[%s0 + $0x8] sm:$0xf]
  %v18 = vld [vmem:[%s0 + $0xc] sm:$0xf]
  %v19 = vld [vmem:[%s0 + $0x10] sm:$0xf]
  %v20 = vld [vmem:[%s0 + $0x14] sm:$0xf]
  %v21 = vld [vmem:[%s0 + $0x18] sm:$0xf]
  %v22 = vld [vmem:[%s0 + $0x1c] sm:$0xf]
  %v23 = vld [vmem:[%s0 + $0x20] sm:$0xf]
  %v24 = vld [vmem:[%s0 + $0x24] sm:$0xf]
  %v25 = vld [vmem:[%s0 + $0x28] sm:$0xf]
  %v26 = vld [vmem:[%s0 + $0x2c] sm:$0xf]
  %v27 = vld [vmem:[%s0 + $0x30] sm:$0x1]
  %v28 = vld [vmem:[%s1] sm:$0xf]
  %v29 = vld [vmem:[%s1 + $0x4] sm:$0xf]
  %v30 = vld [vmem:[%s1 + $0x8] sm:$0xf]
  %v31 = vld [vmem:[%s1 + $0xc] sm:$0xf]
  %v32 = vld [vmem:[%s1 + $0x10] sm:$0xf]
  %v33 = vld [vmem:[%s1 + $0x14] sm:$0xf]
  %v34 = vld [vmem:[%s1 + $0x18] sm:$0xf]
  %v35 = vld [vmem:[%s1 + $0x1c] sm:$0xf]
  %v36 = vld [vmem:[%s1 + $0x20] sm:$0xf]
  %v37 = vld [vmem:[%s1 + $0x24] sm:$0xf]
  %v38 = vld [vmem:[%s1 + $0x28] sm:$0xf]
  %v39 = vld [vmem:[%s1 + $0x2c] sm:$0xf]
  %v40 = vld [vmem:[%s1 + $0x30] sm:$0xf]
  %v41 = vld [vmem:[%s1 + $0x34] sm:$0xf]
  %v42 = vld [vmem:[%s1 + $0x38] sm:$0xf]
  %v43 = vld [vmem:[%s1 + $0x3c] sm:$0xf]
  %v44 = vld [vmem:[%s2] sm:$0x1]
  %v46 = vlaneseq
  %v47 = vshrl.u32 %v46, 7
  %v48 = vsub.s32 0, %v47
  %v49 = vrot.slane %v44, %v48
  %v64 = vunpack.c.l.b16 %v15
  %v65 = vunpack.c.l.b16 %v16
  %v66 = vunpack.c.l.b16 %v17
  %v67 = vunpack.c.l.b16 %v18
  %v68 = vunpack.c.l.b16 %v19
  %v69 = vunpack.c.l.b16 %v20
  %v70 = vunpack.c.l.b16 %v21
  %v71 = vunpack.c.l.b16 %v22
  %v72 = vunpack.c.l.b16 %v23
  %v73 = vunpack.c.l.b16 %v24
  %v74 = vunpack.c.l.b16 %v25
  %v75 = vunpack.c.l.b16 %v26
  %v76 = vunpack.c.l.b16 %v27
  %v77 = vpack.c.b16 %v65, %v64
  %v78 = vpack.c.b16 %v67, %v66
  %v79 = vpack.c.b16 %v69, %v68
  %v80 = vpack.c.b16 %v71, %v70
  %v81 = vpack.c.b16 %v73, %v72
  %v82 = vpack.c.b16 %v75, %v74
  %v83 = vpack.c.b16 %v76, %v76
  %v107 = vunpack.c.l.b16 %v28
  %v108 = vunpack.c.l.b16 %v29
  %v109 = vunpack.c.l.b16 %v30
  %v110 = vunpack.c.l.b16 %v31
  %v111 = vunpack.c.l.b16 %v32
  %v112 = vunpack.c.l.b16 %v33
  %v113 = vunpack.c.l.b16 %v34
  %v114 = vunpack.c.l.b16 %v35
  %v115 = vunpack.c.l.b16 %v36
  %v116 = vunpack.c.l.b16 %v37
  %v117 = vunpack.c.l.b16 %v38
  %v118 = vunpack.c.l.b16 %v39
  %v119 = vunpack.c.l.b16 %v40
  %v120 = vunpack.c.l.b16 %v41
  %v121 = vunpack.c.l.b16 %v42
  %v122 = vunpack.c.l.b16 %v43
  %v123 = vpack.c.b16 %v108, %v107
  %v124 = vpack.c.b16 %v110, %v109
  %v125 = vpack.c.b16 %v112, %v111
  %v126 = vpack.c.b16 %v114, %v113
  %v127 = vpack.c.b16 %v116, %v115
  %v128 = vpack.c.b16 %v118, %v117
  %v129 = vpack.c.b16 %v120, %v119
  %v130 = vpack.c.b16 %v122, %v121
  %139 = vmatprep.subr.bf16.mxu0 0
  %140 = vmatpush1.bf16.msra.mxu0 %v123
  %141 = vmatprep.subr.bf16.mxu0 0
  %142 = vmatpush1.bf16.msra.mxu0 %v124
  %143 = vmatprep.subr.bf16.mxu0 0
  %144 = vmatpush1.bf16.msra.mxu0 %v125
  %145 = vmatprep.subr.bf16.mxu0 0
  %146 = vmatpush1.bf16.msra.mxu0 %v126
  %147 = vmatprep.subr.bf16.mxu0 0
  %148 = vmatpush1.bf16.msra.mxu0 %v127
  %149 = vmatprep.subr.bf16.mxu0 0
  %150 = vmatpush1.bf16.msra.mxu0 %v128
  %151 = vmatprep.subr.bf16.mxu0 0
  %152 = vmatpush1.bf16.msra.mxu0 %v129
  %153 = vmatprep.subr.bf16.mxu0 0
  %154 = vmatpush1.bf16.msra.mxu0 %v130
  %155 = vmatprep.subr.bf16.mxu0 0
  %156 = vmatpush1.bf16.msra.mxu0 0
  %157 = vmatprep.subr.bf16.mxu0 0
  %158 = vmatpush1.bf16.msra.mxu0 0
  %159 = vmatprep.subr.bf16.mxu0 0
  %160 = vmatpush1.bf16.msra.mxu0 0
  %161 = vmatprep.subr.bf16.mxu0 0
  %162 = vmatpush1.bf16.msra.mxu0 0
  %163 = vmatprep.subr.bf16.mxu0 0
  %164 = vmatpush1.bf16.msra.mxu0 0
  %165 = vmatprep.subr.bf16.mxu0 0
  %166 = vmatpush1.bf16.msra.mxu0 0
  %167 = vmatprep.subr.bf16.mxu0 0
  %168 = vmatpush1.bf16.msra.mxu0 0
  %169 = vmatprep.subr.bf16.mxu0 0
  %170 = vmatpush1.bf16.msra.mxu0 0
  %171 = vmatprep.mubr.bf16.mxu0 0
  %172 = vmatmul.mubr.bf16.gmra.mrb[0].mxu0 %v77
  %v173 = vpop.f32.mrb[0].mxu0
  %v174 = vadd.f32 %v49, %v173
  %v175 = vpop.f32.mrb[0].mxu0
  %v176 = vpop.f32.mrb[0].mxu0
  %v177 = vadd.f32 %v49, %v176
  %v178 = vpop.f32.mrb[0].mxu0
  %179 = vmatprep.mubr.bf16.mxu0 0
  %180 = vmatmul.mubr.bf16.gmra.mrb[0].mxu0 %v78
  %v181 = vpop.f32.mrb[0].mxu0
  %v182 = vadd.f32 %v49, %v181
  %v183 = vpop.f32.mrb[0].mxu0
  %v184 = vpop.f32.mrb[0].mxu0
  %v185 = vadd.f32 %v49, %v184
  %v186 = vpop.f32.mrb[0].mxu0
  %187 = vmatprep.mubr.bf16.mxu0 0
  %188 = vmatmul.mubr.bf16.gmra.mrb[0].mxu0 %v79
  %v189 = vpop.f32.mrb[0].mxu0
  %v190 = vadd.f32 %v49, %v189
  %v191 = vpop.f32.mrb[0].mxu0
  %v192 = vpop.f32.mrb[0].mxu0
  %v193 = vadd.f32 %v49, %v192
  %v194 = vpop.f32.mrb[0].mxu0
  %195 = vmatprep.mubr.bf16.mxu0 0
  %196 = vmatmul.mubr.bf16.gmra.mrb[0].mxu0 %v80
  %v197 = vpop.f32.mrb[0].mxu0
  %v198 = vadd.f32 %v49, %v197
  %v199 = vpop.f32.mrb[0].mxu0
  %v200 = vpop.f32.mrb[0].mxu0
  %v201 = vadd.f32 %v49, %v200
  %v202 = vpop.f32.mrb[0].mxu0
  %203 = vmatprep.mubr.bf16.mxu0 0
  %204 = vmatmul.mubr.bf16.gmra.mrb[0].mxu0 %v81
  %v205 = vpop.f32.mrb[0].mxu0
  %v206 = vadd.f32 %v49, %v205
  %v207 = vpop.f32.mrb[0].mxu0
  %v208 = vpop.f32.mrb[0].mxu0
  %v209 = vadd.f32 %v49, %v208
  %v210 = vpop.f32.mrb[0].mxu0
  %211 = vmatprep.mubr.bf16.mxu0 0
  %212 = vmatmul.mubr.bf16.gmra.mrb[0].mxu0 %v82
  %v213 = vpop.f32.mrb[0].mxu0
  %v214 = vadd.f32 %v49, %v213
  %v215 = vpop.f32.mrb[0].mxu0
  %v216 = vpop.f32.mrb[0].mxu0
  %v217 = vadd.f32 %v49, %v216
  %v218 = vpop.f32.mrb[0].mxu0
  %219 = vmatprep.mubr.bf16.mxu0 0
  %220 = vmatmul.mubr.bf16.gmra.mrb[0].mxu0 %v83
  %v221 = vpop.f32.mrb[0].mxu0
  %v222 = vadd.f32 %v49, %v221
  %v223 = vpop.f32.mrb[0].mxu0
  %v224 = vpop.f32.mrb[0].mxu0
  %v225 = vpop.f32.mrb[0].mxu0
  %226 = vdwg.mxu0
  %v227 = vmax.f32 %v174, 0.0
  %v228 = vmax.f32 %v177, 0.0
  %v229 = vmax.f32 %v182, 0.0
  %v230 = vmax.f32 %v185, 0.0
  %v231 = vmax.f32 %v190, 0.0
  %v232 = vmax.f32 %v193, 0.0
  %v233 = vmax.f32 %v198, 0.0
  %v234 = vmax.f32 %v201, 0.0
  %v235 = vmax.f32 %v206, 0.0
  %v236 = vmax.f32 %v209, 0.0
  %v237 = vmax.f32 %v214, 0.0
  %v238 = vmax.f32 %v217, 0.0
  %v239 = vmax.f32 %v222, 0.0
  %v240 = vpack.c.bf16 %v228, %v227
  %v241 = vpack.c.bf16 %v230, %v229
  %v242 = vpack.c.bf16 %v232, %v231
  %v243 = vpack.c.bf16 %v234, %v233
  %v244 = vpack.c.bf16 %v236, %v235
  %v245 = vpack.c.bf16 %v238, %v237
  %v246 = vpack.c.bf16 %v239, %v239
  %v254 = vunpack.c.l.b16 %v240
  %v255 = vunpack.c.h.b16 %v240
  %v256 = vunpack.c.l.b16 %v241
  %v257 = vunpack.c.h.b16 %v241
  %v258 = vunpack.c.l.b16 %v242
  %v259 = vunpack.c.h.b16 %v242
  %v260 = vunpack.c.l.b16 %v243
  %v261 = vunpack.c.h.b16 %v243
  %v262 = vunpack.c.l.b16 %v244
  %v263 = vunpack.c.h.b16 %v244
  %v264 = vunpack.c.l.b16 %v245
  %v265 = vunpack.c.h.b16 %v245
  %v266 = vunpack.c.l.b16 %v246
  %v267 = vpack.c.b16 %v254, %v254
  %v268 = vpack.c.b16 %v255, %v255
  %v269 = vpack.c.b16 %v256, %v256
  %v270 = vpack.c.b16 %v257, %v257
  %v271 = vpack.c.b16 %v258, %v258
  %v272 = vpack.c.b16 %v259, %v259
  %v273 = vpack.c.b16 %v260, %v260
  %v274 = vpack.c.b16 %v261, %v261
  %v275 = vpack.c.b16 %v262, %v262
  %v276 = vpack.c.b16 %v263, %v263
  %v277 = vpack.c.b16 %v264, %v264
  %v278 = vpack.c.b16 %v265, %v265
  %v279 = vpack.c.b16 %v266, %v266
  %293 = vst [vmem:[%s3] sm:$0xf] %v267
  %294 = vst [vmem:[%s3 + $0x4] sm:$0xf] %v268
  %295 = vst [vmem:[%s3 + $0x8] sm:$0xf] %v269
  %296 = vst [vmem:[%s3 + $0xc] sm:$0xf] %v270
  %297 = vst [vmem:[%s3 + $0x10] sm:$0xf] %v271
  %298 = vst [vmem:[%s3 + $0x14] sm:$0xf] %v272
  %299 = vst [vmem:[%s3 + $0x18] sm:$0xf] %v273
  %300 = vst [vmem:[%s3 + $0x1c] sm:$0xf] %v274
  %301 = vst [vmem:[%s3 + $0x20] sm:$0xf] %v275
  %302 = vst [vmem:[%s3 + $0x24] sm:$0xf] %v276
  %303 = vst [vmem:[%s3 + $0x28] sm:$0xf] %v277
  %304 = vst [vmem:[%s3 + $0x2c] sm:$0xf] %v278
  %305 = vst [vmem:[%s3 + $0x30] sm:$0x1] %v279
  // Predicated region
  $region14: #{_lambda_.8} parent=0 // pred_check
    _
  $region15: #{_lambda_.8} parent=0 // pred_check_branch
    %307 = sbr.rel (0) target = $region17
  $region16: #{_lambda_.8} parent=0 // pred_region
    _
  $region17: #{_lambda_.8} parent=0 // pred_fallthru
    _
  // Predicated region
  $region18: #{_lambda_.8} parent=0 // pred_check
    _
  $region19: #{_lambda_.8} parent=0 // pred_check_branch
    %309 = sbr.rel (0) target = $region21
  $region20: #{_lambda_.8} parent=0 // pred_region
    _
  $region21: #{_lambda_.8} parent=0 // pred_fallthru
    _

// kernel: _lambda_.7
$region0: #{_lambda_.7}
  #allocation0 [shape = 'u32[]', space=smem, size = 0x4, offset = 0x4, fixed_abs, tag = 'smem constant byte address 0x4 - core index']
  #allocation1 [shape = 'u32[144,128]{1,0:T(1,128)}', space=vmem, size = 0x12000, scoped, tag = 'internal scratch']
  %s0 = inlined_call_operand.vmem [shape: bf16[2,1568], index: 0, kind: input, shape index: {}]
  %s1 = inlined_call_operand.vmem [shape: bf16[1568,128], index: 1, kind: input, shape index: {}]
  %s2 = inlined_call_operand.vmem [shape: f32[1,128], index: 2, kind: input, shape index: {}]
  %s3 = inlined_call_operand.vmem [shape: bf16[128,1664], index: 3, kind: input, shape index: {}]
  %s4 = inlined_call_operand.vmem [shape: f32[1,1664], index: 4, kind: input, shape index: {}]
  %s5 = inlined_call_operand.vmem [shape: bf16[2,1664], index: 5, kind: output, shape index: {}]
  %s6 = sld [smem:[#allocation0]]
  $region30: #{_lambda_.7} parent=0
    _
  %s8 = ssub.s32 1, %s6
  %s9 = scalar_select 0, %s8, %s6
  // Predicated region
  $region2: #{_lambda_.7} parent=0 // pred_check
    _
  $region3: #{_lambda_.7} parent=0 // pred_check_branch
    %11 = sbr.rel (0) target = $region5
  $region4: #{_lambda_.7} parent=0 // pred_region
    _
  $region5: #{_lambda_.7} parent=0 // pred_fallthru
    _
  // Predicated region
  $region6: #{_lambda_.7} parent=0 // pred_check
    _
  $region7: #{_lambda_.7} parent=0 // pred_check_branch
    %13 = sbr.rel (0) target = $region9
  $region8: #{_lambda_.7} parent=0 // pred_region
    _
  $region9: #{_lambda_.7} parent=0 // pred_fallthru
    _
  // Predicated region
  $region10: #{_lambda_.7} parent=0 // pred_check
    _
  $region11: #{_lambda_.7} parent=0 // pred_check_branch
    %15 = sbr.rel (0) target = $region13
  $region12: #{_lambda_.7} parent=0 // pred_region
    _
  $region13: #{_lambda_.7} parent=0 // pred_fallthru
    _
  // Predicated region
  $region14: #{_lambda_.7} parent=0 // pred_check
    _
  $region15: #{_lambda_.7} parent=0 // pred_check_branch
    %17 = sbr.rel (0) target = $region17
  $region16: #{_lambda_.7} parent=0 // pred_region
    _
  $region17: #{_lambda_.7} parent=0 // pred_fallthru
    _
  // Predicated region
  $region18: #{_lambda_.7} parent=0 // pred_check
    _
  $region19: #{_lambda_.7} parent=0 // pred_check_branch
    %19 = sbr.rel (0) target = $region21
  $region20: #{_lambda_.7} parent=0 // pred_region
    _
  $region21: #{_lambda_.7} parent=0 // pred_fallthru
    _
  %v21 = vld [vmem:[%s0] sm:$0xff]
  %v22 = vld [vmem:[%s0 + $0x8] sm:$0x1f]
  %v23 = vld [vmem:[%s1] sm:$0xf]
  %v24 = vld [vmem:[%s1 + $0x4] sm:$0xf]
  %v25 = vld [vmem:[%s1 + $0x8] sm:$0xf]
  %v26 = vld [vmem:[%s1 + $0xc] sm:$0xf]
  %v27 = vld [vmem:[%s1 + $0x10] sm:$0xf]
  %v28 = vld [vmem:[%s1 + $0x14] sm:$0xf]
  %v29 = vld [vmem:[%s1 + $0x18] sm:$0xf]
  %v30 = vld [vmem:[%s1 + $0x1c] sm:$0xf]
  %v31 = vld [vmem:[%s1 + $0x20] sm:$0xf]
  %v32 = vld [vmem:[%s1 + $0x24] sm:$0xf]
  %v33 = vld [vmem:[%s1 + $0x28] sm:$0xf]
  %v34 = vld [vmem:[%s1 + $0x2c] sm:$0xf]
  %v35 = vld [vmem:[%s1 + $0x30] sm:$0xf]
  %v36 = vld [vmem:[%s1 + $0x34] sm:$0xf]
  %v37 = vld [vmem:[%s1 + $0x38] sm:$0xf]
  %v38 = vld [vmem:[%s1 + $0x3c] sm:$0xf]
  %v39 = vld [vmem:[%s1 + $0x40] sm:$0xf]
  %v40 = vld [vmem:[%s1 + $0x44] sm:$0xf]
  %v41 = vld [vmem:[%s1 + $0x48] sm:$0xf]
  %v42 = vld [vmem:[%s1 + $0x4c] sm:$0xf]
  %v43 = vld [vmem:[%s1 + $0x50] sm:$0xf]
  %v44 = vld [vmem:[%s1 + $0x54] sm:$0xf]
  %v45 = vld [vmem:[%s1 + $0x58] sm:$0xf]
  %v46 = vld [vmem:[%s1 + $0x5c] sm:$0xf]
  %v47 = vld [vmem:[%s1 + $0x60] sm:$0xf]
  %v48 = vld [vmem:[%s1 + $0x64] sm:$0xf]
  %v49 = vld [vmem:[%s1 + $0x68] sm:$0xf]
  %v50 = vld [vmem:[%s1 + $0x6c] sm:$0xf]
  %v51 = vld [vmem:[%s1 + $0x70] sm:$0xf]
  %v52 = vld [vmem:[%s1 + $0x74] sm:$0xf]
  %v53 = vld [vmem:[%s1 + $0x78] sm:$0xf]
  %v54 = vld [vmem:[%s1 + $0x7c] sm:$0xf]
  %v55 = vld [vmem:[%s1 + $0x80] sm:$0xf]
  %v56 = vld [vmem:[%s1 + $0x84] sm:$0xf]
  %v57 = vld [vmem:[%s1 + $0x88] sm:$0xf]
  %v58 = vld [vmem:[%s1 + $0x8c] sm:$0xf]
  %v59 = vld [vmem:[%s1 + $0x90] sm:$0xf]
  %v60 = vld [vmem:[%s1 + $0x94] sm:$0xf]
  %v61 = vld [vmem:[%s1 + $0x98] sm:$0xf]
  %v62 = vld [vmem:[%s1 + $0x9c] sm:$0xf]
  %v63 = vld [vmem:[%s1 + $0xa0] sm:$0xf]
  %v64 = vld [vmem:[%s1 + $0xa4] sm:$0xf]
  %v65 = vld [vmem:[%s1 + $0xa8] sm:$0xf]
  %v66 = vld [vmem:[%s1 + $0xac] sm:$0xf]
  %v67 = vld [vmem:[%s1 + $0xb0] sm:$0xf]
  %v68 = vld [vmem:[%s1 + $0xb4] sm:$0xf]
  %v69 = vld [vmem:[%s1 + $0xb8] sm:$0xf]
  %v70 = vld [vmem:[%s1 + $0xbc] sm:$0xf]
  %v71 = vld [vmem:[%s1 + $0xc0] sm:$0xf]
  %v72 = vld [vmem:[%s1 + $0xc4] sm:$0xf]
  %v73 = vld [vmem:[%s1 + $0xc8] sm:$0xf]
  %v74 = vld [vmem:[%s1 + $0xcc] sm:$0xf]
  %v75 = vld [vmem:[%s1 + $0xd0] sm:$0xf]
  %v76 = vld [vmem:[%s1 + $0xd4] sm:$0xf]
  %v77 = vld [vmem:[%s1 + $0xd8] sm:$0xf]
  %v78 = vld [vmem:[%s1 + $0xdc] sm:$0xf]
  %v79 = vld [vmem:[%s1 + $0xe0] sm:$0xf]
  %v80 = vld [vmem:[%s1 + $0xe4] sm:$0xf]
  %v81 = vld [vmem:[%s1 + $0xe8] sm:$0xf]
  %v82 = vld [vmem:[%s1 + $0xec] sm:$0xf]
  %v83 = vld [vmem:[%s1 + $0xf0] sm:$0xf]
  %v84 = vld [vmem:[%s1 + $0xf4] sm:$0xf]
  %v85 = vld [vmem:[%s1 + $0xf8] sm:$0xf]
  %v86 = vld [vmem:[%s1 + $0xfc] sm:$0xf]
  %v87 = vld [vmem:[%s1 + $0x100] sm:$0xf]
  %v88 = vld [vmem:[%s1 + $0x104] sm:$0xf]
  %v89 = vld [vmem:[%s1 + $0x108] sm:$0xf]
  %v90 = vld [vmem:[%s1 + $0x10c] sm:$0xf]
  %v91 = vld [vmem:[%s1 + $0x110] sm:$0xf]
  %v92 = vld [vmem:[%s1 + $0x114] sm:$0xf]
  %v93 = vld [vmem:[%s1 + $0x118] sm:$0xf]
  %v94 = vld [vmem:[%s1 + $0x11c] sm:$0xf]
  %v95 = vld [vmem:[%s1 + $0x120] sm:$0xf]
  %v96 = vld [vmem:[%s1 + $0x124] sm:$0xf]
  %v97 = vld [vmem:[%s1 + $0x128] sm:$0xf]
  %v98 = vld [vmem:[%s1 + $0x12c] sm:$0xf]
  %v99 = vld [vmem:[%s1 + $0x130] sm:$0xf]
  %v100 = vld [vmem:[%s1 + $0x134] sm:$0xf]
  %v101 = vld [vmem:[%s1 + $0x138] sm:$0xf]
  %v102 = vld [vmem:[%s1 + $0x13c] sm:$0xf]
  %v103 = vld [vmem:[%s1 + $0x140] sm:$0xf]
  %v104 = vld [vmem:[%s1 + $0x144] sm:$0xf]
  %v105 = vld [vmem:[%s1 + $0x148] sm:$0xf]
  %v106 = vld [vmem:[%s1 + $0x14c] sm:$0xf]
  %v107 = vld [vmem:[%s1 + $0x150] sm:$0xf]
  %v108 = vld [vmem:[%s1 + $0x154] sm:$0xf]
  %v109 = vld [vmem:[%s1 + $0x158] sm:$0xf]
  %v110 = vld [vmem:[%s1 + $0x15c] sm:$0xf]
  %v111 = vld [vmem:[%s1 + $0x160] sm:$0xf]
  %v112 = vld [vmem:[%s1 + $0x164] sm:$0xf]
  %v113 = vld [vmem:[%s1 + $0x168] sm:$0xf]
  %v114 = vld [vmem:[%s1 + $0x16c] sm:$0xf]
  %v115 = vld [vmem:[%s1 + $0x170] sm:$0xf]
  %v116 = vld [vmem:[%s1 + $0x174] sm:$0xf]
  %v117 = vld [vmem:[%s1 + $0x178] sm:$0xf]
  %v118 = vld [vmem:[%s1 + $0x17c] sm:$0xf]
  %v119 = vld [vmem:[%s1 + $0x180] sm:$0xf]
  %v120 = vld [vmem:[%s1 + $0x184] sm:$0xf]
  %v121 = vld [vmem:[%s1 + $0x188] sm:$0xf]
  %v122 = vld [vmem:[%s1 + $0x18c] sm:$0xf]
  %v123 = vld [vmem:[%s1 + $0x190] sm:$0xf]
  %v124 = vld [vmem:[%s1 + $0x194] sm:$0xf]
  %v125 = vld [vmem:[%s1 + $0x198] sm:$0xf]
  %v126 = vld [vmem:[%s1 + $0x19c] sm:$0xf]
  %v127 = vld [vmem:[%s1 + $0x1a0] sm:$0xf]
  %v128 = vld [vmem:[%s1 + $0x1a4] sm:$0xf]
  %v129 = vld [vmem:[%s1 + $0x1a8] sm:$0xf]
  %v130 = vld [vmem:[%s1 + $0x1ac] sm:$0xf]
  %v131 = vld [vmem:[%s1 + $0x1b0] sm:$0xf]
  %v132 = vld [vmem:[%s1 + $0x1b4] sm:$0xf]
  %v133 = vld [vmem:[%s1 + $0x1b8] sm:$0xf]
  %v134 = vld [vmem:[%s1 + $0x1bc] sm:$0xf]
  %v135 = vld [vmem:[%s1 + $0x1c0] sm:$0xf]
  %v136 = vld [vmem:[%s1 + $0x1c4] sm:$0xf]
  %v137 = vld [vmem:[%s1 + $0x1c8] sm:$0xf]
  %v138 = vld [vmem:[%s1 + $0x1cc] sm:$0xf]
  %v139 = vld [vmem:[%s1 + $0x1d0] sm:$0xf]
  %v140 = vld [vmem:[%s1 + $0x1d4] sm:$0xf]
  %v141 = vld [vmem:[%s1 + $0x1d8] sm:$0xf]
  %v142 = vld [vmem:[%s1 + $0x1dc] sm:$0xf]
  %v143 = vld [vmem:[%s1 + $0x1e0] sm:$0xf]
  %v144 = vld [vmem:[%s1 + $0x1e4] sm:$0xf]
  %v145 = vld [vmem:[%s1 + $0x1e8] sm:$0xf]
  %v146 = vld [vmem:[%s1 + $0x1ec] sm:$0xf]
  %v147 = vld [vmem:[%s1 + $0x1f0] sm:$0xf]
  %v148 = vld [vmem:[%s1 + $0x1f4] sm:$0xf]
  %v149 = vld [vmem:[%s1 + $0x1f8] sm:$0xf]
  %v150 = vld [vmem:[%s1 + $0x1fc] sm:$0xf]
  %v151 = vld [vmem:[%s1 + $0x200] sm:$0xf]
  %v152 = vld [vmem:[%s1 + $0x204] sm:$0xf]
  %v153 = vld [vmem:[%s1 + $0x208] sm:$0xf]
  %v154 = vld [vmem:[%s1 + $0x20c] sm:$0xf]
  %v155 = vld [vmem:[%s1 + $0x210] sm:$0xf]
  %v156 = vld [vmem:[%s1 + $0x214] sm:$0xf]
  %v157 = vld [vmem:[%s1 + $0x218] sm:$0xf]
  %v158 = vld [vmem:[%s1 + $0x21c] sm:$0xf]
  %v159 = vld [vmem:[%s1 + $0x220] sm:$0xf]
  %v160 = vld [vmem:[%s1 + $0x224] sm:$0xf]
  %v161 = vld [vmem:[%s1 + $0x228] sm:$0xf]
  %v162 = vld [vmem:[%s1 + $0x22c] sm:$0xf]
  %v163 = vld [vmem:[%s1 + $0x230] sm:$0xf]
  %v164 = vld [vmem:[%s1 + $0x234] sm:$0xf]
  %v165 = vld [vmem:[%s1 + $0x238] sm:$0xf]
  %v166 = vld [vmem:[%s1 + $0x23c] sm:$0xf]
  %v167 = vld [vmem:[%s1 + $0x240] sm:$0xf]
  %v168 = vld [vmem:[%s1 + $0x244] sm:$0xf]
  %v169 = vld [vmem:[%s1 + $0x248] sm:$0xf]
  %v170 = vld [vmem:[%s1 + $0x24c] sm:$0xf]
  %v171 = vld [vmem:[%s1 + $0x250] sm:$0xf]
  %v172 = vld [vmem:[%s1 + $0x254] sm:$0xf]
  %v173 = vld [vmem:[%s1 + $0x258] sm:$0xf]
  %v174 = vld [vmem:[%s1 + $0x25c] sm:$0xf]
  %v175 = vld [vmem:[%s1 + $0x260] sm:$0xf]
  %v176 = vld [vmem:[%s1 + $0x264] sm:$0xf]
  %v177 = vld [vmem:[%s1 + $0x268] sm:$0xf]
  %v178 = vld [vmem:[%s1 + $0x26c] sm:$0xf]
  %v179 = vld [vmem:[%s1 + $0x270] sm:$0xf]
  %v180 = vld [vmem:[%s1 + $0x274] sm:$0xf]
  %v181 = vld [vmem:[%s1 + $0x278] sm:$0xf]
  %v182 = vld [vmem:[%s1 + $0x27c] sm:$0xf]
  %v183 = vld [vmem:[%s1 + $0x280] sm:$0xf]
  %v184 = vld [vmem:[%s1 + $0x284] sm:$0xf]
  %v185 = vld [vmem:[%s1 + $0x288] sm:$0xf]
  %v186 = vld [vmem:[%s1 + $0x28c] sm:$0xf]
  %v187 = vld [vmem:[%s1 + $0x290] sm:$0xf]
  %v188 = vld [vmem:[%s1 + $0x294] sm:$0xf]
  %v189 = vld [vmem:[%s1 + $0x298] sm:$0xf]
  %v190 = vld [vmem:[%s1 + $0x29c] sm:$0xf]
  %v191 = vld [vmem:[%s1 + $0x2a0] sm:$0xf]
  %v192 = vld [vmem:[%s1 + $0x2a4] sm:$0xf]
  %v193 = vld [vmem:[%s1 + $0x2a8] sm:$0xf]
  %v194 = vld [vmem:[%s1 + $0x2ac] sm:$0xf]
  %v195 = vld [vmem:[%s1 + $0x2b0] sm:$0xf]
  %v196 = vld [vmem:[%s1 + $0x2b4] sm:$0xf]
  %v197 = vld [vmem:[%s1 + $0x2b8] sm:$0xf]
  %v198 = vld [vmem:[%s1 + $0x2bc] sm:$0xf]
  %v199 = vld [vmem:[%s1 + $0x2c0] sm:$0xf]
  %v200 = vld [vmem:[%s1 + $0x2c4] sm:$0xf]
  %v201 = vld [vmem:[%s1 + $0x2c8] sm:$0xf]
  %v202 = vld [vmem:[%s1 + $0x2cc] sm:$0xf]
  %v203 = vld [vmem:[%s1 + $0x2d0] sm:$0xf]
  %v204 = vld [vmem:[%s1 + $0x2d4] sm:$0xf]
  %v205 = vld [vmem:[%s1 + $0x2d8] sm:$0xf]
  %v206 = vld [vmem:[%s1 + $0x2dc] sm:$0xf]
  %v207 = vld [vmem:[%s1 + $0x2e0] sm:$0xf]
  %v208 = vld [vmem:[%s1 + $0x2e4] sm:$0xf]
  %v209 = vld [vmem:[%s1 + $0x2e8] sm:$0xf]
  %v210 = vld [vmem:[%s1 + $0x2ec] sm:$0xf]
  %v211 = vld [vmem:[%s1 + $0x2f0] sm:$0xf]
  %v212 = vld [vmem:[%s1 + $0x2f4] sm:$0xf]
  %v213 = vld [vmem:[%s1 + $0x2f8] sm:$0xf]
  %v214 = vld [vmem:[%s1 + $0x2fc] sm:$0xf]
  %v215 = vld [vmem:[%s1 + $0x300] sm:$0xf]
  %v216 = vld [vmem:[%s1 + $0x304] sm:$0xf]
  %v217 = vld [vmem:[%s1 + $0x308] sm:$0xf]
  %v218 = vld [vmem:[%s1 + $0x30c] sm:$0xf]
  %v219 = vld [vmem:[%s2] sm:$0x1]
  %v221 = vlaneseq
  %v222 = vshrl.u32 %v221, 7
  %v223 = vsub.s32 0, %v222
  %v224 = vrot.slane %v219, %v223
  %v228 = vcombine.high %v21, %v21
  %v230 = vunpack.c.l.s4 1966171168
  %v231 = vunpack.c.0.s8 %v230
  %v232 = vlaneseq
  %v233 = vshrl.u32 %v232, 7
  %v234 = vsub.s32 %v231, %v233
  %v235 = vrot.slane %v21, %v234
  %v237 = vunpack.c.l.s4 1966171168
  %v238 = vunpack.c.0.s8 %v237
  %v239 = vlaneseq
  %v240 = vshrl.u32 %v239, 7
  %v241 = vsub.s32 %v238, %v240
  %v242 = vrot.slane %v228, %v241
  %v243 = vcombine.high %v235, %v235
  %v244 = vcombine.high %v242, %v242
  %v246 = vunpack.c.l.s4 1966171168
  %v247 = vunpack.c.0.s8 %v246
  %v248 = vlaneseq
  %v249 = vshrl.u32 %v248, 7
  %v250 = vsub.s32 %v247, %v249
  %v251 = vrot.slane %v235, %v250
  %v253 = vunpack.c.l.s4 1966171168
  %v254 = vunpack.c.0.s8 %v253
  %v255 = vlaneseq
  %v256 = vshrl.u32 %v255, 7
  %v257 = vsub.s32 %v254, %v256
  %v258 = vrot.slane %v242, %v257
  %v260 = vunpack.c.l.s4 1966171168
  %v261 = vunpack.c.0.s8 %v260
  %v262 = vlaneseq
  %v263 = vshrl.u32 %v262, 7
  %v264 = vsub.s32 %v261, %v263
  %v265 = vrot.slane %v243, %v264
  %v267 = vunpack.c.l.s4 1966171168
  %v268 = vunpack.c.0.s8 %v267
  %v269 = vlaneseq
  %v270 = vshrl.u32 %v269, 7
  %v271 = vsub.s32 %v268, %v270
  %v272 = vrot.slane %v244, %v271
  %v273 = vcombine.high %v251, %v251
  %v274 = vcombine.high %v258, %v258
  %v275 = vcombine.high %v265, %v265
  %v276 = vcombine.high %v272, %v272
  %v277 = vcombine.high %v22, %v22
  %v279 = vunpack.c.l.s4 1966171168
  %v280 = vunpack.c.0.s8 %v279
  %v281 = vlaneseq
  %v282 = vshrl.u32 %v281, 7
  %v283 = vsub.s32 %v280, %v282
  %v284 = vrot.slane %v22, %v283
  %v286 = vunpack.c.l.s4 1966171168
  %v287 = vunpack.c.0.s8 %v286
  %v288 = vlaneseq
  %v289 = vshrl.u32 %v288, 7
  %v290 = vsub.s32 %v287, %v289
  %v291 = vrot.slane %v277, %v290
  %v292 = vcombine.high %v284, %v284
  %v294 = vunpack.c.l.s4 1966171168
  %v295 = vunpack.c.0.s8 %v294
  %v296 = vlaneseq
  %v297 = vshrl.u32 %v296, 7
  %v298 = vsub.s32 %v295, %v297
  %v299 = vrot.slane %v284, %v298
  %v301 = vunpack.c.l.s4 1966171168
  %v302 = vunpack.c.0.s8 %v301
  %v303 = vlaneseq
  %v304 = vshrl.u32 %v303, 7
  %v305 = vsub.s32 %v302, %v304
  %v306 = vrot.slane %v291, %v305
  %v308 = vunpack.c.l.s4 1966171168
  %v309 = vunpack.c.0.s8 %v308
  %v310 = vlaneseq
  %v311 = vshrl.u32 %v310, 7
  %v312 = vsub.s32 %v309, %v311
  %v313 = vrot.slane %v292, %v312
  %v314 = vcombine.high %v299, %v299
  %v315 = vcombine.high %v313, %v313
  %v524 = vunpack.c.l.b16 %v23
  %v525 = vunpack.c.l.b16 %v24
  %v526 = vunpack.c.l.b16 %v25
  %v527 = vunpack.c.l.b16 %v26
  %v528 = vunpack.c.l.b16 %v27
  %v529 = vunpack.c.l.b16 %v28
  %v530 = vunpack.c.l.b16 %v29
  %v531 = vunpack.c.l.b16 %v30
  %v532 = vunpack.c.l.b16 %v31
  %v533 = vunpack.c.l.b16 %v32
  %v534 = vunpack.c.l.b16 %v33
  %v535 = vunpack.c.l.b16 %v34
  %v536 = vunpack.c.l.b16 %v35
  %v537 = vunpack.c.l.b16 %v36
  %v538 = vunpack.c.l.b16 %v37
  %v539 = vunpack.c.l.b16 %v38
  %v540 = vunpack.c.l.b16 %v39
  %v541 = vunpack.c.l.b16 %v40
  %v542 = vunpack.c.l.b16 %v41
  %v543 = vunpack.c.l.b16 %v42
  %v544 = vunpack.c.l.b16 %v43
  %v545 = vunpack.c.l.b16 %v44
  %v546 = vunpack.c.l.b16 %v45
  %v547 = vunpack.c.l.b16 %v46
  %v548 = vunpack.c.l.b16 %v47
  %v549 = vunpack.c.l.b16 %v48
  %v550 = vunpack.c.l.b16 %v49
  %v551 = vunpack.c.l.b16 %v50
  %v552 = vunpack.c.l.b16 %v51
  %v553 = vunpack.c.l.b16 %v52
  %v554 = vunpack.c.l.b16 %v53
  %v555 = vunpack.c.l.b16 %v54
  %v556 = vunpack.c.l.b16 %v55
  %v557 = vunpack.c.l.b16 %v56
  %v558 = vunpack.c.l.b16 %v57
  %v559 = vunpack.c.l.b16 %v58
  %v560 = vunpack.c.l.b16 %v59
  %v561 = vunpack.c.l.b16 %v60
  %v562 = vunpack.c.l.b16 %v61
  %v563 = vunpack.c.l.b16 %v62
  %v564 = vunpack.c.l.b16 %v63
  %v565 = vunpack.c.l.b16 %v64
  %v566 = vunpack.c.l.b16 %v65
  %v567 = vunpack.c.l.b16 %v66
  %v568 = vunpack.c.l.b16 %v67
  %v569 = vunpack.c.l.b16 %v68
  %v570 = vunpack.c.l.b16 %v69
  %v571 = vunpack.c.l.b16 %v70
  %v572 = vunpack.c.l.b16 %v71
  %v573 = vunpack.c.l.b16 %v72
  %v574 = vunpack.c.l.b16 %v73
  %v575 = vunpack.c.l.b16 %v74
  %v576 = vunpack.c.l.b16 %v75
  %v577 = vunpack.c.l.b16 %v76
  %v578 = vunpack.c.l.b16 %v77
  %v579 = vunpack.c.l.b16 %v78
  %v580 = vunpack.c.l.b16 %v79
  %v581 = vunpack.c.l.b16 %v80
  %v582 = vunpack.c.l.b16 %v81
  %v583 = vunpack.c.l.b16 %v82
  %v584 = vunpack.c.l.b16 %v83
  %v585 = vunpack.c.l.b16 %v84
  %v586 = vunpack.c.l.b16 %v85
  %v587 = vunpack.c.l.b16 %v86
  %v588 = vunpack.c.l.b16 %v87
  %v589 = vunpack.c.l.b16 %v88
  %v590 = vunpack.c.l.b16 %v89
  %v591 = vunpack.c.l.b16 %v90
  %v592 = vunpack.c.l.b16 %v91
  %v593 = vunpack.c.l.b16 %v92
  %v594 = vunpack.c.l.b16 %v93
  %v595 = vunpack.c.l.b16 %v94
  %v596 = vunpack.c.l.b16 %v95
  %v597 = vunpack.c.l.b16 %v96
  %v598 = vunpack.c.l.b16 %v97
  %v599 = vunpack.c.l.b16 %v98
  %v600 = vunpack.c.l.b16 %v99
  %v601 = vunpack.c.l.b16 %v100
  %v602 = vunpack.c.l.b16 %v101
  %v603 = vunpack.c.l.b16 %v102
  %v604 = vunpack.c.l.b16 %v103
  %v605 = vunpack.c.l.b16 %v104
  %v606 = vunpack.c.l.b16 %v105
  %v607 = vunpack.c.l.b16 %v106
  %v608 = vunpack.c.l.b16 %v107
  %v609 = vunpack.c.l.b16 %v108
  %v610 = vunpack.c.l.b16 %v109
  %v611 = vunpack.c.l.b16 %v110
  %v612 = vunpack.c.l.b16 %v111
  %v613 = vunpack.c.l.b16 %v112
  %v614 = vunpack.c.l.b16 %v113
  %v615 = vunpack.c.l.b16 %v114
  %v616 = vunpack.c.l.b16 %v115
  %v617 = vunpack.c.l.b16 %v116
  %v618 = vunpack.c.l.b16 %v117
  %v619 = vunpack.c.l.b16 %v118
  %v620 = vunpack.c.l.b16 %v119
  %v621 = vunpack.c.l.b16 %v120
  %v622 = vunpack.c.l.b16 %v121
  %v623 = vunpack.c.l.b16 %v122
  %v624 = vunpack.c.l.b16 %v123
  %v625 = vunpack.c.l.b16 %v124
  %v626 = vunpack.c.l.b16 %v125
  %v627 = vunpack.c.l.b16 %v126
  %v628 = vunpack.c.l.b16 %v127
  %v629 = vunpack.c.l.b16 %v128
  %v630 = vunpack.c.l.b16 %v129
  %v631 = vunpack.c.l.b16 %v130
  %v632 = vunpack.c.l.b16 %v131
  %v633 = vunpack.c.l.b16 %v132
  %v634 = vunpack.c.l.b16 %v133
  %v635 = vunpack.c.l.b16 %v134
  %v636 = vunpack.c.l.b16 %v135
  %v637 = vunpack.c.l.b16 %v136
  %v638 = vunpack.c.l.b16 %v137
  %v639 = vunpack.c.l.b16 %v138
  %v640 = vunpack.c.l.b16 %v139
  %v641 = vunpack.c.l.b16 %v140
  %v642 = vunpack.c.l.b16 %v141
  %v643 = vunpack.c.l.b16 %v142
  %v644 = vunpack.c.l.b16 %v143
  %v645 = vunpack.c.l.b16 %v144
  %v646 = vunpack.c.l.b16 %v145
  %v647 = vunpack.c.l.b16 %v146
  %v648 = vunpack.c.l.b16 %v147
  %v649 = vunpack.c.l.b16 %v148
  %v650 = vunpack.c.l.b16 %v149
  %v651 = vunpack.c.l.b16 %v150
  %v652 = vunpack.c.l.b16 %v151
  %v653 = vunpack.c.l.b16 %v152
  %v654 = vunpack.c.l.b16 %v153
  %v655 = vunpack.c.l.b16 %v154
  %v656 = vunpack.c.l.b16 %v155
  %v657 = vunpack.c.l.b16 %v156
  %v658 = vunpack.c.l.b16 %v157
  %v659 = vunpack.c.l.b16 %v158
  %v660 = vunpack.c.l.b16 %v159
  %v661 = vunpack.c.l.b16 %v160
  %v662 = vunpack.c.l.b16 %v161
  %v663 = vunpack.c.l.b16 %v162
  %v664 = vunpack.c.l.b16 %v163
  %v665 = vunpack.c.l.b16 %v164
  %v666 = vunpack.c.l.b16 %v165
  %v667 = vunpack.c.l.b16 %v166
  %v668 = vunpack.c.l.b16 %v167
  %v669 = vunpack.c.l.b16 %v168
  %v670 = vunpack.c.l.b16 %v169
  %v671 = vunpack.c.l.b16 %v170
  %v672 = vunpack.c.l.b16 %v171
  %v673 = vunpack.c.l.b16 %v172
  %v674 = vunpack.c.l.b16 %v173
  %v675 = vunpack.c.l.b16 %v174
  %v676 = vunpack.c.l.b16 %v175
  %v677 = vunpack.c.l.b16 %v176
  %v678 = vunpack.c.l.b16 %v177
  %v679 = vunpack.c.l.b16 %v178
  %v680 = vunpack.c.l.b16 %v179
  %v681 = vunpack.c.l.b16 %v180
  %v682 = vunpack.c.l.b16 %v181
  %v683 = vunpack.c.l.b16 %v182
  %v684 = vunpack.c.l.b16 %v183
  %v685 = vunpack.c.l.b16 %v184
  %v686 = vunpack.c.l.b16 %v185
  %v687 = vunpack.c.l.b16 %v186
  %v688 = vunpack.c.l.b16 %v187
  %v689 = vunpack.c.l.b16 %v188
  %v690 = vunpack.c.l.b16 %v189
  %v691 = vunpack.c.l.b16 %v190
  %v692 = vunpack.c.l.b16 %v191
  %v693 = vunpack.c.l.b16 %v192
  %v694 = vunpack.c.l.b16 %v193
  %v695 = vunpack.c.l.b16 %v194
  %v696 = vunpack.c.l.b16 %v195
  %v697 = vunpack.c.l.b16 %v196
  %v698 = vunpack.c.l.b16 %v197
  %v699 = vunpack.c.l.b16 %v198
  %v700 = vunpack.c.l.b16 %v199
  %v701 = vunpack.c.l.b16 %v200
  %v702 = vunpack.c.l.b16 %v201
  %v703 = vunpack.c.l.b16 %v202
  %v704 = vunpack.c.l.b16 %v203
  %v705 = vunpack.c.l.b16 %v204
  %v706 = vunpack.c.l.b16 %v205
  %v707 = vunpack.c.l.b16 %v206
  %v708 = vunpack.c.l.b16 %v207
  %v709 = vunpack.c.l.b16 %v208
  %v710 = vunpack.c.l.b16 %v209
  %v711 = vunpack.c.l.b16 %v210
  %v712 = vunpack.c.l.b16 %v211
  %v713 = vunpack.c.l.b16 %v212
  %v714 = vunpack.c.l.b16 %v213
  %v715 = vunpack.c.l.b16 %v214
  %v716 = vunpack.c.l.b16 %v215
  %v717 = vunpack.c.l.b16 %v216
  %v718 = vunpack.c.l.b16 %v217
  %v719 = vunpack.c.l.b16 %v218
  %v720 = vpack.c.b16 %v525, %v524
  %v721 = vpack.c.b16 %v527, %v526
  %v722 = vpack.c.b16 %v529, %v528
  %v723 = vpack.c.b16 %v531, %v530
  %v724 = vpack.c.b16 %v533, %v532
  %v725 = vpack.c.b16 %v535, %v534
  %v726 = vpack.c.b16 %v537, %v536
  %v727 = vpack.c.b16 %v539, %v538
  %v728 = vpack.c.b16 %v541, %v540
  %v729 = vpack.c.b16 %v543, %v542
  %v730 = vpack.c.b16 %v545, %v544
  %v731 = vpack.c.b16 %v547, %v546
  %v732 = vpack.c.b16 %v549, %v548
  %v733 = vpack.c.b16 %v551, %v550
  %v734 = vpack.c.b16 %v553, %v552
  %v735 = vpack.c.b16 %v555, %v554
  %v736 = vpack.c.b16 %v557, %v556
  %v737 = vpack.c.b16 %v559, %v558
  %v738 = vpack.c.b16 %v561, %v560
  %v739 = vpack.c.b16 %v563, %v562
  %v740 = vpack.c.b16 %v565, %v564
  %v741 = vpack.c.b16 %v567, %v566
  %v742 = vpack.c.b16 %v569, %v568
  %v743 = vpack.c.b16 %v571, %v570
  %v744 = vpack.c.b16 %v573, %v572
  %v745 = vpack.c.b16 %v575, %v574
  %v746 = vpack.c.b16 %v577, %v576
  %v747 = vpack.c.b16 %v579, %v578
  %v748 = vpack.c.b16 %v581, %v580
  %v749 = vpack.c.b16 %v583, %v582
  %v750 = vpack.c.b16 %v585, %v584
  %v751 = vpack.c.b16 %v587, %v586
  %v752 = vpack.c.b16 %v589, %v588
  %v753 = vpack.c.b16 %v591, %v590
  %v754 = vpack.c.b16 %v593, %v592
  %v755 = vpack.c.b16 %v595, %v594
  %v756 = vpack.c.b16 %v597, %v596
  %v757 = vpack.c.b16 %v599, %v598
  %v758 = vpack.c.b16 %v601, %v600
  %v759 = vpack.c.b16 %v603, %v602
  %v760 = vpack.c.b16 %v605, %v604
  %v761 = vpack.c.b16 %v607, %v606
  %v762 = vpack.c.b16 %v609, %v608
  %v763 = vpack.c.b16 %v611, %v610
  %v764 = vpack.c.b16 %v613, %v612
  %v765 = vpack.c.b16 %v615, %v614
  %v766 = vpack.c.b16 %v617, %v616
  %v767 = vpack.c.b16 %v619, %v618
  %v768 = vpack.c.b16 %v621, %v620
  %v769 = vpack.c.b16 %v623, %v622
  %v770 = vpack.c.b16 %v625, %v624
  %v771 = vpack.c.b16 %v627, %v626
  %v772 = vpack.c.b16 %v629, %v628
  %v773 = vpack.c.b16 %v631, %v630
  %v774 = vpack.c.b16 %v633, %v632
  %v775 = vpack.c.b16 %v635, %v634
  %v776 = vpack.c.b16 %v637, %v636
  %v777 = vpack.c.b16 %v639, %v638
  %v778 = vpack.c.b16 %v641, %v640
  %v779 = vpack.c.b16 %v643, %v642
  %v780 = vpack.c.b16 %v645, %v644
  %v781 = vpack.c.b16 %v647, %v646
  %v782 = vpack.c.b16 %v649, %v648
  %v783 = vpack.c.b16 %v651, %v650
  %v784 = vpack.c.b16 %v653, %v652
  %v785 = vpack.c.b16 %v655, %v654
  %v786 = vpack.c.b16 %v657, %v656
  %v787 = vpack.c.b16 %v659, %v658
  %v788 = vpack.c.b16 %v661, %v660
  %v789 = vpack.c.b16 %v663, %v662
  %v790 = vpack.c.b16 %v665, %v664
  %v791 = vpack.c.b16 %v667, %v666
  %v792 = vpack.c.b16 %v669, %v668
  %v793 = vpack.c.b16 %v671, %v670
  %v794 = vpack.c.b16 %v673, %v672
  %v795 = vpack.c.b16 %v675, %v674
  %v796 = vpack.c.b16 %v677, %v676
  %v797 = vpack.c.b16 %v679, %v678
  %v798 = vpack.c.b16 %v681, %v680
  %v799 = vpack.c.b16 %v683, %v682
  %v800 = vpack.c.b16 %v685, %v684
  %v801 = vpack.c.b16 %v687, %v686
  %v802 = vpack.c.b16 %v689, %v688
  %v803 = vpack.c.b16 %v691, %v690
  %v804 = vpack.c.b16 %v693, %v692
  %v805 = vpack.c.b16 %v695, %v694
  %v806 = vpack.c.b16 %v697, %v696
  %v807 = vpack.c.b16 %v699, %v698
  %v808 = vpack.c.b16 %v701, %v700
  %v809 = vpack.c.b16 %v703, %v702
  %v810 = vpack.c.b16 %v705, %v704
  %v811 = vpack.c.b16 %v707, %v706
  %v812 = vpack.c.b16 %v709, %v708
  %v813 = vpack.c.b16 %v711, %v710
  %v814 = vpack.c.b16 %v713, %v712
  %v815 = vpack.c.b16 %v715, %v714
  %v816 = vpack.c.b16 %v717, %v716
  %v817 = vpack.c.b16 %v719, %v718
  %vm916 = vcmask 261120
  %v918 = vsel %vm916, %v306, 0
  %920 = vmatprep.subr.bf16.mxu0 0
  %921 = vmatpush1.bf16.msra.mxu0 %v720
  %922 = vmatprep.subr.bf16.mxu0 0
  %923 = vmatpush1.bf16.msra.mxu0 %v721
  %924 = vmatprep.subr.bf16.mxu0 0
  %925 = vmatpush1.bf16.msra.mxu0 %v722
  %926 = vmatprep.subr.bf16.mxu0 0
  %927 = vmatpush1.bf16.msra.mxu0 %v723
  %928 = vmatprep.subr.bf16.mxu0 0
  %929 = vmatpush1.bf16.msra.mxu0 %v724
  %930 = vmatprep.subr.bf16.mxu0 0
  %931 = vmatpush1.bf16.msra.mxu0 %v725
  %932 = vmatprep.subr.bf16.mxu0 0
  %933 = vmatpush1.bf16.msra.mxu0 %v726
  %934 = vmatprep.subr.bf16.mxu0 0
  %935 = vmatpush1.bf16.msra.mxu0 %v727
  %936 = vmatprep.subr.bf16.mxu0 0
  %937 = vmatpush1.bf16.msra.mxu0 %v728
  %938 = vmatprep.subr.bf16.mxu0 0
  %939 = vmatpush1.bf16.msra.mxu0 %v729
  %940 = vmatprep.subr.bf16.mxu0 0
  %941 = vmatpush1.bf16.msra.mxu0 %v730
  %942 = vmatprep.subr.bf16.mxu0 0
  %943 = vmatpush1.bf16.msra.mxu0 %v731
  %944 = vmatprep.subr.bf16.mxu0 0
  %945 = vmatpush1.bf16.msra.mxu0 %v732
  %946 = vmatprep.subr.bf16.mxu0 0
  %947 = vmatpush1.bf16.msra.mxu0 %v733
  %948 = vmatprep.subr.bf16.mxu0 0
  %949 = vmatpush1.bf16.msra.mxu0 %v734
  %950 = vmatprep.subr.bf16.mxu0 0
  %951 = vmatpush1.bf16.msra.mxu0 %v735
  %952 = vmatprep.mubr.bf16.mxu0 %v265
  %953 = vmatmul.mubr.bf16.gmra.mrb[0].mxu0 %v251
  %v954 = vpop.f32.mrb[0].mxu0
  %v955 = vadd.f32 %v224, %v954
  %v956 = vpop.f32.mrb[0].mxu0
  %v957 = vpop.f32.mrb[0].mxu0
  %v958 = vpop.f32.mrb[0].mxu0
  %959 = vdwg.mxu0
  %960 = vmatprep.subr.bf16.mxu0 0
  %961 = vmatpush1.bf16.msra.mxu0 %v736
  %962 = vmatprep.subr.bf16.mxu0 0
  %963 = vmatpush1.bf16.msra.mxu0 %v737
  %964 = vmatprep.subr.bf16.mxu0 0
  %965 = vmatpush1.bf16.msra.mxu0 %v738
  %966 = vmatprep.subr.bf16.mxu0 0
  %967 = vmatpush1.bf16.msra.mxu0 %v739
  %968 = vmatprep.subr.bf16.mxu0 0
  %969 = vmatpush1.bf16.msra.mxu0 %v740
  %970 = vmatprep.subr.bf16.mxu0 0
  %971 = vmatpush1.bf16.msra.mxu0 %v741
  %972 = vmatprep.subr.bf16.mxu0 0
  %973 = vmatpush1.bf16.msra.mxu0 %v742
  %974 = vmatprep.subr.bf16.mxu0 0
  %975 = vmatpush1.bf16.msra.mxu0 %v743
  %976 = vmatprep.subr.bf16.mxu0 0
  %977 = vmatpush1.bf16.msra.mxu0 %v744
  %978 = vmatprep.subr.bf16.mxu0 0
  %979 = vmatpush1.bf16.msra.mxu0 %v745
  %980 = vmatprep.subr.bf16.mxu0 0
  %981 = vmatpush1.bf16.msra.mxu0 %v746
  %982 = vmatprep.subr.bf16.mxu0 0
  %983 = vmatpush1.bf16.msra.mxu0 %v747
  %984 = vmatprep.subr.bf16.mxu0 0
  %985 = vmatpush1.bf16.msra.mxu0 %v748
  %986 = vmatprep.subr.bf16.mxu0 0
  %987 = vmatpush1.bf16.msra.mxu0 %v749
  %988 = vmatprep.subr.bf16.mxu0 0
  %989 = vmatpush1.bf16.msra.mxu0 %v750
  %990 = vmatprep.subr.bf16.mxu0 0
  %991 = vmatpush1.bf16.msra.mxu0 %v751
  %992 = vmatprep.mubr.bf16.mxu0 %v275
  %993 = vmatmul.mubr.bf16.gmra.mrb[0].mxu0 %v273
  %v994 = vpop.f32.mrb[0].mxu0
  %v995 = vadd.f32 %v955, %v994
  %v996 = vpop.f32.mrb[0].mxu0
  %v997 = vpop.f32.mrb[0].mxu0
  %v998 = vpop.f32.mrb[0].mxu0
  %999 = vdwg.mxu0
  %1000 = vmatprep.subr.bf16.mxu0 0
  %1001 = vmatpush1.bf16.msra.mxu0 %v752
  %1002 = vmatprep.subr.bf16.mxu0 0
  %1003 = vmatpush1.bf16.msra.mxu0 %v753
  %1004 = vmatprep.subr.bf16.mxu0 0
  %1005 = vmatpush1.bf16.msra.mxu0 %v754
  %1006 = vmatprep.subr.bf16.mxu0 0
  %1007 = vmatpush1.bf16.msra.mxu0 %v755
  %1008 = vmatprep.subr.bf16.mxu0 0
  %1009 = vmatpush1.bf16.msra.mxu0 %v756
  %1010 = vmatprep.subr.bf16.mxu0 0
  %1011 = vmatpush1.bf16.msra.mxu0 %v757
  %1012 = vmatprep.subr.bf16.mxu0 0
  %1013 = vmatpush1.bf16.msra.mxu0 %v758
  %1014 = vmatprep.subr.bf16.mxu0 0
  %1015 = vmatpush1.bf16.msra.mxu0 %v759
  %1016 = vmatprep.subr.bf16.mxu0 0
  %1017 = vmatpush1.bf16.msra.mxu0 %v760
  %1018 = vmatprep.subr.bf16.mxu0 0
  %1019 = vmatpush1.bf16.msra.mxu0 %v761
  %1020 = vmatprep.subr.bf16.mxu0 0
  %1021 = vmatpush1.bf16.msra.mxu0 %v762
  %1022 = vmatprep.subr.bf16.mxu0 0
  %1023 = vmatpush1.bf16.msra.mxu0 %v763
  %1024 = vmatprep.subr.bf16.mxu0 0
  %1025 = vmatpush1.bf16.msra.mxu0 %v764
  %1026 = vmatprep.subr.bf16.mxu0 0
  %1027 = vmatpush1.bf16.msra.mxu0 %v765
  %1028 = vmatprep.subr.bf16.mxu0 0
  %1029 = vmatpush1.bf16.msra.mxu0 %v766
  %1030 = vmatprep.subr.bf16.mxu0 0
  %1031 = vmatpush1.bf16.msra.mxu0 %v767
  %1032 = vmatprep.mubr.bf16.mxu0 %v272
  %1033 = vmatmul.mubr.bf16.gmra.mrb[0].mxu0 %v258
  %v1034 = vpop.f32.mrb[0].mxu0
  %v1035 = vadd.f32 %v995, %v1034
  %v1036 = vpop.f32.mrb[0].mxu0
  %v1037 = vpop.f32.mrb[0].mxu0
  %v1038 = vpop.f32.mrb[0].mxu0
  %1039 = vdwg.mxu0
  %1040 = vmatprep.subr.bf16.mxu0 0
  %1041 = vmatpush1.bf16.msra.mxu0 %v768
  %1042 = vmatprep.subr.bf16.mxu0 0
  %1043 = vmatpush1.bf16.msra.mxu0 %v769
  %1044 = vmatprep.subr.bf16.mxu0 0
  %1045 = vmatpush1.bf16.msra.mxu0 %v770
  %1046 = vmatprep.subr.bf16.mxu0 0
  %1047 = vmatpush1.bf16.msra.mxu0 %v771
  %1048 = vmatprep.subr.bf16.mxu0 0
  %1049 = vmatpush1.bf16.msra.mxu0 %v772
  %1050 = vmatprep.subr.bf16.mxu0 0
  %1051 = vmatpush1.bf16.msra.mxu0 %v773
  %1052 = vmatprep.subr.bf16.mxu0 0
  %1053 = vmatpush1.bf16.msra.mxu0 %v774
  %1054 = vmatprep.subr.bf16.mxu0 0
  %1055 = vmatpush1.bf16.msra.mxu0 %v775
  %1056 = vmatprep.subr.bf16.mxu0 0
  %1057 = vmatpush1.bf16.msra.mxu0 %v776
  %1058 = vmatprep.subr.bf16.mxu0 0
  %1059 = vmatpush1.bf16.msra.mxu0 %v777
  %1060 = vmatprep.subr.bf16.mxu0 0
  %1061 = vmatpush1.bf16.msra.mxu0 %v778
  %1062 = vmatprep.subr.bf16.mxu0 0
  %1063 = vmatpush1.bf16.msra.mxu0 %v779
  %1064 = vmatprep.subr.bf16.mxu0 0
  %1065 = vmatpush1.bf16.msra.mxu0 %v780
  %1066 = vmatprep.subr.bf16.mxu0 0
  %1067 = vmatpush1.bf16.msra.mxu0 %v781
  %1068 = vmatprep.subr.bf16.mxu0 0
  %1069 = vmatpush1.bf16.msra.mxu0 %v782
  %1070 = vmatprep.subr.bf16.mxu0 0
  %1071 = vmatpush1.bf16.msra.mxu0 %v783
  %1072 = vmatprep.mubr.bf16.mxu0 %v276
  %1073 = vmatmul.mubr.bf16.gmra.mrb[0].mxu0 %v274
  %v1074 = vpop.f32.mrb[0].mxu0
  %v1075 = vadd.f32 %v1035, %v1074
  %v1076 = vpop.f32.mrb[0].mxu0
  %v1077 = vpop.f32.mrb[0].mxu0
  %v1078 = vpop.f32.mrb[0].mxu0
  %1079 = vdwg.mxu0
  %1080 = vmatprep.subr.bf16.mxu0 0
  %1081 = vmatpush1.bf16.msra.mxu0 %v784
  %1082 = vmatprep.subr.bf16.mxu0 0
  %1083 = vmatpush1.bf16.msra.mxu0 %v785
  %1084 = vmatprep.subr.bf16.mxu0 0
  %1085 = vmatpush1.bf16.msra.mxu0 %v786
  %1086 = vmatprep.subr.bf16.mxu0 0
  %1087 = vmatpush1.bf16.msra.mxu0 %v787
  %1088 = vmatprep.subr.bf16.mxu0 0
  %1089 = vmatpush1.bf16.msra.mxu0 %v788
  %1090 = vmatprep.subr.bf16.mxu0 0
  %1091 = vmatpush1.bf16.msra.mxu0 %v789
  %1092 = vmatprep.subr.bf16.mxu0 0
  %1093 = vmatpush1.bf16.msra.mxu0 %v790
  %1094 = vmatprep.subr.bf16.mxu0 0
  %1095 = vmatpush1.bf16.msra.mxu0 %v791
  %1096 = vmatprep.subr.bf16.mxu0 0
  %1097 = vmatpush1.bf16.msra.mxu0 %v792
  %1098 = vmatprep.subr.bf16.mxu0 0
  %1099 = vmatpush1.bf16.msra.mxu0 %v793
  %1100 = vmatprep.subr.bf16.mxu0 0
  %1101 = vmatpush1.bf16.msra.mxu0 %v794
  %1102 = vmatprep.subr.bf16.mxu0 0
  %1103 = vmatpush1.bf16.msra.mxu0 %v795
  %1104 = vmatprep.subr.bf16.mxu0 0
  %1105 = vmatpush1.bf16.msra.mxu0 %v796
  %1106 = vmatprep.subr.bf16.mxu0 0
  %1107 = vmatpush1.bf16.msra.mxu0 %v797
  %1108 = vmatprep.subr.bf16.mxu0 0
  %1109 = vmatpush1.bf16.msra.mxu0 %v798
  %1110 = vmatprep.subr.bf16.mxu0 0
  %1111 = vmatpush1.bf16.msra.mxu0 %v799
  %1112 = vmatprep.mubr.bf16.mxu0 %v313
  %1113 = vmatmul.mubr.bf16.gmra.mrb[0].mxu0 %v299
  %v1114 = vpop.f32.mrb[0].mxu0
  %v1115 = vadd.f32 %v1075, %v1114
  %v1116 = vpop.f32.mrb[0].mxu0
  %v1117 = vpop.f32.mrb[0].mxu0
  %v1118 = vpop.f32.mrb[0].mxu0
  %1119 = vdwg.mxu0
  %1120 = vmatprep.subr.bf16.mxu0 0
  %1121 = vmatpush1.bf16.msra.mxu0 %v800
  %1122 = vmatprep.subr.bf16.mxu0 0
  %1123 = vmatpush1.bf16.msra.mxu0 %v801
  %1124 = vmatprep.subr.bf16.mxu0 0
  %1125 = vmatpush1.bf16.msra.mxu0 %v802
  %1126 = vmatprep.subr.bf16.mxu0 0
  %1127 = vmatpush1.bf16.msra.mxu0 %v803
  %1128 = vmatprep.subr.bf16.mxu0 0
  %1129 = vmatpush1.bf16.msra.mxu0 %v804
  %1130 = vmatprep.subr.bf16.mxu0 0
  %1131 = vmatpush1.bf16.msra.mxu0 %v805
  %1132 = vmatprep.subr.bf16.mxu0 0
  %1133 = vmatpush1.bf16.msra.mxu0 %v806
  %1134 = vmatprep.subr.bf16.mxu0 0
  %1135 = vmatpush1.bf16.msra.mxu0 %v807
  %1136 = vmatprep.subr.bf16.mxu0 0
  %1137 = vmatpush1.bf16.msra.mxu0 %v808
  %1138 = vmatprep.subr.bf16.mxu0 0
  %1139 = vmatpush1.bf16.msra.mxu0 %v809
  %1140 = vmatprep.subr.bf16.mxu0 0
  %1141 = vmatpush1.bf16.msra.mxu0 %v810
  %1142 = vmatprep.subr.bf16.mxu0 0
  %1143 = vmatpush1.bf16.msra.mxu0 %v811
  %1144 = vmatprep.subr.bf16.mxu0 0
  %1145 = vmatpush1.bf16.msra.mxu0 %v812
  %1146 = vmatprep.subr.bf16.mxu0 0
  %1147 = vmatpush1.bf16.msra.mxu0 %v813
  %1148 = vmatprep.subr.bf16.mxu0 0
  %1149 = vmatpush1.bf16.msra.mxu0 %v814
  %1150 = vmatprep.subr.bf16.mxu0 0
  %1151 = vmatpush1.bf16.msra.mxu0 %v815
  %1152 = vmatprep.mubr.bf16.mxu0 %v315
  %1153 = vmatmul.mubr.bf16.gmra.mrb[0].mxu0 %v314
  %v1154 = vpop.f32.mrb[0].mxu0
  %v1155 = vadd.f32 %v1115, %v1154
  %v1156 = vpop.f32.mrb[0].mxu0
  %v1157 = vpop.f32.mrb[0].mxu0
  %v1158 = vpop.f32.mrb[0].mxu0
  %1159 = vdwg.mxu0
  %1160 = vmatprep.subr.bf16.mxu0 0
  %1161 = vmatpush1.bf16.msra.mxu0 %v816
  %1162 = vmatprep.subr.bf16.mxu0 0
  %1163 = vmatpush1.bf16.msra.mxu0 %v817
  %1164 = vmatprep.subr.bf16.mxu0 0
  %1165 = vmatpush1.bf16.msra.mxu0 0
  %1166 = vmatprep.subr.bf16.mxu0 0
  %1167 = vmatpush1.bf16.msra.mxu0 0
  %1168 = vmatprep.subr.bf16.mxu0 0
  %1169 = vmatpush1.bf16.msra.mxu0 0
  %1170 = vmatprep.subr.bf16.mxu0 0
  %1171 = vmatpush1.bf16.msra.mxu0 0
  %1172 = vmatprep.subr.bf16.mxu0 0
  %1173 = vmatpush1.bf16.msra.mxu0 0
  %1174 = vmatprep.subr.bf16.mxu0 0
  %1175 = vmatpush1.bf16.msra.mxu0 0
  %1176 = vmatprep.subr.bf16.mxu0 0
  %1177 = vmatpush1.bf16.msra.mxu0 0
  %1178 = vmatprep.subr.bf16.mxu0 0
  %1179 = vmatpush1.bf16.msra.mxu0 0
  %1180 = vmatprep.subr.bf16.mxu0 0
  %1181 = vmatpush1.bf16.msra.mxu0 0
  %1182 = vmatprep.subr.bf16.mxu0 0
  %1183 = vmatpush1.bf16.msra.mxu0 0
  %1184 = vmatprep.subr.bf16.mxu0 0
  %1185 = vmatpush1.bf16.msra.mxu0 0
  %1186 = vmatprep.subr.bf16.mxu0 0
  %1187 = vmatpush1.bf16.msra.mxu0 0
  %1188 = vmatprep.subr.bf16.mxu0 0
  %1189 = vmatpush1.bf16.msra.mxu0 0
  %1190 = vmatprep.subr.bf16.mxu0 0
  %1191 = vmatpush1.bf16.msra.mxu0 0
  %1192 = vmatprep.mubr.bf16.mxu0 0
  %1193 = vmatmul.mubr.bf16.gmra.mrb[0].mxu0 %v918
  %v1194 = vpop.f32.mrb[0].mxu0
  %v1195 = vadd.f32 %v1155, %v1194
  %v1196 = vpop.f32.mrb[0].mxu0
  %v1197 = vpop.f32.mrb[0].mxu0
  %v1198 = vpop.f32.mrb[0].mxu0
  %1199 = vdwg.mxu0
  %v1200 = vpack.c.bf16 %v1195, %v1195
  %v1201 = vld [vmem:[%s3] sm:$0xff]
  %v1202 = vld [vmem:[%s3 + $0x8] sm:$0xff]
  %v1203 = vld [vmem:[%s3 + $0x10] sm:$0xff]
  %v1204 = vld [vmem:[%s3 + $0x18] sm:$0xff]
  %v1205 = vld [vmem:[%s3 + $0x20] sm:$0xff]
  %v1206 = vld [vmem:[%s3 + $0x28] sm:$0xff]
  %v1207 = vld [vmem:[%s3 + $0x30] sm:$0xf]
  %v1208 = vld [vmem:[%s3 + $0x34] sm:$0xff]
  %v1209 = vld [vmem:[%s3 + $0x3c] sm:$0xff]
  %v1210 = vld [vmem:[%s3 + $0x44] sm:$0xff]
  %v1211 = vld [vmem:[%s3 + $0x4c] sm:$0xff]
  %v1212 = vld [vmem:[%s3 + $0x54] sm:$0xff]
  %v1213 = vld [vmem:[%s3 + $0x5c] sm:$0xff]
  %v1214 = vld [vmem:[%s3 + $0x64] sm:$0xf]
  %v1215 = vld [vmem:[%s3 + $0x68] sm:$0xff]
  %v1216 = vld [vmem:[%s3 + $0x70] sm:$0xff]
  %v1217 = vld [vmem:[%s3 + $0x78] sm:$0xff]
  %v1218 = vld [vmem:[%s3 + $0x80] sm:$0xff]
  %v1219 = vld [vmem:[%s3 + $0x88] sm:$0xff]
  %v1220 = vld [vmem:[%s3 + $0x90] sm:$0xff]
  %v1221 = vld [vmem:[%s3 + $0x98] sm:$0xf]
  %v1222 = vld [vmem:[%s3 + $0x9c] sm:$0xff]
  %v1223 = vld [vmem:[%s3 + $0xa4] sm:$0xff]
  %v1224 = vld [vmem:[%s3 + $0xac] sm:$0xff]
  %v1225 = vld [vmem:[%s3 + $0xb4] sm:$0xff]
  %v1226 = vld [vmem:[%s3 + $0xbc] sm:$0xff]
  %v1227 = vld [vmem:[%s3 + $0xc4] sm:$0xff]
  %v1228 = vld [vmem:[%s3 + $0xcc] sm:$0xf]
  %v1229 = vld [vmem:[%s3 + $0xd0] sm:$0xff]
  %v1230 = vld [vmem:[%s3 + $0xd8] sm:$0xff]
  %v1231 = vld [vmem:[%s3 + $0xe0] sm:$0xff]
  %v1232 = vld [vmem:[%s3 + $0xe8] sm:$0xff]
  %v1233 = vld [vmem:[%s3 + $0xf0] sm:$0xff]
  %v1234 = vld [vmem:[%s3 + $0xf8] sm:$0xff]
  %v1235 = vld [vmem:[%s3 + $0x100] sm:$0xf]
  %v1236 = vld [vmem:[%s3 + $0x104] sm:$0xff]
  %v1237 = vld [vmem:[%s3 + $0x10c] sm:$0xff]
  %v1238 = vld [vmem:[%s3 + $0x114] sm:$0xff]
  %v1239 = vld [vmem:[%s3 + $0x11c] sm:$0xff]
  %v1240 = vld [vmem:[%s3 + $0x124] sm:$0xff]
  %v1241 = vld [vmem:[%s3 + $0x12c] sm:$0xff]
  %v1242 = vld [vmem:[%s3 + $0x134] sm:$0xf]
  %v1243 = vld [vmem:[%s3 + $0x138] sm:$0xff]
  %v1244 = vld [vmem:[%s3 + $0x140] sm:$0xff]
  %v1245 = vld [vmem:[%s3 + $0x148] sm:$0xff]
  %v1246 = vld [vmem:[%s3 + $0x150] sm:$0xff]
  %v1247 = vld [vmem:[%s3 + $0x158] sm:$0xff]
  %v1248 = vld [vmem:[%s3 + $0x160] sm:$0xff]
  %v1249 = vld [vmem:[%s3 + $0x168] sm:$0xf]
  %v1250 = vld [vmem:[%s3 + $0x16c] sm:$0xff]
  %v1251 = vld [vmem:[%s3 + $0x174] sm:$0xff]
  %v1252 = vld [vmem:[%s3 + $0x17c] sm:$0xff]
  %v1253 = vld [vmem:[%s3 + $0x184] sm:$0xff]
  %v1254 = vld [vmem:[%s3 + $0x18c] sm:$0xff]
  %v1255 = vld [vmem:[%s3 + $0x194] sm:$0xff]
  %v1256 = vld [vmem:[%s3 + $0x19c] sm:$0xf]
  %v1257 = vld [vmem:[%s3 + $0x1a0] sm:$0xff]
  %v1258 = vld [vmem:[%s3 + $0x1a8] sm:$0xff]
  %v1259 = vld [vmem:[%s3 + $0x1b0] sm:$0xff]
  %v1260 = vld [vmem:[%s3 + $0x1b8] sm:$0xff]
  %v1261 = vld [vmem:[%s3 + $0x1c0] sm:$0xff]
  %v1262 = vld [vmem:[%s3 + $0x1c8] sm:$0xff]
  %v1263 = vld [vmem:[%s3 + $0x1d0] sm:$0xf]
  %v1264 = vld [vmem:[%s3 + $0x1d4] sm:$0xff]
  %v1265 = vld [vmem:[%s3 + $0x1dc] sm:$0xff]
  %v1266 = vld [vmem:[%s3 + $0x1e4] sm:$0xff]
  %v1267 = vld [vmem:[%s3 + $0x1ec] sm:$0xff]
  %v1268 = vld [vmem:[%s3 + $0x1f4] sm:$0xff]
  %v1269 = vld [vmem:[%s3 + $0x1fc] sm:$0xff]
  %v1270 = vld [vmem:[%s3 + $0x204] sm:$0xf]
  %v1271 = vld [vmem:[%s3 + $0x208] sm:$0xff]
  %v1272 = vld [vmem:[%s3 + $0x210] sm:$0xff]
  %v1273 = vld [vmem:[%s3 + $0x218] sm:$0xff]
  %v1274 = vld [vmem:[%s3 + $0x220] sm:$0xff]
  %v1275 = vld [vmem:[%s3 + $0x228] sm:$0xff]
  %v1276 = vld [vmem:[%s3 + $0x230] sm:$0xff]
  %v1277 = vld [vmem:[%s3 + $0x238] sm:$0xf]
  %v1278 = vld [vmem:[%s3 + $0x23c] sm:$0xff]
  %v1279 = vld [vmem:[%s3 + $0x244] sm:$0xff]
  %v1280 = vld [vmem:[%s3 + $0x24c] sm:$0xff]
  %v1281 = vld [vmem:[%s3 + $0x254] sm:$0xff]
  %v1282 = vld [vmem:[%s3 + $0x25c] sm:$0xff]
  %v1283 = vld [vmem:[%s3 + $0x264] sm:$0xff]
  %v1284 = vld [vmem:[%s3 + $0x26c] sm:$0xf]
  %v1285 = vld [vmem:[%s3 + $0x270] sm:$0xff]
  %v1286 = vld [vmem:[%s3 + $0x278] sm:$0xff]
  %v1287 = vld [vmem:[%s3 + $0x280] sm:$0xff]
  %v1288 = vld [vmem:[%s3 + $0x288] sm:$0xff]
  %v1289 = vld [vmem:[%s3 + $0x290] sm:$0xff]
  %v1290 = vld [vmem:[%s3 + $0x298] sm:$0xff]
  %v1291 = vld [vmem:[%s3 + $0x2a0] sm:$0xf]
  %v1292 = vld [vmem:[%s3 + $0x2a4] sm:$0xff]
  %v1293 = vld [vmem:[%s3 + $0x2ac] sm:$0xff]
  %v1294 = vld [vmem:[%s3 + $0x2b4] sm:$0xff]
  %v1295 = vld [vmem:[%s3 + $0x2bc] sm:$0xff]
  %v1296 = vld [vmem:[%s3 + $0x2c4] sm:$0xff]
  %v1297 = vld [vmem:[%s3 + $0x2cc] sm:$0xff]
  %v1298 = vld [vmem:[%s3 + $0x2d4] sm:$0xf]
  %v1299 = vld [vmem:[%s3 + $0x2d8] sm:$0xff]
  %v1300 = vld [vmem:[%s3 + $0x2e0] sm:$0xff]
  %v1301 = vld [vmem:[%s3 + $0x2e8] sm:$0xff]
  %v1302 = vld [vmem:[%s3 + $0x2f0] sm:$0xff]
  %v1303 = vld [vmem:[%s3 + $0x2f8] sm:$0xff]
  %v1304 = vld [vmem:[%s3 + $0x300] sm:$0xff]
  %v1305 = vld [vmem:[%s3 + $0x308] sm:$0xf]
  %v1306 = vld [vmem:[%s3 + $0x30c] sm:$0xff]
  %v1307 = vld [vmem:[%s3 + $0x314] sm:$0xff]
  %v1308 = vld [vmem:[%s3 + $0x31c] sm:$0xff]
  %v1309 = vld [vmem:[%s3 + $0x324] sm:$0xff]
  %v1310 = vld [vmem:[%s3 + $0x32c] sm:$0xff]
  %v1311 = vld [vmem:[%s3 + $0x334] sm:$0xff]
  %v1312 = vld [vmem:[%s3 + $0x33c] sm:$0xf]
  %v1313 = vld [vmem:[%s4] sm:$0xff]
  %v1314 = vld [vmem:[%s4 + $0x8] sm:$0x1f]
  %v1317 = vlaneseq
  %v1318 = vshrl.u32 %v1317, 7
  %v1319 = vsub.s32 0, %v1318
  %v1320 = vrot.slane %v1313, %v1319
  %v1321 = vlaneseq
  %v1322 = vshrl.u32 %v1321, 7
  %v1323 = vsub.s32 1, %v1322
  %v1324 = vrot.slane %v1313, %v1323
  %v1325 = vlaneseq
  %v1326 = vshrl.u32 %v1325, 7
  %v1327 = vsub.s32 2, %v1326
  %v1328 = vrot.slane %v1313, %v1327
  %v1329 = vlaneseq
  %v1330 = vshrl.u32 %v1329, 7
  %v1331 = vsub.s32 3, %v1330
  %v1332 = vrot.slane %v1313, %v1331
  %v1333 = vlaneseq
  %v1334 = vshrl.u32 %v1333, 7
  %v1335 = vsub.s32 4, %v1334
  %v1336 = vrot.slane %v1313, %v1335
  %v1337 = vlaneseq
  %v1338 = vshrl.u32 %v1337, 7
  %v1339 = vsub.s32 5, %v1338
  %v1340 = vrot.slane %v1313, %v1339
  %v1341 = vlaneseq
  %v1342 = vshrl.u32 %v1341, 7
  %v1343 = vsub.s32 6, %v1342
  %v1344 = vrot.slane %v1313, %v1343
  %v1345 = vlaneseq
  %v1346 = vshrl.u32 %v1345, 7
  %v1347 = vsub.s32 7, %v1346
  %v1348 = vrot.slane %v1313, %v1347
  %v1349 = vlaneseq
  %v1350 = vshrl.u32 %v1349, 7
  %v1351 = vsub.s32 0, %v1350
  %v1352 = vrot.slane %v1314, %v1351
  %v1353 = vlaneseq
  %v1354 = vshrl.u32 %v1353, 7
  %v1355 = vsub.s32 1, %v1354
  %v1356 = vrot.slane %v1314, %v1355
  %v1357 = vlaneseq
  %v1358 = vshrl.u32 %v1357, 7
  %v1359 = vsub.s32 2, %v1358
  %v1360 = vrot.slane %v1314, %v1359
  %v1361 = vlaneseq
  %v1362 = vshrl.u32 %v1361, 7
  %v1363 = vsub.s32 3, %v1362
  %v1364 = vrot.slane %v1314, %v1363
  %v1365 = vlaneseq
  %v1366 = vshrl.u32 %v1365, 7
  %v1367 = vsub.s32 4, %v1366
  %v1368 = vrot.slane %v1314, %v1367
  %v1494 = vunpack.c.l.b16 %v1201
  %v1495 = vunpack.c.h.b16 %v1201
  %v1496 = vunpack.c.l.b16 %v1202
  %v1497 = vunpack.c.h.b16 %v1202
  %v1498 = vunpack.c.l.b16 %v1203
  %v1499 = vunpack.c.h.b16 %v1203
  %v1500 = vunpack.c.l.b16 %v1204
  %v1501 = vunpack.c.h.b16 %v1204
  %v1502 = vunpack.c.l.b16 %v1205
  %v1503 = vunpack.c.h.b16 %v1205
  %v1504 = vunpack.c.l.b16 %v1206
  %v1505 = vunpack.c.h.b16 %v1206
  %v1506 = vunpack.c.l.b16 %v1207
  %v1507 = vunpack.c.l.b16 %v1208
  %v1508 = vunpack.c.h.b16 %v1208
  %v1509 = vunpack.c.l.b16 %v1209
  %v1510 = vunpack.c.h.b16 %v1209
  %v1511 = vunpack.c.l.b16 %v1210
  %v1512 = vunpack.c.h.b16 %v1210
  %v1513 = vunpack.c.l.b16 %v1211
  %v1514 = vunpack.c.h.b16 %v1211
  %v1515 = vunpack.c.l.b16 %v1212
  %v1516 = vunpack.c.h.b16 %v1212
  %v1517 = vunpack.c.l.b16 %v1213
  %v1518 = vunpack.c.h.b16 %v1213
  %v1519 = vunpack.c.l.b16 %v1214
  %v1520 = vunpack.c.l.b16 %v1215
  %v1521 = vunpack.c.h.b16 %v1215
  %v1522 = vunpack.c.l.b16 %v1216
  %v1523 = vunpack.c.h.b16 %v1216
  %v1524 = vunpack.c.l.b16 %v1217
  %v1525 = vunpack.c.h.b16 %v1217
  %v1526 = vunpack.c.l.b16 %v1218
  %v1527 = vunpack.c.h.b16 %v1218
  %v1528 = vunpack.c.l.b16 %v1219
  %v1529 = vunpack.c.h.b16 %v1219
  %v1530 = vunpack.c.l.b16 %v1220
  %v1531 = vunpack.c.h.b16 %v1220
  %v1532 = vunpack.c.l.b16 %v1221
  %v1533 = vunpack.c.l.b16 %v1222
  %v1534 = vunpack.c.h.b16 %v1222
  %v1535 = vunpack.c.l.b16 %v1223
  %v1536 = vunpack.c.h.b16 %v1223
  %v1537 = vunpack.c.l.b16 %v1224
  %v1538 = vunpack.c.h.b16 %v1224
  %v1539 = vunpack.c.l.b16 %v1225
  %v1540 = vunpack.c.h.b16 %v1225
  %v1541 = vunpack.c.l.b16 %v1226
  %v1542 = vunpack.c.h.b16 %v1226
  %v1543 = vunpack.c.l.b16 %v1227
  %v1544 = vunpack.c.h.b16 %v1227
  %v1545 = vunpack.c.l.b16 %v1228
  %v1546 = vunpack.c.l.b16 %v1229
  %v1547 = vunpack.c.h.b16 %v1229
  %v1548 = vunpack.c.l.b16 %v1230
  %v1549 = vunpack.c.h.b16 %v1230
  %v1550 = vunpack.c.l.b16 %v1231
  %v1551 = vunpack.c.h.b16 %v1231
  %v1552 = vunpack.c.l.b16 %v1232
  %v1553 = vunpack.c.h.b16 %v1232
  %v1554 = vunpack.c.l.b16 %v1233
  %v1555 = vunpack.c.h.b16 %v1233
  %v1556 = vunpack.c.l.b16 %v1234
  %v1557 = vunpack.c.h.b16 %v1234
  %v1558 = vunpack.c.l.b16 %v1235
  %v1559 = vunpack.c.l.b16 %v1236
  %v1560 = vunpack.c.h.b16 %v1236
  %v1561 = vunpack.c.l.b16 %v1237
  %v1562 = vunpack.c.h.b16 %v1237
  %v1563 = vunpack.c.l.b16 %v1238
  %v1564 = vunpack.c.h.b16 %v1238
  %v1565 = vunpack.c.l.b16 %v1239
  %v1566 = vunpack.c.h.b16 %v1239
  %v1567 = vunpack.c.l.b16 %v1240
  %v1568 = vunpack.c.h.b16 %v1240
  %v1569 = vunpack.c.l.b16 %v1241
  %v1570 = vunpack.c.h.b16 %v1241
  %v1571 = vunpack.c.l.b16 %v1242
  %v1572 = vunpack.c.l.b16 %v1243
  %v1573 = vunpack.c.h.b16 %v1243
  %v1574 = vunpack.c.l.b16 %v1244
  %v1575 = vunpack.c.h.b16 %v1244
  %v1576 = vunpack.c.l.b16 %v1245
  %v1577 = vunpack.c.h.b16 %v1245
  %v1578 = vunpack.c.l.b16 %v1246
  %v1579 = vunpack.c.h.b16 %v1246
  %v1580 = vunpack.c.l.b16 %v1247
  %v1581 = vunpack.c.h.b16 %v1247
  %v1582 = vunpack.c.l.b16 %v1248
  %v1583 = vunpack.c.h.b16 %v1248
  %v1584 = vunpack.c.l.b16 %v1249
  %v1585 = vunpack.c.l.b16 %v1250
  %v1586 = vunpack.c.h.b16 %v1250
  %v1587 = vunpack.c.l.b16 %v1251
  %v1588 = vunpack.c.h.b16 %v1251
  %v1589 = vunpack.c.l.b16 %v1252
  %v1590 = vunpack.c.h.b16 %v1252
  %v1591 = vunpack.c.l.b16 %v1253
  %v1592 = vunpack.c.h.b16 %v1253
  %v1593 = vunpack.c.l.b16 %v1254
  %v1594 = vunpack.c.h.b16 %v1254
  %v1595 = vunpack.c.l.b16 %v1255
  %v1596 = vunpack.c.h.b16 %v1255
  %v1597 = vunpack.c.l.b16 %v1256
  %v1598 = vunpack.c.l.b16 %v1257
  %v1599 = vunpack.c.h.b16 %v1257
  %v1600 = vunpack.c.l.b16 %v1258
  %v1601 = vunpack.c.h.b16 %v1258
  %v1602 = vunpack.c.l.b16 %v1259
  %v1603 = vunpack.c.h.b16 %v1259
  %v1604 = vunpack.c.l.b16 %v1260
  %v1605 = vunpack.c.h.b16 %v1260
  %v1606 = vunpack.c.l.b16 %v1261
  %v1607 = vunpack.c.h.b16 %v1261
  %v1608 = vunpack.c.l.b16 %v1262
  %v1609 = vunpack.c.h.b16 %v1262
  %v1610 = vunpack.c.l.b16 %v1263
  %v1611 = vunpack.c.l.b16 %v1264
  %v1612 = vunpack.c.h.b16 %v1264
  %v1613 = vunpack.c.l.b16 %v1265
  %v1614 = vunpack.c.h.b16 %v1265
  %v1615 = vunpack.c.l.b16 %v1266
  %v1616 = vunpack.c.h.b16 %v1266
  %v1617 = vunpack.c.l.b16 %v1267
  %v1618 = vunpack.c.h.b16 %v1267
  %v1619 = vunpack.c.l.b16 %v1268
  %v1620 = vunpack.c.h.b16 %v1268
  %v1621 = vunpack.c.l.b16 %v1269
  %v1622 = vunpack.c.h.b16 %v1269
  %v1623 = vunpack.c.l.b16 %v1270
  %v1624 = vunpack.c.l.b16 %v1271
  %v1625 = vunpack.c.h.b16 %v1271
  %v1626 = vunpack.c.l.b16 %v1272
  %v1627 = vunpack.c.h.b16 %v1272
  %v1628 = vunpack.c.l.b16 %v1273
  %v1629 = vunpack.c.h.b16 %v1273
  %v1630 = vunpack.c.l.b16 %v1274
  %v1631 = vunpack.c.h.b16 %v1274
  %v1632 = vunpack.c.l.b16 %v1275
  %v1633 = vunpack.c.h.b16 %v1275
  %v1634 = vunpack.c.l.b16 %v1276
  %v1635 = vunpack.c.h.b16 %v1276
  %v1636 = vunpack.c.l.b16 %v1277
  %v1637 = vunpack.c.l.b16 %v1278
  %v1638 = vunpack.c.h.b16 %v1278
  %v1639 = vunpack.c.l.b16 %v1279
  %v1640 = vunpack.c.h.b16 %v1279
  %v1641 = vunpack.c.l.b16 %v1280
  %v1642 = vunpack.c.h.b16 %v1280
  %v1643 = vunpack.c.l.b16 %v1281
  %v1644 = vunpack.c.h.b16 %v1281
  %v1645 = vunpack.c.l.b16 %v1282
  %v1646 = vunpack.c.h.b16 %v1282
  %v1647 = vunpack.c.l.b16 %v1283
  %v1648 = vunpack.c.h.b16 %v1283
  %v1649 = vunpack.c.l.b16 %v1284
  %v1650 = vunpack.c.l.b16 %v1285
  %v1651 = vunpack.c.h.b16 %v1285
  %v1652 = vunpack.c.l.b16 %v1286
  %v1653 = vunpack.c.h.b16 %v1286
  %v1654 = vunpack.c.l.b16 %v1287
  %v1655 = vunpack.c.h.b16 %v1287
  %v1656 = vunpack.c.l.b16 %v1288
  %v1657 = vunpack.c.h.b16 %v1288
  %v1658 = vunpack.c.l.b16 %v1289
  %v1659 = vunpack.c.h.b16 %v1289
  %v1660 = vunpack.c.l.b16 %v1290
  %v1661 = vunpack.c.h.b16 %v1290
  %v1662 = vunpack.c.l.b16 %v1291
  %v1663 = vunpack.c.l.b16 %v1292
  %v1664 = vunpack.c.h.b16 %v1292
  %v1665 = vunpack.c.l.b16 %v1293
  %v1666 = vunpack.c.h.b16 %v1293
  %v1667 = vunpack.c.l.b16 %v1294
  %v1668 = vunpack.c.h.b16 %v1294
  %v1669 = vunpack.c.l.b16 %v1295
  %v1670 = vunpack.c.h.b16 %v1295
  %v1671 = vunpack.c.l.b16 %v1296
  %v1672 = vunpack.c.h.b16 %v1296
  %v1673 = vunpack.c.l.b16 %v1297
  %v1674 = vunpack.c.h.b16 %v1297
  %v1675 = vunpack.c.l.b16 %v1298
  %v1676 = vunpack.c.l.b16 %v1299
  %v1677 = vunpack.c.h.b16 %v1299
  %v1678 = vunpack.c.l.b16 %v1300
  %v1679 = vunpack.c.h.b16 %v1300
  %v1680 = vunpack.c.l.b16 %v1301
  %v1681 = vunpack.c.h.b16 %v1301
  %v1682 = vunpack.c.l.b16 %v1302
  %v1683 = vunpack.c.h.b16 %v1302
  %v1684 = vunpack.c.l.b16 %v1303
  %v1685 = vunpack.c.h.b16 %v1303
  %v1686 = vunpack.c.l.b16 %v1304
  %v1687 = vunpack.c.h.b16 %v1304
  %v1688 = vunpack.c.l.b16 %v1305
  %v1689 = vunpack.c.l.b16 %v1306
  %v1690 = vunpack.c.h.b16 %v1306
  %v1691 = vunpack.c.l.b16 %v1307
  %v1692 = vunpack.c.h.b16 %v1307
  %v1693 = vunpack.c.l.b16 %v1308
  %v1694 = vunpack.c.h.b16 %v1308
  %v1695 = vunpack.c.l.b16 %v1309
  %v1696 = vunpack.c.h.b16 %v1309
  %v1697 = vunpack.c.l.b16 %v1310
  %v1698 = vunpack.c.h.b16 %v1310
  %v1699 = vunpack.c.l.b16 %v1311
  %v1700 = vunpack.c.h.b16 %v1311
  %v1701 = vunpack.c.l.b16 %v1312
  %v1702 = vpack.c.b16 %v1507, %v1494
  %v1703 = vpack.c.b16 %v1508, %v1495
  %v1704 = vpack.c.b16 %v1509, %v1496
  %v1705 = vpack.c.b16 %v1510, %v1497
  %v1706 = vpack.c.b16 %v1511, %v1498
  %v1707 = vpack.c.b16 %v1512, %v1499
  %v1708 = vpack.c.b16 %v1513, %v1500
  %v1709 = vpack.c.b16 %v1514, %v1501
  %v1710 = vpack.c.b16 %v1515, %v1502
  %v1711 = vpack.c.b16 %v1516, %v1503
  %v1712 = vpack.c.b16 %v1517, %v1504
  %v1713 = vpack.c.b16 %v1518, %v1505
  %v1714 = vpack.c.b16 %v1519, %v1506
  %v1715 = vpack.c.b16 %v1533, %v1520
  %v1716 = vpack.c.b16 %v1534, %v1521
  %v1717 = vpack.c.b16 %v1535, %v1522
  %v1718 = vpack.c.b16 %v1536, %v1523
  %v1719 = vpack.c.b16 %v1537, %v1524
  %v1720 = vpack.c.b16 %v1538, %v1525
  %v1721 = vpack.c.b16 %v1539, %v1526
  %v1722 = vpack.c.b16 %v1540, %v1527
  %v1723 = vpack.c.b16 %v1541, %v1528
  %v1724 = vpack.c.b16 %v1542, %v1529
  %v1725 = vpack.c.b16 %v1543, %v1530
  %v1726 = vpack.c.b16 %v1544, %v1531
  %v1727 = vpack.c.b16 %v1545, %v1532
  %v1728 = vpack.c.b16 %v1559, %v1546
  %v1729 = vpack.c.b16 %v1560, %v1547
  %v1730 = vpack.c.b16 %v1561, %v1548
  %v1731 = vpack.c.b16 %v1562, %v1549
  %v1732 = vpack.c.b16 %v1563, %v1550
  %v1733 = vpack.c.b16 %v1564, %v1551
  %v1734 = vpack.c.b16 %v1565, %v1552
  %v1735 = vpack.c.b16 %v1566, %v1553
  %v1736 = vpack.c.b16 %v1567, %v1554
  %v1737 = vpack.c.b16 %v1568, %v1555
  %v1738 = vpack.c.b16 %v1569, %v1556
  %v1739 = vpack.c.b16 %v1570, %v1557
  %v1740 = vpack.c.b16 %v1571, %v1558
  %v1741 = vpack.c.b16 %v1585, %v1572
  %v1742 = vpack.c.b16 %v1586, %v1573
  %v1743 = vpack.c.b16 %v1587, %v1574
  %v1744 = vpack.c.b16 %v1588, %v1575
  %v1745 = vpack.c.b16 %v1589, %v1576
  %v1746 = vpack.c.b16 %v1590, %v1577
  %v1747 = vpack.c.b16 %v1591, %v1578
  %v1748 = vpack.c.b16 %v1592, %v1579
  %v1749 = vpack.c.b16 %v1593, %v1580
  %v1750 = vpack.c.b16 %v1594, %v1581
  %v1751 = vpack.c.b16 %v1595, %v1582
  %v1752 = vpack.c.b16 %v1596, %v1583
  %v1753 = vpack.c.b16 %v1597, %v1584
  %v1754 = vpack.c.b16 %v1611, %v1598
  %v1755 = vpack.c.b16 %v1612, %v1599
  %v1756 = vpack.c.b16 %v1613, %v1600
  %v1757 = vpack.c.b16 %v1614, %v1601
  %v1758 = vpack.c.b16 %v1615, %v1602
  %v1759 = vpack.c.b16 %v1616, %v1603
  %v1760 = vpack.c.b16 %v1617, %v1604
  %v1761 = vpack.c.b16 %v1618, %v1605
  %v1762 = vpack.c.b16 %v1619, %v1606
  %v1763 = vpack.c.b16 %v1620, %v1607
  %v1764 = vpack.c.b16 %v1621, %v1608
  %v1765 = vpack.c.b16 %v1622, %v1609
  %v1766 = vpack.c.b16 %v1623, %v1610
  %v1767 = vpack.c.b16 %v1637, %v1624
  %v1768 = vpack.c.b16 %v1638, %v1625
  %v1769 = vpack.c.b16 %v1639, %v1626
  %v1770 = vpack.c.b16 %v1640, %v1627
  %v1771 = vpack.c.b16 %v1641, %v1628
  %v1772 = vpack.c.b16 %v1642, %v1629
  %v1773 = vpack.c.b16 %v1643, %v1630
  %v1774 = vpack.c.b16 %v1644, %v1631
  %v1775 = vpack.c.b16 %v1645, %v1632
  %v1776 = vpack.c.b16 %v1646, %v1633
  %v1777 = vpack.c.b16 %v1647, %v1634
  %v1778 = vpack.c.b16 %v1648, %v1635
  %v1779 = vpack.c.b16 %v1649, %v1636
  %v1780 = vpack.c.b16 %v1663, %v1650
  %v1781 = vpack.c.b16 %v1664, %v1651
  %v1782 = vpack.c.b16 %v1665, %v1652
  %v1783 = vpack.c.b16 %v1666, %v1653
  %v1784 = vpack.c.b16 %v1667, %v1654
  %v1785 = vpack.c.b16 %v1668, %v1655
  %v1786 = vpack.c.b16 %v1669, %v1656
  %v1787 = vpack.c.b16 %v1670, %v1657
  %v1788 = vpack.c.b16 %v1671, %v1658
  %v1789 = vpack.c.b16 %v1672, %v1659
  %v1790 = vpack.c.b16 %v1673, %v1660
  %v1791 = vpack.c.b16 %v1674, %v1661
  %v1792 = vpack.c.b16 %v1675, %v1662
  %v1793 = vpack.c.b16 %v1689, %v1676
  %v1794 = vpack.c.b16 %v1690, %v1677
  %v1795 = vpack.c.b16 %v1691, %v1678
  %v1796 = vpack.c.b16 %v1692, %v1679
  %v1797 = vpack.c.b16 %v1693, %v1680
  %v1798 = vpack.c.b16 %v1694, %v1681
  %v1799 = vpack.c.b16 %v1695, %v1682
  %v1800 = vpack.c.b16 %v1696, %v1683
  %v1801 = vpack.c.b16 %v1697, %v1684
  %v1802 = vpack.c.b16 %v1698, %v1685
  %v1803 = vpack.c.b16 %v1699, %v1686
  %v1804 = vpack.c.b16 %v1700, %v1687
  %v1805 = vpack.c.b16 %v1701, %v1688
  %1910 = vmatprep.subr.bf16.mxu0 %v1703
  %1911 = vmatpush1.bf16.msra.mxu0 %v1702
  %1912 = vmatprep.subr.bf16.mxu0 %v1716
  %1913 = vmatpush1.bf16.msra.mxu0 %v1715
  %1914 = vmatprep.subr.bf16.mxu0 %v1729
  %1915 = vmatpush1.bf16.msra.mxu0 %v1728
  %1916 = vmatprep.subr.bf16.mxu0 %v1742
  %1917 = vmatpush1.bf16.msra.mxu0 %v1741
  %1918 = vmatprep.subr.bf16.mxu0 %v1755
  %1919 = vmatpush1.bf16.msra.mxu0 %v1754
  %1920 = vmatprep.subr.bf16.mxu0 %v1768
  %1921 = vmatpush1.bf16.msra.mxu0 %v1767
  %1922 = vmatprep.subr.bf16.mxu0 %v1781
  %1923 = vmatpush1.bf16.msra.mxu0 %v1780
  %1924 = vmatprep.subr.bf16.mxu0 %v1794
  %1925 = vmatpush1.bf16.msra.mxu0 %v1793
  %1926 = vmatprep.subr.bf16.mxu0 0
  %1927 = vmatpush1.bf16.msra.mxu0 0
  %1928 = vmatprep.subr.bf16.mxu0 0
  %1929 = vmatpush1.bf16.msra.mxu0 0
  %1930 = vmatprep.subr.bf16.mxu0 0
  %1931 = vmatpush1.bf16.msra.mxu0 0
  %1932 = vmatprep.subr.bf16.mxu0 0
  %1933 = vmatpush1.bf16.msra.mxu0 0
  %1934 = vmatprep.subr.bf16.mxu0 0
  %1935 = vmatpush1.bf16.msra.mxu0 0
  %1936 = vmatprep.subr.bf16.mxu0 0
  %1937 = vmatpush1.bf16.msra.mxu0 0
  %1938 = vmatprep.subr.bf16.mxu0 0
  %1939 = vmatpush1.bf16.msra.mxu0 0
  %1940 = vmatprep.subr.bf16.mxu0 0
  %1941 = vmatpush1.bf16.msra.mxu0 0
  %1942 = vmatprep.mubr.bf16.mxu0 0
  %1943 = vmatmul.mubr.bf16.gmra.mrb[0].mxu0 %v1200
  %v1944 = vpop.f32.mrb[0].mxu0
  %v1945 = vadd.f32 %v1320, %v1944
  %v1946 = vpop.f32.mrb[0].mxu0
  %v1947 = vadd.f32 %v1324, %v1946
  %v1948 = vpop.f32.mrb[0].mxu0
  %v1949 = vpop.f32.mrb[0].mxu0
  %1950 = vdwg.mxu0
  %1951 = vmatprep.subr.bf16.mxu0 %v1705
  %1952 = vmatpush1.bf16.msra.mxu0 %v1704
  %1953 = vmatprep.subr.bf16.mxu0 %v1718
  %1954 = vmatpush1.bf16.msra.mxu0 %v1717
  %1955 = vmatprep.subr.bf16.mxu0 %v1731
  %1956 = vmatpush1.bf16.msra.mxu0 %v1730
  %1957 = vmatprep.subr.bf16.mxu0 %v1744
  %1958 = vmatpush1.bf16.msra.mxu0 %v1743
  %1959 = vmatprep.subr.bf16.mxu0 %v1757
  %1960 = vmatpush1.bf16.msra.mxu0 %v1756
  %1961 = vmatprep.subr.bf16.mxu0 %v1770
  %1962 = vmatpush1.bf16.msra.mxu0 %v1769
  %1963 = vmatprep.subr.bf16.mxu0 %v1783
  %1964 = vmatpush1.bf16.msra.mxu0 %v1782
  %1965 = vmatprep.subr.bf16.mxu0 %v1796
  %1966 = vmatpush1.bf16.msra.mxu0 %v1795
  %1967 = vmatprep.subr.bf16.mxu0 0
  %1968 = vmatpush1.bf16.msra.mxu0 0
  %1969 = vmatprep.subr.bf16.mxu0 0
  %1970 = vmatpush1.bf16.msra.mxu0 0
  %1971 = vmatprep.subr.bf16.mxu0 0
  %1972 = vmatpush1.bf16.msra.mxu0 0
  %1973 = vmatprep.subr.bf16.mxu0 0
  %1974 = vmatpush1.bf16.msra.mxu0 0
  %1975 = vmatprep.subr.bf16.mxu0 0
  %1976 = vmatpush1.bf16.msra.mxu0 0
  %1977 = vmatprep.subr.bf16.mxu0 0
  %1978 = vmatpush1.bf16.msra.mxu0 0
  %1979 = vmatprep.subr.bf16.mxu0 0
  %1980 = vmatpush1.bf16.msra.mxu0 0
  %1981 = vmatprep.subr.bf16.mxu0 0
  %1982 = vmatpush1.bf16.msra.mxu0 0
  %1983 = vmatprep.mubr.bf16.mxu0 0
  %1984 = vmatmul.mubr.bf16.gmra.mrb[0].mxu0 %v1200
  %v1985 = vpop.f32.mrb[0].mxu0
  %v1986 = vadd.f32 %v1328, %v1985
  %v1987 = vpop.f32.mrb[0].mxu0
  %v1988 = vadd.f32 %v1332, %v1987
  %v1989 = vpop.f32.mrb[0].mxu0
  %v1990 = vpop.f32.mrb[0].mxu0
  %1991 = vdwg.mxu0
  %1992 = vmatprep.subr.bf16.mxu0 %v1707
  %1993 = vmatpush1.bf16.msra.mxu0 %v1706
  %1994 = vmatprep.subr.bf16.mxu0 %v1720
  %1995 = vmatpush1.bf16.msra.mxu0 %v1719
  %1996 = vmatprep.subr.bf16.mxu0 %v1733
  %1997 = vmatpush1.bf16.msra.mxu0 %v1732
  %1998 = vmatprep.subr.bf16.mxu0 %v1746
  %1999 = vmatpush1.bf16.msra.mxu0 %v1745
  %2000 = vmatprep.subr.bf16.mxu0 %v1759
  %2001 = vmatpush1.bf16.msra.mxu0 %v1758
  %2002 = vmatprep.subr.bf16.mxu0 %v1772
  %2003 = vmatpush1.bf16.msra.mxu0 %v1771
  %2004 = vmatprep.subr.bf16.mxu0 %v1785
  %2005 = vmatpush1.bf16.msra.mxu0 %v1784
  %2006 = vmatprep.subr.bf16.mxu0 %v1798
  %2007 = vmatpush1.bf16.msra.mxu0 %v1797
  %2008 = vmatprep.subr.bf16.mxu0 0
  %2009 = vmatpush1.bf16.msra.mxu0 0
  %2010 = vmatprep.subr.bf16.mxu0 0
  %2011 = vmatpush1.bf16.msra.mxu0 0
  %2012 = vmatprep.subr.bf16.mxu0 0
  %2013 = vmatpush1.bf16.msra.mxu0 0
  %2014 = vmatprep.subr.bf16.mxu0 0
  %2015 = vmatpush1.bf16.msra.mxu0 0
  %2016 = vmatprep.subr.bf16.mxu0 0
  %2017 = vmatpush1.bf16.msra.mxu0 0
  %2018 = vmatprep.subr.bf16.mxu0 0
  %2019 = vmatpush1.bf16.msra.mxu0 0
  %2020 = vmatprep.subr.bf16.mxu0 0
  %2021 = vmatpush1.bf16.msra.mxu0 0
  %2022 = vmatprep.subr.bf16.mxu0 0
  %2023 = vmatpush1.bf16.msra.mxu0 0
  %2024 = vmatprep.mubr.bf16.mxu0 0
  %2025 = vmatmul.mubr.bf16.gmra.mrb[0].mxu0 %v1200
  %v2026 = vpop.f32.mrb[0].mxu0
  %v2027 = vadd.f32 %v1336, %v2026
  %v2028 = vpop.f32.mrb[0].mxu0
  %v2029 = vadd.f32 %v1340, %v2028
  %v2030 = vpop.f32.mrb[0].mxu0
  %v2031 = vpop.f32.mrb[0].mxu0
  %2032 = vdwg.mxu0
  %2033 = vmatprep.subr.bf16.mxu0 %v1709
  %2034 = vmatpush1.bf16.msra.mxu0 %v1708
  %2035 = vmatprep.subr.bf16.mxu0 %v1722
  %2036 = vmatpush1.bf16.msra.mxu0 %v1721
  %2037 = vmatprep.subr.bf16.mxu0 %v1735
  %2038 = vmatpush1.bf16.msra.mxu0 %v1734
  %2039 = vmatprep.subr.bf16.mxu0 %v1748
  %2040 = vmatpush1.bf16.msra.mxu0 %v1747
  %2041 = vmatprep.subr.bf16.mxu0 %v1761
  %2042 = vmatpush1.bf16.msra.mxu0 %v1760
  %2043 = vmatprep.subr.bf16.mxu0 %v1774
  %2044 = vmatpush1.bf16.msra.mxu0 %v1773
  %2045 = vmatprep.subr.bf16.mxu0 %v1787
  %2046 = vmatpush1.bf16.msra.mxu0 %v1786
  %2047 = vmatprep.subr.bf16.mxu0 %v1800
  %2048 = vmatpush1.bf16.msra.mxu0 %v1799
  %2049 = vmatprep.subr.bf16.mxu0 0
  %2050 = vmatpush1.bf16.msra.mxu0 0
  %2051 = vmatprep.subr.bf16.mxu0 0
  %2052 = vmatpush1.bf16.msra.mxu0 0
  %2053 = vmatprep.subr.bf16.mxu0 0
  %2054 = vmatpush1.bf16.msra.mxu0 0
  %2055 = vmatprep.subr.bf16.mxu0 0
  %2056 = vmatpush1.bf16.msra.mxu0 0
  %2057 = vmatprep.subr.bf16.mxu0 0
  %2058 = vmatpush1.bf16.msra.mxu0 0
  %2059 = vmatprep.subr.bf16.mxu0 0
  %2060 = vmatpush1.bf16.msra.mxu0 0
  %2061 = vmatprep.subr.bf16.mxu0 0
  %2062 = vmatpush1.bf16.msra.mxu0 0
  %2063 = vmatprep.subr.bf16.mxu0 0
  %2064 = vmatpush1.bf16.msra.mxu0 0
  %2065 = vmatprep.mubr.bf16.mxu0 0
  %2066 = vmatmul.mubr.bf16.gmra.mrb[0].mxu0 %v1200
  %v2067 = vpop.f32.mrb[0].mxu0
  %v2068 = vadd.f32 %v1344, %v2067
  %v2069 = vpop.f32.mrb[0].mxu0
  %v2070 = vadd.f32 %v1348, %v2069
  %v2071 = vpop.f32.mrb[0].mxu0
  %v2072 = vpop.f32.mrb[0].mxu0
  %2073 = vdwg.mxu0
  %2074 = vmatprep.subr.bf16.mxu0 %v1711
  %2075 = vmatpush1.bf16.msra.mxu0 %v1710
  %2076 = vmatprep.subr.bf16.mxu0 %v1724
  %2077 = vmatpush1.bf16.msra.mxu0 %v1723
  %2078 = vmatprep.subr.bf16.mxu0 %v1737
  %2079 = vmatpush1.bf16.msra.mxu0 %v1736
  %2080 = vmatprep.subr.bf16.mxu0 %v1750
  %2081 = vmatpush1.bf16.msra.mxu0 %v1749
  %2082 = vmatprep.subr.bf16.mxu0 %v1763
  %2083 = vmatpush1.bf16.msra.mxu0 %v1762
  %2084 = vmatprep.subr.bf16.mxu0 %v1776
  %2085 = vmatpush1.bf16.msra.mxu0 %v1775
  %2086 = vmatprep.subr.bf16.mxu0 %v1789
  %2087 = vmatpush1.bf16.msra.mxu0 %v1788
  %2088 = vmatprep.subr.bf16.mxu0 %v1802
  %2089 = vmatpush1.bf16.msra.mxu0 %v1801
  %2090 = vmatprep.subr.bf16.mxu0 0
  %2091 = vmatpush1.bf16.msra.mxu0 0
  %2092 = vmatprep.subr.bf16.mxu0 0
  %2093 = vmatpush1.bf16.msra.mxu0 0
  %2094 = vmatprep.subr.bf16.mxu0 0
  %2095 = vmatpush1.bf16.msra.mxu0 0
  %2096 = vmatprep.subr.bf16.mxu0 0
  %2097 = vmatpush1.bf16.msra.mxu0 0
  %2098 = vmatprep.subr.bf16.mxu0 0
  %2099 = vmatpush1.bf16.msra.mxu0 0
  %2100 = vmatprep.subr.bf16.mxu0 0
  %2101 = vmatpush1.bf16.msra.mxu0 0
  %2102 = vmatprep.subr.bf16.mxu0 0
  %2103 = vmatpush1.bf16.msra.mxu0 0
  %2104 = vmatprep.subr.bf16.mxu0 0
  %2105 = vmatpush1.bf16.msra.mxu0 0
  %2106 = vmatprep.mubr.bf16.mxu0 0
  %2107 = vmatmul.mubr.bf16.gmra.mrb[0].mxu0 %v1200
  %v2108 = vpop.f32.mrb[0].mxu0
  %v2109 = vadd.f32 %v1352, %v2108
  %v2110 = vpop.f32.mrb[0].mxu0
  %v2111 = vadd.f32 %v1356, %v2110
  %v2112 = vpop.f32.mrb[0].mxu0
  %v2113 = vpop.f32.mrb[0].mxu0
  %2114 = vdwg.mxu0
  %2115 = vmatprep.subr.bf16.mxu0 %v1713
  %2116 = vmatpush1.bf16.msra.mxu0 %v1712
  %2117 = vmatprep.subr.bf16.mxu0 %v1726
  %2118 = vmatpush1.bf16.msra.mxu0 %v1725
  %2119 = vmatprep.subr.bf16.mxu0 %v1739
  %2120 = vmatpush1.bf16.msra.mxu0 %v1738
  %2121 = vmatprep.subr.bf16.mxu0 %v1752
  %2122 = vmatpush1.bf16.msra.mxu0 %v1751
  %2123 = vmatprep.subr.bf16.mxu0 %v1765
  %2124 = vmatpush1.bf16.msra.mxu0 %v1764
  %2125 = vmatprep.subr.bf16.mxu0 %v1778
  %2126 = vmatpush1.bf16.msra.mxu0 %v1777
  %2127 = vmatprep.subr.bf16.mxu0 %v1791
  %2128 = vmatpush1.bf16.msra.mxu0 %v1790
  %2129 = vmatprep.subr.bf16.mxu0 %v1804
  %2130 = vmatpush1.bf16.msra.mxu0 %v1803
  %2131 = vmatprep.subr.bf16.mxu0 0
  %2132 = vmatpush1.bf16.msra.mxu0 0
  %2133 = vmatprep.subr.bf16.mxu0 0
  %2134 = vmatpush1.bf16.msra.mxu0 0
  %2135 = vmatprep.subr.bf16.mxu0 0
  %2136 = vmatpush1.bf16.msra.mxu0 0
  %2137 = vmatprep.subr.bf16.mxu0 0
  %2138 = vmatpush1.bf16.msra.mxu0 0
  %2139 = vmatprep.subr.bf16.mxu0 0
  %2140 = vmatpush1.bf16.msra.mxu0 0
  %2141 = vmatprep.subr.bf16.mxu0 0
  %2142 = vmatpush1.bf16.msra.mxu0 0
  %2143 = vmatprep.subr.bf16.mxu0 0
  %2144 = vmatpush1.bf16.msra.mxu0 0
  %2145 = vmatprep.subr.bf16.mxu0 0
  %2146 = vmatpush1.bf16.msra.mxu0 0
  %2147 = vmatprep.mubr.bf16.mxu0 0
  %2148 = vmatmul.mubr.bf16.gmra.mrb[0].mxu0 %v1200
  %v2149 = vpop.f32.mrb[0].mxu0
  %v2150 = vadd.f32 %v1360, %v2149
  %v2151 = vpop.f32.mrb[0].mxu0
  %v2152 = vadd.f32 %v1364, %v2151
  %v2153 = vpop.f32.mrb[0].mxu0
  %v2154 = vpop.f32.mrb[0].mxu0
  %2155 = vdwg.mxu0
  %2156 = vmatprep.subr.bf16.mxu0 0
  %2157 = vmatpush1.bf16.msra.mxu0 %v1714
  %2158 = vmatprep.subr.bf16.mxu0 0
  %2159 = vmatpush1.bf16.msra.mxu0 %v1727
  %2160 = vmatprep.subr.bf16.mxu0 0
  %2161 = vmatpush1.bf16.msra.mxu0 %v1740
  %2162 = vmatprep.subr.bf16.mxu0 0
  %2163 = vmatpush1.bf16.msra.mxu0 %v1753
  %2164 = vmatprep.subr.bf16.mxu0 0
  %2165 = vmatpush1.bf16.msra.mxu0 %v1766
  %2166 = vmatprep.subr.bf16.mxu0 0
  %2167 = vmatpush1.bf16.msra.mxu0 %v1779
  %2168 = vmatprep.subr.bf16.mxu0 0
  %2169 = vmatpush1.bf16.msra.mxu0 %v1792
  %2170 = vmatprep.subr.bf16.mxu0 0
  %2171 = vmatpush1.bf16.msra.mxu0 %v1805
  %2172 = vmatprep.subr.bf16.mxu0 0
  %2173 = vmatpush1.bf16.msra.mxu0 0
  %2174 = vmatprep.subr.bf16.mxu0 0
  %2175 = vmatpush1.bf16.msra.mxu0 0
  %2176 = vmatprep.subr.bf16.mxu0 0
  %2177 = vmatpush1.bf16.msra.mxu0 0
  %2178 = vmatprep.subr.bf16.mxu0 0
  %2179 = vmatpush1.bf16.msra.mxu0 0
  %2180 = vmatprep.subr.bf16.mxu0 0
  %2181 = vmatpush1.bf16.msra.mxu0 0
  %2182 = vmatprep.subr.bf16.mxu0 0
  %2183 = vmatpush1.bf16.msra.mxu0 0
  %2184 = vmatprep.subr.bf16.mxu0 0
  %2185 = vmatpush1.bf16.msra.mxu0 0
  %2186 = vmatprep.subr.bf16.mxu0 0
  %2187 = vmatpush1.bf16.msra.mxu0 0
  %2188 = vmatprep.mubr.bf16.mxu0 0
  %2189 = vmatmul.mubr.bf16.gmra.mrb[0].mxu0 %v1200
  %v2190 = vpop.f32.mrb[0].mxu0
  %v2191 = vadd.f32 %v1368, %v2190
  %v2192 = vpop.f32.mrb[0].mxu0
  %v2193 = vpop.f32.mrb[0].mxu0
  %v2194 = vpop.f32.mrb[0].mxu0
  %2195 = vdwg.mxu0
  %v2196 = vmax.f32 %v1945, 0.0
  %v2197 = vmax.f32 %v1947, 0.0
  %v2198 = vmax.f32 %v1986, 0.0
  %v2199 = vmax.f32 %v1988, 0.0
  %v2200 = vmax.f32 %v2027, 0.0
  %v2201 = vmax.f32 %v2029, 0.0
  %v2202 = vmax.f32 %v2068, 0.0
  %v2203 = vmax.f32 %v2070, 0.0
  %v2204 = vmax.f32 %v2109, 0.0
  %v2205 = vmax.f32 %v2111, 0.0
  %v2206 = vmax.f32 %v2150, 0.0
  %v2207 = vmax.f32 %v2152, 0.0
  %v2208 = vmax.f32 %v2191, 0.0
  %v2209 = vpack.c.bf16 %v2196, %v2196
  %v2210 = vpack.c.bf16 %v2197, %v2197
  %v2211 = vpack.c.bf16 %v2198, %v2198
  %v2212 = vpack.c.bf16 %v2199, %v2199
  %v2213 = vpack.c.bf16 %v2200, %v2200
  %v2214 = vpack.c.bf16 %v2201, %v2201
  %v2215 = vpack.c.bf16 %v2202, %v2202
  %v2216 = vpack.c.bf16 %v2203, %v2203
  %v2217 = vpack.c.bf16 %v2204, %v2204
  %v2218 = vpack.c.bf16 %v2205, %v2205
  %v2219 = vpack.c.bf16 %v2206, %v2206
  %v2220 = vpack.c.bf16 %v2207, %v2207
  %v2221 = vpack.c.bf16 %v2208, %v2208
  %v2235 = vcombine.low %v2209, %v2210
  %v2236 = vcombine.low %v2211, %v2212
  %v2237 = vcombine.low %v2213, %v2214
  %v2238 = vcombine.low %v2215, %v2216
  %v2240 = vunpack.c.l.s4 1966171168
  %v2241 = vunpack.c.0.s8 %v2240
  %v2242 = vlaneseq
  %v2243 = vshrl.u32 %v2242, 7
  %v2244 = vsub.s32 %v2241, %v2243
  %v2245 = vrot.slane %v2235, %v2244
  %v2247 = vunpack.c.l.s4 1966171168
  %v2248 = vunpack.c.0.s8 %v2247
  %v2249 = vlaneseq
  %v2250 = vshrl.u32 %v2249, 7
  %v2251 = vsub.s32 %v2248, %v2250
  %v2252 = vrot.slane %v2236, %v2251
  %v2254 = vunpack.c.l.s4 1966171168
  %v2255 = vunpack.c.0.s8 %v2254
  %v2256 = vlaneseq
  %v2257 = vshrl.u32 %v2256, 7
  %v2258 = vsub.s32 %v2255, %v2257
  %v2259 = vrot.slane %v2237, %v2258
  %v2261 = vunpack.c.l.s4 1966171168
  %v2262 = vunpack.c.0.s8 %v2261
  %v2263 = vlaneseq
  %v2264 = vshrl.u32 %v2263, 7
  %v2265 = vsub.s32 %v2262, %v2264
  %v2266 = vrot.slane %v2238, %v2265
  %v2267 = vcombine.low %v2245, %v2252
  %v2268 = vcombine.low %v2259, %v2266
  %v2270 = vunpack.c.l.s4 1966171168
  %v2271 = vunpack.c.0.s8 %v2270
  %v2272 = vlaneseq
  %v2273 = vshrl.u32 %v2272, 7
  %v2274 = vsub.s32 %v2271, %v2273
  %v2275 = vrot.slane %v2267, %v2274
  %v2277 = vunpack.c.l.s4 1966171168
  %v2278 = vunpack.c.0.s8 %v2277
  %v2279 = vlaneseq
  %v2280 = vshrl.u32 %v2279, 7
  %v2281 = vsub.s32 %v2278, %v2280
  %v2282 = vrot.slane %v2268, %v2281
  %v2283 = vcombine.low %v2275, %v2282
  %v2284 = vcombine.low %v2217, %v2218
  %v2285 = vcombine.low %v2219, %v2220
  %v2287 = vunpack.c.l.s4 1966171168
  %v2288 = vunpack.c.0.s8 %v2287
  %v2289 = vlaneseq
  %v2290 = vshrl.u32 %v2289, 7
  %v2291 = vsub.s32 %v2288, %v2290
  %v2292 = vrot.slane %v2284, %v2291
  %v2294 = vunpack.c.l.s4 1966171168
  %v2295 = vunpack.c.0.s8 %v2294
  %v2296 = vlaneseq
  %v2297 = vshrl.u32 %v2296, 7
  %v2298 = vsub.s32 %v2295, %v2297
  %v2299 = vrot.slane %v2285, %v2298
  %v2301 = vunpack.c.l.s4 1966171168
  %v2302 = vunpack.c.0.s8 %v2301
  %v2303 = vlaneseq
  %v2304 = vshrl.u32 %v2303, 7
  %v2305 = vsub.s32 %v2302, %v2304
  %v2306 = vrot.slane %v2221, %v2305
  %v2307 = vcombine.low %v2292, %v2299
  %v2309 = vunpack.c.l.s4 1966171168
  %v2310 = vunpack.c.0.s8 %v2309
  %v2311 = vlaneseq
  %v2312 = vshrl.u32 %v2311, 7
  %v2313 = vsub.s32 %v2310, %v2312
  %v2314 = vrot.slane %v2307, %v2313
  %v2316 = vunpack.c.l.s4 1966171168
  %v2317 = vunpack.c.0.s8 %v2316
  %v2318 = vlaneseq
  %v2319 = vshrl.u32 %v2318, 7
  %v2320 = vsub.s32 %v2317, %v2319
  %v2321 = vrot.slane %v2306, %v2320
  %v2322 = vcombine.low %v2314, %v2321
  %2325 = vst [vmem:[%s5] sm:$0xff] %v2283
  %2326 = vst [vmem:[%s5 + $0x8] sm:$0x1f] %v2322
  // Predicated region
  $region22: #{_lambda_.7} parent=0 // pred_check
    _
  $region23: #{_lambda_.7} parent=0 // pred_check_branch
    %2328 = sbr.rel (0) target = $region25
  $region24: #{_lambda_.7} parent=0 // pred_region
    _
  $region25: #{_lambda_.7} parent=0 // pred_fallthru
    _
  // Predicated region
  $region26: #{_lambda_.7} parent=0 // pred_check
    _
  $region27: #{_lambda_.7} parent=0 // pred_check_branch
    %2330 = sbr.rel (0) target = $region29
  $region28: #{_lambda_.7} parent=0 // pred_region
    _
  $region29: #{_lambda_.7} parent=0 // pred_fallthru
    _

// kernel: _lambda_.9
$region0: #{_lambda_.9}
  #allocation0 [shape = 'u32[]', space=smem, size = 0x4, offset = 0x4, fixed_abs, tag = 'smem constant byte address 0x4 - core index']
  #allocation1 [shape = 'u32[144,128]{1,0:T(1,128)}', space=vmem, size = 0x12000, scoped, tag = 'internal scratch']
  %s0 = inlined_call_operand.vmem [shape: bf16[338,64], index: 0, kind: input, shape index: {}]
  %s1 = inlined_call_operand.vmem [shape: bf16[64,128], index: 1, kind: input, shape index: {}]
  %s2 = inlined_call_operand.vmem [shape: f32[1,128], index: 2, kind: input, shape index: {}]
  %s3 = inlined_call_operand.vmem [shape: bf16[338,128], index: 3, kind: output, shape index: {}]
  %s4 = sld [smem:[#allocation0]]
  $region89: #{_lambda_.9} parent=0
    _
  %s6 = ssub.s32 1, %s4
  %s7 = scalar_select 0, %s6, %s4
  $region1: #{_lambda_.9} parent=0
    #allocation2 [shape = 'u8[90112]{0}', space=vmem, size = 0x16000, scoped, tag = 'output window, operand 0']
    loop: start=0, step=1, limit=4
    $region2: #{_lambda_.9} parent=1 // loop_pre_header
      _
    $region3: #{_lambda_.9} parent=1 // loop_header
      %s9 = sphi 0, %s13
      %p10 = scmp.ge.s32.totalorder %s9, 4
      %s19 = sphi 0, %s21
      %s22 = sphi 0, %s19
      %s23 = sphi 0, %s22
      %s39 = sphi 0, %s23
      %s43 = sphi 0, %s43
      %s45 = sphi 0, %s43
      %s46 = sphi 0, %s45
      %s60 = sphi 0, %s46
      %s64 = sphi 0, %s64
      %s66 = sphi 0, %s64
      %s67 = sphi 0, %s66
      %s81 = sphi 0, %s67
      %s87 = sphi 0, %s89
      %s90 = sphi 0, %s87
      %s91 = sphi 0, %s90
      %s107 = sphi 0, %s91
    $region4: #{_lambda_.9} parent=1 // loop_header_branch
      %12 = sbr.rel (%p10) target = $region8
    $region5: #{_lambda_.9} parent=1 // loop_body
      %s14 = ssub.s32 %s9, 1
      %s15 = ssub.s32 %s9, 2
      %s16 = sadd.s32 %s9, 1
      %s17 = ssub.s32 %s9, %s16
      %p18 = scmp.eq.s32.totalorder %s17, 0
      %s20 = sadd.s32 %s19, 1
      %s21 = scalar_select %p18, %s19, %s20
      %p24 = pneg %p18
      %p25 = scmp.eq.s32.totalorder %s9, 1
      %p26 = por %p24, %p25
      %p27 = scmp.ne.s32.totalorder %s19, %s22
      %p28 = scmp.eq.s32.totalorder %s9, 0
      %p29 = por %p27, %p28
      %p30 = scmp.ne.s32.totalorder %s19, %s22
      %p31 = scmp.eq.s32.totalorder %s14, 1
      %p32 = por %p30, %p31
      %p33 = scmp.ne.s32.totalorder %s22, %s23
      %p34 = scmp.eq.s32.totalorder %s14, 0
      %p35 = por %p33, %p34
      %p36 = scmp.ne.s32.totalorder %s22, %s23
      %p37 = scmp.eq.s32.totalorder %s15, 1
      %p38 = por %p36, %p37
      %p40 = scmp.ne.s32.totalorder %s23, %s39
      %p41 = scmp.eq.s32.totalorder %s15, 0
      %p42 = por %p40, %p41
      %s44 = sadd.s32 %s43, 1
      %p47 = scmp.eq.s32.totalorder %s9, 1
      %p48 = scmp.ne.s32.totalorder %s43, %s45
      %p49 = scmp.eq.s32.totalorder %s9, 0
      %p50 = por %p48, %p49
      %p51 = scmp.ne.s32.totalorder %s43, %s45
      %p52 = scmp.eq.s32.totalorder %s14, 1
      %p53 = por %p51, %p52
      %p54 = scmp.ne.s32.totalorder %s45, %s46
      %p55 = scmp.eq.s32.totalorder %s14, 0
      %p56 = por %p54, %p55
      %p57 = scmp.ne.s32.totalorder %s45, %s46
      %p58 = scmp.eq.s32.totalorder %s15, 1
      %p59 = por %p57, %p58
      %p61 = scmp.ne.s32.totalorder %s46, %s60
      %p62 = scmp.eq.s32.totalorder %s15, 0
      %p63 = por %p61, %p62
      %s65 = sadd.s32 %s64, 1
      %p68 = scmp.eq.s32.totalorder %s9, 1
      %p69 = scmp.ne.s32.totalorder %s64, %s66
      %p70 = scmp.eq.s32.totalorder %s9, 0
      %p71 = por %p69, %p70
      %p72 = scmp.ne.s32.totalorder %s64, %s66
      %p73 = scmp.eq.s32.totalorder %s14, 1
      %p74 = por %p72, %p73
      %p75 = scmp.ne.s32.totalorder %s66, %s67
      %p76 = scmp.eq.s32.totalorder %s14, 0
      %p77 = por %p75, %p76
      %p78 = scmp.ne.s32.totalorder %s66, %s67
      %p79 = scmp.eq.s32.totalorder %s15, 1
      %p80 = por %p78, %p79
      %p82 = scmp.ne.s32.totalorder %s67, %s81
      %p83 = scmp.eq.s32.totalorder %s15, 0
      %p84 = por %p82, %p83
      %s85 = ssub.s32 %s9, %s16
      %p86 = scmp.eq.s32.totalorder %s85, 0
      %s88 = sadd.s32 %s87, 1
      %s89 = scalar_select %p86, %s87, %s88
      %p92 = pneg %p86
      %p93 = scmp.eq.s32.totalorder %s9, 1
      %p94 = por %p92, %p93
      %p95 = scmp.ne.s32.totalorder %s87, %s90
      %p96 = scmp.eq.s32.totalorder %s9, 0
      %p97 = por %p95, %p96
      %p98 = scmp.ne.s32.totalorder %s87, %s90
      %p99 = scmp.eq.s32.totalorder %s14, 1
      %p100 = por %p98, %p99
      %p101 = scmp.ne.s32.totalorder %s90, %s91
      %p102 = scmp.eq.s32.totalorder %s14, 0
      %p103 = por %p101, %p102
      %p104 = scmp.ne.s32.totalorder %s90, %s91
      %p105 = scmp.eq.s32.totalorder %s15, 1
      %p106 = por %p104, %p105
      %p108 = scmp.ne.s32.totalorder %s91, %s107
      %p109 = scmp.eq.s32.totalorder %s15, 0
      %p110 = por %p108, %p109
      %p111 = scmp.le.s32.totalorder 1, %s9
      %p112 = scmp.lt.s32.totalorder %s9, 3
      %p113 = pnand %p111, %p112
      %p114 = pneg %p113
      // Predicated region
      $region9: #{_lambda_.9} parent=5 // pred_check
        _
      $region10: #{_lambda_.9} parent=5 // pred_check_branch
        %116 = sbr.rel (%p113) target = $region12
      $region11: #{_lambda_.9} parent=5 // pred_region
        %s117 = ssub.s32 %s9, 1
        // Predicated region
        $region13: #{_lambda_.9} parent=11 // pred_check
          %p118 = pneg %p56
        $region14: #{_lambda_.9} parent=11 // pred_check_branch
          %120 = sbr.rel (%p118) target = $region16
        $region15: #{_lambda_.9} parent=11 // pred_region
          _
        $region16: #{_lambda_.9} parent=11 // pred_fallthru
          _
        // Predicated region
        $region17: #{_lambda_.9} parent=11 // pred_check
          %p121 = pneg %p77
        $region18: #{_lambda_.9} parent=11 // pred_check_branch
          %123 = sbr.rel (%p121) target = $region20
        $region19: #{_lambda_.9} parent=11 // pred_region
          _
        $region20: #{_lambda_.9} parent=11 // pred_fallthru
          _
      $region12: #{_lambda_.9} parent=5 // pred_fallthru
        _
      %p124 = scmp.lt.s32.totalorder %s9, 2
      // Predicated region
      $region21: #{_lambda_.9} parent=5 // pred_check
        %p125 = pneg %p124
      $region22: #{_lambda_.9} parent=5 // pred_check_branch
        %127 = sbr.rel (%p125) target = $region24
      $region23: #{_lambda_.9} parent=5 // pred_region
        // Predicated region
        $region25: #{_lambda_.9} parent=23 // pred_check
          %p128 = pneg %p29
        $region26: #{_lambda_.9} parent=23 // pred_check_branch
          %130 = sbr.rel (%p128) target = $region28
        $region27: #{_lambda_.9} parent=23 // pred_region
          %s131 = smul.u32 22, %s9
          %s132 = ssub.s32 43, %s131
          %p133 = scmp.lt.s32.totalorder %s132, 22
          %s134 = scalar_select %p133, %s132, 22
          %s135 = smul.u32 64, %s134
          %p136 = scmp.lt.s32.totalorder %s131, 42
          %s137 = scalar_select %p136, %s131, 42
          %s138 = smul.addr %s137, 4
          %s139 = scalar_lea.vmem %s0, %s138
          %s140 = smul.u32 22, %s9
          %s141 = ssub.s32 43, %s140
          %p142 = scmp.lt.s32.totalorder %s141, 22
          %s143 = scalar_select %p142, %s141, 22
          %s144 = smul.u32 64, %s143
        $region28: #{_lambda_.9} parent=23 // pred_fallthru
          _
      $region24: #{_lambda_.9} parent=5 // pred_fallthru
        _
      %p145 = scmp.le.s32.totalorder 1, %s9
      %p146 = scmp.lt.s32.totalorder %s9, 3
      %p147 = pnand %p145, %p146
      %p148 = pneg %p147
      // Predicated region
      $region29: #{_lambda_.9} parent=5 // pred_check
        _
      $region30: #{_lambda_.9} parent=5 // pred_check_branch
        %150 = sbr.rel (%p147) target = $region32
      $region31: #{_lambda_.9} parent=5 // pred_region
        %s151 = ssub.s32 %s9, 1
        %s152 = smul.u32 22, %s14
        %s153 = ssub.s32 43, %s152
        %p154 = scmp.lt.s32.totalorder %s153, 22
        %s155 = scalar_select %p154, %s153, 22
        %s156 = smul.u32 64, %s155
        %p157 = scmp.lt.s32.totalorder %s152, 42
        %s158 = scalar_select %p157, %s152, 42
        %s159 = smul.addr %s158, 4
        %s160 = scalar_lea.vmem %s0, %s159
        %p161 = pneg %p35
        %p162 = pneg %p32
        %p163 = pneg %p56
        %p164 = pneg %p53
        %p165 = pneg %p77
        %p166 = pneg %p74
        %p167 = pneg %p103
        %p168 = pneg %p100
        %s169 = sand.u32 %s90, 1
        %s170 = sand.u32 %s90, 1
        %s171 = smul.addr %s170, 88
        %s172 = scalar_lea.vmem [#allocation2], %s171
        %s173 = smul.u32 22, %s14
        %s174 = ssub.s32 43, %s173
        %p175 = scmp.lt.s32.totalorder %s174, 22
        %s176 = scalar_select %p175, %s174, 22
        %s177 = smul.u32 64, %s176
        %p178 = scmp.lt.s32.totalorder %s173, 42
        %s179 = scalar_select %p178, %s173, 42
        %s180 = smul.addr %s179, 4
        %s181 = scalar_lea.vmem %s0, %s180
        %s182 = smul.u32 22, %s14
        %s183 = ssub.s32 43, %s182
        %p184 = scmp.lt.s32.totalorder %s183, 22
        %s185 = scalar_select %p184, %s183, 22
        %s186 = smul.u32 64, %s185
        %s187 = smul.u32 22, %s14
        %s188 = ssub.s32 43, %s187
        %p189 = scmp.lt.s32.totalorder %s188, 22
        %s190 = scalar_select %p189, %s188, 22
        %s191 = smul.u32 64, %s190
        %v193 = vld [vmem:[%s181] sm:$0xf]
        %v194 = vld [vmem:[%s181 + $0x4] sm:$0xf]
        %v195 = vld [vmem:[%s181 + $0x8] sm:$0xf]
        %v196 = vld [vmem:[%s181 + $0xc] sm:$0xf]
        %v197 = vld [vmem:[%s181 + $0x10] sm:$0xf]
        %v198 = vld [vmem:[%s181 + $0x14] sm:$0xf]
        %v199 = vld [vmem:[%s181 + $0x18] sm:$0xf]
        %v200 = vld [vmem:[%s181 + $0x1c] sm:$0xf]
        %v201 = vld [vmem:[%s181 + $0x20] sm:$0xf]
        %v202 = vld [vmem:[%s181 + $0x24] sm:$0xf]
        %v203 = vld [vmem:[%s181 + $0x28] sm:$0xf]
        %v204 = vld [vmem:[%s181 + $0x2c] sm:$0xf]
        %v205 = vld [vmem:[%s181 + $0x30] sm:$0xf]
        %v206 = vld [vmem:[%s181 + $0x34] sm:$0xf]
        %v207 = vld [vmem:[%s181 + $0x38] sm:$0xf]
        %v208 = vld [vmem:[%s181 + $0x3c] sm:$0xf]
        %v209 = vld [vmem:[%s181 + $0x40] sm:$0xf]
        %v210 = vld [vmem:[%s181 + $0x44] sm:$0xf]
        %v211 = vld [vmem:[%s181 + $0x48] sm:$0xf]
        %v212 = vld [vmem:[%s181 + $0x4c] sm:$0xf]
        %v213 = vld [vmem:[%s181 + $0x50] sm:$0xf]
        %v214 = vld [vmem:[%s181 + $0x54] sm:$0xf]
        %v215 = vld [vmem:[%s1] sm:$0xf]
        %v216 = vld [vmem:[%s1 + $0x4] sm:$0xf]
        %v217 = vld [vmem:[%s1 + $0x8] sm:$0xf]
        %v218 = vld [vmem:[%s1 + $0xc] sm:$0xf]
        %v219 = vld [vmem:[%s1 + $0x10] sm:$0xf]
        %v220 = vld [vmem:[%s1 + $0x14] sm:$0xf]
        %v221 = vld [vmem:[%s1 + $0x18] sm:$0xf]
        %v222 = vld [vmem:[%s1 + $0x1c] sm:$0xf]
        %v223 = vld [vmem:[%s2] sm:$0x1]
        %v225 = vlaneseq
        %v226 = vshrl.u32 %v225, 7
        %v227 = vsub.s32 0, %v226
        %v228 = vrot.slane %v223, %v227
        %v252 = vunpack.c.l.b16 %v193
        %v253 = vunpack.c.l.b16 %v194
        %v254 = vunpack.c.l.b16 %v195
        %v255 = vunpack.c.l.b16 %v196
        %v256 = vunpack.c.l.b16 %v197
        %v257 = vunpack.c.l.b16 %v198
        %v258 = vunpack.c.l.b16 %v199
        %v259 = vunpack.c.l.b16 %v200
        %v260 = vunpack.c.l.b16 %v201
        %v261 = vunpack.c.l.b16 %v202
        %v262 = vunpack.c.l.b16 %v203
        %v263 = vunpack.c.l.b16 %v204
        %v264 = vunpack.c.l.b16 %v205
        %v265 = vunpack.c.l.b16 %v206
        %v266 = vunpack.c.l.b16 %v207
        %v267 = vunpack.c.l.b16 %v208
        %v268 = vunpack.c.l.b16 %v209
        %v269 = vunpack.c.l.b16 %v210
        %v270 = vunpack.c.l.b16 %v211
        %v271 = vunpack.c.l.b16 %v212
        %v272 = vunpack.c.l.b16 %v213
        %v273 = vunpack.c.l.b16 %v214
        %v274 = vpack.c.b16 %v253, %v252
        %v275 = vpack.c.b16 %v255, %v254
        %v276 = vpack.c.b16 %v257, %v256
        %v277 = vpack.c.b16 %v259, %v258
        %v278 = vpack.c.b16 %v261, %v260
        %v279 = vpack.c.b16 %v263, %v262
        %v280 = vpack.c.b16 %v265, %v264
        %v281 = vpack.c.b16 %v267, %v266
        %v282 = vpack.c.b16 %v269, %v268
        %v283 = vpack.c.b16 %v271, %v270
        %v284 = vpack.c.b16 %v273, %v272
        %v293 = vunpack.c.l.b16 %v215
        %v294 = vunpack.c.l.b16 %v216
        %v295 = vunpack.c.l.b16 %v217
        %v296 = vunpack.c.l.b16 %v218
        %v297 = vunpack.c.l.b16 %v219
        %v298 = vunpack.c.l.b16 %v220
        %v299 = vunpack.c.l.b16 %v221
        %v300 = vunpack.c.l.b16 %v222
        %v301 = vpack.c.b16 %v294, %v293
        %v302 = vpack.c.b16 %v296, %v295
        %v303 = vpack.c.b16 %v298, %v297
        %v304 = vpack.c.b16 %v300, %v299
        %vm309 = vcmask 523264
        %v311 = vsel %vm309, %v274, 0
        %v314 = vsel %vm309, %v275, 0
        %v317 = vsel %vm309, %v276, 0
        %v320 = vsel %vm309, %v277, 0
        %v323 = vsel %vm309, %v278, 0
        %v326 = vsel %vm309, %v279, 0
        %v329 = vsel %vm309, %v280, 0
        %v332 = vsel %vm309, %v281, 0
        %v335 = vsel %vm309, %v282, 0
        %v338 = vsel %vm309, %v283, 0
        %v341 = vsel %vm309, %v284, 0
        %343 = vmatprep.subr.bf16.mxu0 0
        %344 = vmatpush1.bf16.msra.mxu0 %v301
        %345 = vmatprep.subr.bf16.mxu0 0
        %346 = vmatpush1.bf16.msra.mxu0 %v302
        %347 = vmatprep.subr.bf16.mxu0 0
        %348 = vmatpush1.bf16.msra.mxu0 %v303
        %349 = vmatprep.subr.bf16.mxu0 0
        %350 = vmatpush1.bf16.msra.mxu0 %v304
        %351 = vmatprep.subr.bf16.mxu0 0
        %352 = vmatpush1.bf16.msra.mxu0 0
        %353 = vmatprep.subr.bf16.mxu0 0
        %354 = vmatpush1.bf16.msra.mxu0 0
        %355 = vmatprep.subr.bf16.mxu0 0
        %356 = vmatpush1.bf16.msra.mxu0 0
        %357 = vmatprep.subr.bf16.mxu0 0
        %358 = vmatpush1.bf16.msra.mxu0 0
        %359 = vmatprep.subr.bf16.mxu0 0
        %360 = vmatpush1.bf16.msra.mxu0 0
        %361 = vmatprep.subr.bf16.mxu0 0
        %362 = vmatpush1.bf16.msra.mxu0 0
        %363 = vmatprep.subr.bf16.mxu0 0
        %364 = vmatpush1.bf16.msra.mxu0 0
        %365 = vmatprep.subr.bf16.mxu0 0
        %366 = vmatpush1.bf16.msra.mxu0 0
        %367 = vmatprep.subr.bf16.mxu0 0
        %368 = vmatpush1.bf16.msra.mxu0 0
        %369 = vmatprep.subr.bf16.mxu0 0
        %370 = vmatpush1.bf16.msra.mxu0 0
        %371 = vmatprep.subr.bf16.mxu0 0
        %372 = vmatpush1.bf16.msra.mxu0 0
        %373 = vmatprep.subr.bf16.mxu0 0
        %374 = vmatpush1.bf16.msra.mxu0 0
        %375 = vmatprep.mubr.bf16.mxu0 0
        %376 = vmatmul.mubr.bf16.gmra.mrb[0].mxu0 %v311
        %v377 = vpop.f32.mrb[0].mxu0
        %v378 = vadd.f32 %v228, %v377
        %v379 = vpop.f32.mrb[0].mxu0
        %v380 = vpop.f32.mrb[0].mxu0
        %v381 = vadd.f32 %v228, %v380
        %v382 = vpop.f32.mrb[0].mxu0
        %383 = vmatprep.mubr.bf16.mxu0 0
        %384 = vmatmul.mubr.bf16.gmra.mrb[0].mxu0 %v314
        %v385 = vpop.f32.mrb[0].mxu0
        %v386 = vadd.f32 %v228, %v385
        %v387 = vpop.f32.mrb[0].mxu0
        %v388 = vpop.f32.mrb[0].mxu0
        %v389 = vadd.f32 %v228, %v388
        %v390 = vpop.f32.mrb[0].mxu0
        %391 = vmatprep.mubr.bf16.mxu0 0
        %392 = vmatmul.mubr.bf16.gmra.mrb[0].mxu0 %v317
        %v393 = vpop.f32.mrb[0].mxu0
        %v394 = vadd.f32 %v228, %v393
        %v395 = vpop.f32.mrb[0].mxu0
        %v396 = vpop.f32.mrb[0].mxu0
        %v397 = vadd.f32 %v228, %v396
        %v398 = vpop.f32.mrb[0].mxu0
        %399 = vmatprep.mubr.bf16.mxu0 0
        %400 = vmatmul.mubr.bf16.gmra.mrb[0].mxu0 %v320
        %v401 = vpop.f32.mrb[0].mxu0
        %v402 = vadd.f32 %v228, %v401
        %v403 = vpop.f32.mrb[0].mxu0
        %v404 = vpop.f32.mrb[0].mxu0
        %v405 = vadd.f32 %v228, %v404
        %v406 = vpop.f32.mrb[0].mxu0
        %407 = vmatprep.mubr.bf16.mxu0 0
        %408 = vmatmul.mubr.bf16.gmra.mrb[0].mxu0 %v323
        %v409 = vpop.f32.mrb[0].mxu0
        %v410 = vadd.f32 %v228, %v409
        %v411 = vpop.f32.mrb[0].mxu0
        %v412 = vpop.f32.mrb[0].mxu0
        %v413 = vadd.f32 %v228, %v412
        %v414 = vpop.f32.mrb[0].mxu0
        %415 = vmatprep.mubr.bf16.mxu0 0
        %416 = vmatmul.mubr.bf16.gmra.mrb[0].mxu0 %v326
        %v417 = vpop.f32.mrb[0].mxu0
        %v418 = vadd.f32 %v228, %v417
        %v419 = vpop.f32.mrb[0].mxu0
        %v420 = vpop.f32.mrb[0].mxu0
        %v421 = vadd.f32 %v228, %v420
        %v422 = vpop.f32.mrb[0].mxu0
        %423 = vmatprep.mubr.bf16.mxu0 0
        %424 = vmatmul.mubr.bf16.gmra.mrb[0].mxu0 %v329
        %v425 = vpop.f32.mrb[0].mxu0
        %v426 = vadd.f32 %v228, %v425
        %v427 = vpop.f32.mrb[0].mxu0
        %v428 = vpop.f32.mrb[0].mxu0
        %v429 = vadd.f32 %v228, %v428
        %v430 = vpop.f32.mrb[0].mxu0
        %431 = vmatprep.mubr.bf16.mxu0 0
        %432 = vmatmul.mubr.bf16.gmra.mrb[0].mxu0 %v332
        %v433 = vpop.f32.mrb[0].mxu0
        %v434 = vadd.f32 %v228, %v433
        %v435 = vpop.f32.mrb[0].mxu0
        %v436 = vpop.f32.mrb[0].mxu0
        %v437 = vadd.f32 %v228, %v436
        %v438 = vpop.f32.mrb[0].mxu0
        %439 = vmatprep.mubr.bf16.mxu0 0
        %440 = vmatmul.mubr.bf16.gmra.mrb[0].mxu0 %v335
        %v441 = vpop.f32.mrb[0].mxu0
        %v442 = vadd.f32 %v228, %v441
        %v443 = vpop.f32.mrb[0].mxu0
        %v444 = vpop.f32.mrb[0].mxu0
        %v445 = vadd.f32 %v228, %v444
        %v446 = vpop.f32.mrb[0].mxu0
        %447 = vmatprep.mubr.bf16.mxu0 0
        %448 = vmatmul.mubr.bf16.gmra.mrb[0].mxu0 %v338
        %v449 = vpop.f32.mrb[0].mxu0
        %v450 = vadd.f32 %v228, %v449
        %v451 = vpop.f32.mrb[0].mxu0
        %v452 = vpop.f32.mrb[0].mxu0
        %v453 = vadd.f32 %v228, %v452
        %v454 = vpop.f32.mrb[0].mxu0
        %455 = vmatprep.mubr.bf16.mxu0 0
        %456 = vmatmul.mubr.bf16.gmra.mrb[0].mxu0 %v341
        %v457 = vpop.f32.mrb[0].mxu0
        %v458 = vadd.f32 %v228, %v457
        %v459 = vpop.f32.mrb[0].mxu0
        %v460 = vpop.f32.mrb[0].mxu0
        %v461 = vadd.f32 %v228, %v460
        %v462 = vpop.f32.mrb[0].mxu0
        %463 = vdwg.mxu0
        %v464 = vsub.f32 0.0, %v378
        %v465 = vsub.f32 0.0, %v381
        %v466 = vsub.f32 0.0, %v386
        %v467 = vsub.f32 0.0, %v389
        %v468 = vsub.f32 0.0, %v394
        %v469 = vsub.f32 0.0, %v397
        %v470 = vsub.f32 0.0, %v402
        %v471 = vsub.f32 0.0, %v405
        %v472 = vsub.f32 0.0, %v410
        %v473 = vsub.f32 0.0, %v413
        %v474 = vsub.f32 0.0, %v418
        %v475 = vsub.f32 0.0, %v421
        %v476 = vsub.f32 0.0, %v426
        %v477 = vsub.f32 0.0, %v429
        %v478 = vsub.f32 0.0, %v434
        %v479 = vsub.f32 0.0, %v437
        %v480 = vsub.f32 0.0, %v442
        %v481 = vsub.f32 0.0, %v445
        %v482 = vsub.f32 0.0, %v450
        %v483 = vsub.f32 0.0, %v453
        %v484 = vsub.f32 0.0, %v458
        %v485 = vsub.f32 0.0, %v461
        %v486 = vmul.f32 %v464, 1.442695
        %v487 = vpow.pop %v486
        %v488 = vmul.f32 %v465, 1.442695
        %v489 = vpow.pop %v488
        %v490 = vmul.f32 %v466, 1.442695
        %v491 = vpow.pop %v490
        %v492 = vmul.f32 %v467, 1.442695
        %v493 = vpow.pop %v492
        %v494 = vmul.f32 %v468, 1.442695
        %v495 = vpow.pop %v494
        %v496 = vmul.f32 %v469, 1.442695
        %v497 = vpow.pop %v496
        %v498 = vmul.f32 %v470, 1.442695
        %v499 = vpow.pop %v498
        %v500 = vmul.f32 %v471, 1.442695
        %v501 = vpow.pop %v500
        %v502 = vmul.f32 %v472, 1.442695
        %v503 = vpow.pop %v502
        %v504 = vmul.f32 %v473, 1.442695
        %v505 = vpow.pop %v504
        %v506 = vmul.f32 %v474, 1.442695
        %v507 = vpow.pop %v506
        %v508 = vmul.f32 %v475, 1.442695
        %v509 = vpow.pop %v508
        %v510 = vmul.f32 %v476, 1.442695
        %v511 = vpow.pop %v510
        %v512 = vmul.f32 %v477, 1.442695
        %v513 = vpow.pop %v512
        %v514 = vmul.f32 %v478, 1.442695
        %v515 = vpow.pop %v514
        %v516 = vmul.f32 %v479, 1.442695
        %v517 = vpow.pop %v516
        %v518 = vmul.f32 %v480, 1.442695
        %v519 = vpow.pop %v518
        %v520 = vmul.f32 %v481, 1.442695
        %v521 = vpow.pop %v520
        %v522 = vmul.f32 %v482, 1.442695
        %v523 = vpow.pop %v522
        %v524 = vmul.f32 %v483, 1.442695
        %v525 = vpow.pop %v524
        %v526 = vmul.f32 %v484, 1.442695
        %v527 = vpow.pop %v526
        %v528 = vmul.f32 %v485, 1.442695
        %v529 = vpow.pop %v528
        %v530 = vadd.f32 %v487, 1.0
        %v531 = vadd.f32 %v489, 1.0
        %v532 = vadd.f32 %v491, 1.0
        %v533 = vadd.f32 %v493, 1.0
        %v534 = vadd.f32 %v495, 1.0
        %v535 = vadd.f32 %v497, 1.0
        %v536 = vadd.f32 %v499, 1.0
        %v537 = vadd.f32 %v501, 1.0
        %v538 = vadd.f32 %v503, 1.0
        %v539 = vadd.f32 %v505, 1.0
        %v540 = vadd.f32 %v507, 1.0
        %v541 = vadd.f32 %v509, 1.0
        %v542 = vadd.f32 %v511, 1.0
        %v543 = vadd.f32 %v513, 1.0
        %v544 = vadd.f32 %v515, 1.0
        %v545 = vadd.f32 %v517, 1.0
        %v546 = vadd.f32 %v519, 1.0
        %v547 = vadd.f32 %v521, 1.0
        %v548 = vadd.f32 %v523, 1.0
        %v549 = vadd.f32 %v525, 1.0
        %v550 = vadd.f32 %v527, 1.0
        %v551 = vadd.f32 %v529, 1.0
        %v552 = vrcp.pop %v530
        %v553 = vrcp.pop %v531
        %v554 = vrcp.pop %v532
        %v555 = vrcp.pop %v533
        %v556 = vrcp.pop %v534
        %v557 = vrcp.pop %v535
        %v558 = vrcp.pop %v536
        %v559 = vrcp.pop %v537
        %v560 = vrcp.pop %v538
        %v561 = vrcp.pop %v539
        %v562 = vrcp.pop %v540
        %v563 = vrcp.pop %v541
        %v564 = vrcp.pop %v542
        %v565 = vrcp.pop %v543
        %v566 = vrcp.pop %v544
        %v567 = vrcp.pop %v545
        %v568 = vrcp.pop %v546
        %v569 = vrcp.pop %v547
        %v570 = vrcp.pop %v548
        %v571 = vrcp.pop %v549
        %v572 = vrcp.pop %v550
        %v573 = vrcp.pop %v551
        %v574 = vpack.c.bf16 %v553, %v552
        %v575 = vpack.c.bf16 %v555, %v554
        %v576 = vpack.c.bf16 %v557, %v556
        %v577 = vpack.c.bf16 %v559, %v558
        %v578 = vpack.c.bf16 %v561, %v560
        %v579 = vpack.c.bf16 %v563, %v562
        %v580 = vpack.c.bf16 %v565, %v564
        %v581 = vpack.c.bf16 %v567, %v566
        %v582 = vpack.c.bf16 %v569, %v568
        %v583 = vpack.c.bf16 %v571, %v570
        %v584 = vpack.c.bf16 %v573, %v572
        %v596 = vunpack.c.l.b16 %v574
        %v597 = vunpack.c.h.b16 %v574
        %v598 = vunpack.c.l.b16 %v575
        %v599 = vunpack.c.h.b16 %v575
        %v600 = vunpack.c.l.b16 %v576
        %v601 = vunpack.c.h.b16 %v576
        %v602 = vunpack.c.l.b16 %v577
        %v603 = vunpack.c.h.b16 %v577
        %v604 = vunpack.c.l.b16 %v578
        %v605 = vunpack.c.h.b16 %v578
        %v606 = vunpack.c.l.b16 %v579
        %v607 = vunpack.c.h.b16 %v579
        %v608 = vunpack.c.l.b16 %v580
        %v609 = vunpack.c.h.b16 %v580
        %v610 = vunpack.c.l.b16 %v581
        %v611 = vunpack.c.h.b16 %v581
        %v612 = vunpack.c.l.b16 %v582
        %v613 = vunpack.c.h.b16 %v582
        %v614 = vunpack.c.l.b16 %v583
        %v615 = vunpack.c.h.b16 %v583
        %v616 = vunpack.c.l.b16 %v584
        %v617 = vunpack.c.h.b16 %v584
        %v618 = vpack.c.b16 %v596, %v596
        %v619 = vpack.c.b16 %v597, %v597
        %v620 = vpack.c.b16 %v598, %v598
        %v621 = vpack.c.b16 %v599, %v599
        %v622 = vpack.c.b16 %v600, %v600
        %v623 = vpack.c.b16 %v601, %v601
        %v624 = vpack.c.b16 %v602, %v602
        %v625 = vpack.c.b16 %v603, %v603
        %v626 = vpack.c.b16 %v604, %v604
        %v627 = vpack.c.b16 %v605, %v605
        %v628 = vpack.c.b16 %v606, %v606
        %v629 = vpack.c.b16 %v607, %v607
        %v630 = vpack.c.b16 %v608, %v608
        %v631 = vpack.c.b16 %v609, %v609
        %v632 = vpack.c.b16 %v610, %v610
        %v633 = vpack.c.b16 %v611, %v611
        %v634 = vpack.c.b16 %v612, %v612
        %v635 = vpack.c.b16 %v613, %v613
        %v636 = vpack.c.b16 %v614, %v614
        %v637 = vpack.c.b16 %v615, %v615
        %v638 = vpack.c.b16 %v616, %v616
        %v639 = vpack.c.b16 %v617, %v617
        %662 = vst [vmem:[%s172] sm:$0xf] %v618
        %663 = vst [vmem:[%s172 + $0x4] sm:$0xf] %v619
        %664 = vst [vmem:[%s172 + $0x8] sm:$0xf] %v620
        %665 = vst [vmem:[%s172 + $0xc] sm:$0xf] %v621
        %666 = vst [vmem:[%s172 + $0x10] sm:$0xf] %v622
        %667 = vst [vmem:[%s172 + $0x14] sm:$0xf] %v623
        %668 = vst [vmem:[%s172 + $0x18] sm:$0xf] %v624
        %669 = vst [vmem:[%s172 + $0x1c] sm:$0xf] %v625
        %670 = vst [vmem:[%s172 + $0x20] sm:$0xf] %v626
        %671 = vst [vmem:[%s172 + $0x24] sm:$0xf] %v627
        %672 = vst [vmem:[%s172 + $0x28] sm:$0xf] %v628
        %673 = vst [vmem:[%s172 + $0x2c] sm:$0xf] %v629
        %674 = vst [vmem:[%s172 + $0x30] sm:$0xf] %v630
        %675 = vst [vmem:[%s172 + $0x34] sm:$0xf] %v631
        %676 = vst [vmem:[%s172 + $0x38] sm:$0xf] %v632
        %677 = vst [vmem:[%s172 + $0x3c] sm:$0xf] %v633
        %678 = vst [vmem:[%s172 + $0x40] sm:$0xf] %v634
        %679 = vst [vmem:[%s172 + $0x44] sm:$0xf] %v635
        %680 = vst [vmem:[%s172 + $0x48] sm:$0xf] %v636
        %681 = vst [vmem:[%s172 + $0x4c] sm:$0xf] %v637
        %682 = vst [vmem:[%s172 + $0x50] sm:$0xf] %v638
        %683 = vst [vmem:[%s172 + $0x54] sm:$0xf] %v639
        %s684 = sand.u32 %s90, 1
        %s685 = sand.u32 %s90, 1
        %s686 = smul.addr %s685, 88
        %s687 = scalar_lea.vmem [#allocation2], %s686
        // Predicated region
        $region33: #{_lambda_.9} parent=31 // pred_check
          %p688 = pneg %p100
        $region34: #{_lambda_.9} parent=31 // pred_check_branch
          %690 = sbr.rel (%p688) target = $region36
        $region35: #{_lambda_.9} parent=31 // pred_region
          %s691 = smul.u32 22, %s14
          %s692 = ssub.s32 43, %s691
          %p693 = scmp.lt.s32.totalorder %s692, 22
          %s694 = scalar_select %p693, %s692, 22
          %s695 = smul.u32 64, %s694
          %p696 = scmp.ne.s32.totalorder 0, %s695
          %s697 = smul.addr %s691, 4
          %s698 = scalar_lea.vmem %s3, %s697
          // Predicated region
          $region37: #{_lambda_.9} parent=35 // pred_check
            %p699 = pneg %p696
          $region38: #{_lambda_.9} parent=35 // pred_check_branch
            %701 = sbr.rel (%p699) target = $region40
          $region39: #{_lambda_.9} parent=35 // pred_region
            // Predicated region
            $region41: #{_lambda_.9} parent=39 // pred_check
              _
            $region42: #{_lambda_.9} parent=39 // pred_check_branch
              %703 = sbr.rel target = $region44
            $region43: #{_lambda_.9} parent=39 // pred_region
              // Predicated region
              $region63: #{_lambda_.9} parent=43 // pred_check
                _
              $region64: #{_lambda_.9} parent=43 // pred_check_branch
                %795 = sbr.rel (0) target = $region66
              $region65: #{_lambda_.9} parent=43 // pred_region
                %s797 = sdiv.u32.pop %s694, 22
                %s798 = srem.u32.pop %s694, 22
                // While loop
                $region67: #{_lambda_.9} parent=65 // loop_pre_header
                  _
                $region68: #{_lambda_.9} parent=65 // loop_header
                  %s800 = sphi 0, %s802
                  %p801 = scmp.ge.s32.totalorder %s800, %s797
                  %s805 = sphi 0, %s854
                  %s806 = sphi %s687, %s857
                  %s807 = sphi %s698, %s858
                $region69: #{_lambda_.9} parent=65 // loop_header_branch
                  %804 = sbr.rel (%p801) target = $region73
                $region70: #{_lambda_.9} parent=65 // loop_body
                  %v808 = vld [vmem:[%s806] sm:$0xf]
                  %809 = vst [vmem:[%s807] sm:$0xf] %v808
                  %v810 = vld [vmem:[%s806 + $0x4] sm:$0xf]
                  %811 = vst [vmem:[%s807 + $0x4] sm:$0xf] %v810
                  %v812 = vld [vmem:[%s806 + $0x8] sm:$0xf]
                  %813 = vst [vmem:[%s807 + $0x8] sm:$0xf] %v812
                  %v814 = vld [vmem:[%s806 + $0xc] sm:$0xf]
                  %815 = vst [vmem:[%s807 + $0xc] sm:$0xf] %v814
                  %v816 = vld [vmem:[%s806 + $0x10] sm:$0xf]
                  %817 = vst [vmem:[%s807 + $0x10] sm:$0xf] %v816
                  %v818 = vld [vmem:[%s806 + $0x14] sm:$0xf]
                  %819 = vst [vmem:[%s807 + $0x14] sm:$0xf] %v818
                  %v820 = vld [vmem:[%s806 + $0x18] sm:$0xf]
                  %821 = vst [vmem:[%s807 + $0x18] sm:$0xf] %v820
                  %v822 = vld [vmem:[%s806 + $0x1c] sm:$0xf]
                  %823 = vst [vmem:[%s807 + $0x1c] sm:$0xf] %v822
                  %v824 = vld [vmem:[%s806 + $0x20] sm:$0xf]
                  %825 = vst [vmem:[%s807 + $0x20] sm:$0xf] %v824
                  %v826 = vld [vmem:[%s806 + $0x24] sm:$0xf]
                  %827 = vst [vmem:[%s807 + $0x24] sm:$0xf] %v826
                  %v828 = vld [vmem:[%s806 + $0x28] sm:$0xf]
                  %829 = vst [vmem:[%s807 + $0x28] sm:$0xf] %v828
                  %v830 = vld [vmem:[%s806 + $0x2c] sm:$0xf]
                  %831 = vst [vmem:[%s807 + $0x2c] sm:$0xf] %v830
                  %v832 = vld [vmem:[%s806 + $0x30] sm:$0xf]
                  %833 = vst [vmem:[%s807 + $0x30] sm:$0xf] %v832
                  %v834 = vld [vmem:[%s806 + $0x34] sm:$0xf]
                  %835 = vst [vmem:[%s807 + $0x34] sm:$0xf] %v834
                  %v836 = vld [vmem:[%s806 + $0x38] sm:$0xf]
                  %837 = vst [vmem:[%s807 + $0x38] sm:$0xf] %v836
                  %v838 = vld [vmem:[%s806 + $0x3c] sm:$0xf]
                  %839 = vst [vmem:[%s807 + $0x3c] sm:$0xf] %v838
                  %v840 = vld [vmem:[%s806 + $0x40] sm:$0xf]
                  %841 = vst [vmem:[%s807 + $0x40] sm:$0xf] %v840
                  %v842 = vld [vmem:[%s806 + $0x44] sm:$0xf]
                  %843 = vst [vmem:[%s807 + $0x44] sm:$0xf] %v842
                  %v844 = vld [vmem:[%s806 + $0x48] sm:$0xf]
                  %845 = vst [vmem:[%s807 + $0x48] sm:$0xf] %v844
                  %v846 = vld [vmem:[%s806 + $0x4c] sm:$0xf]
                  %847 = vst [vmem:[%s807 + $0x4c] sm:$0xf] %v846
                  %v848 = vld [vmem:[%s806 + $0x50] sm:$0xf]
                  %849 = vst [vmem:[%s807 + $0x50] sm:$0xf] %v848
                  %v850 = vld [vmem:[%s806 + $0x54] sm:$0xf]
                  %851 = vst [vmem:[%s807 + $0x54] sm:$0xf] %v850
                  %s852 = sadd.s32 1, %s805
                  %p853 = scmp.ge.s32.totalorder %s852, %s797
                  %s854 = scalar_select %p853, 0, %s852
                  %s855 = smul.u32 %s854, 88
                  %s856 = smul.u32 %s854, 88
                  %s857 = scalar_lea.vmem %s687, %s855 [#allocation2]
                  %s858 = scalar_lea.vmem %s698, %s856
                $region71: #{_lambda_.9} parent=65 // loop_footer
                  %s802 = sadd.s32 %s800, 1
                $region72: #{_lambda_.9} parent=65 // loop_footer_branch
                  %799 = sbr.rel target = $region68
                $region73: #{_lambda_.9} parent=65 // loop_exit
                  _
                %s859 = sdiv.u32.pop %s694, 22
                %s860 = srem.u32.pop %s694, 22
                %s861 = smul.u32 %s859, 22
                %s862 = smul.u32 4, %s861
                %s863 = scalar_lea.vmem %s687, %s862 [#allocation2]
                %s864 = smul.u32 4, %s861
                %s865 = scalar_lea.vmem %s698, %s864
                // While loop
                $region74: #{_lambda_.9} parent=65 // loop_pre_header
                  _
                $region75: #{_lambda_.9} parent=65 // loop_header
                  %s867 = sphi 0, %s869
                  %p868 = scmp.ge.s32.totalorder %s867, %s860
                  %s872 = sphi 0, %s879
                  %s873 = sphi %s863, %s882
                  %s874 = sphi %s865, %s883
                $region76: #{_lambda_.9} parent=65 // loop_header_branch
                  %871 = sbr.rel (%p868) target = $region80
                $region77: #{_lambda_.9} parent=65 // loop_body
                  %v875 = vld [vmem:[%s873] sm:$0xf]
                  %876 = vst [vmem:[%s874] sm:$0xf] %v875
                  %s877 = sadd.s32 1, %s872
                  %p878 = scmp.ge.s32.totalorder %s877, %s860
                  %s879 = scalar_select %p878, 0, %s877
                  %s880 = smul.u32 %s879, 4
                  %s881 = smul.u32 %s879, 4
                  %s882 = scalar_lea.vmem %s863, %s880 [#allocation2]
                  %s883 = scalar_lea.vmem %s865, %s881
                $region78: #{_lambda_.9} parent=65 // loop_footer
                  %s869 = sadd.s32 %s867, 1
                $region79: #{_lambda_.9} parent=65 // loop_footer_branch
                  %866 = sbr.rel target = $region75
                $region80: #{_lambda_.9} parent=65 // loop_exit
                  _
              $region66: #{_lambda_.9} parent=43 // pred_fallthru
                _
            $region44: #{_lambda_.9} parent=39 // pred_fallthru
              _
            // Predicated region
            $region45: #{_lambda_.9} parent=39 // pred_check
              _
            $region46: #{_lambda_.9} parent=39 // pred_check_branch
              %705 = sbr.rel (0) target = $region48
            $region47: #{_lambda_.9} parent=39 // pred_region
              %s707 = sdiv.u32.pop %s694, 22
              %s708 = srem.u32.pop %s694, 22
              // While loop
              $region49: #{_lambda_.9} parent=47 // loop_pre_header
                _
              $region50: #{_lambda_.9} parent=47 // loop_header
                %s710 = sphi 0, %s712
                %p711 = scmp.ge.s32.totalorder %s710, %s707
                %s715 = sphi 0, %s764
                %s716 = sphi %s687, %s767
                %s717 = sphi %s698, %s768
              $region51: #{_lambda_.9} parent=47 // loop_header_branch
                %714 = sbr.rel (%p711) target = $region55
              $region52: #{_lambda_.9} parent=47 // loop_body
                %v718 = vld [vmem:[%s716] sm:$0xf]
                %719 = vst [vmem:[%s717] sm:$0xf] %v718
                %v720 = vld [vmem:[%s716 + $0x4] sm:$0xf]
                %721 = vst [vmem:[%s717 + $0x4] sm:$0xf] %v720
                %v722 = vld [vmem:[%s716 + $0x8] sm:$0xf]
                %723 = vst [vmem:[%s717 + $0x8] sm:$0xf] %v722
                %v724 = vld [vmem:[%s716 + $0xc] sm:$0xf]
                %725 = vst [vmem:[%s717 + $0xc] sm:$0xf] %v724
                %v726 = vld [vmem:[%s716 + $0x10] sm:$0xf]
                %727 = vst [vmem:[%s717 + $0x10] sm:$0xf] %v726
                %v728 = vld [vmem:[%s716 + $0x14] sm:$0xf]
                %729 = vst [vmem:[%s717 + $0x14] sm:$0xf] %v728
                %v730 = vld [vmem:[%s716 + $0x18] sm:$0xf]
                %731 = vst [vmem:[%s717 + $0x18] sm:$0xf] %v730
                %v732 = vld [vmem:[%s716 + $0x1c] sm:$0xf]
                %733 = vst [vmem:[%s717 + $0x1c] sm:$0xf] %v732
                %v734 = vld [vmem:[%s716 + $0x20] sm:$0xf]
                %735 = vst [vmem:[%s717 + $0x20] sm:$0xf] %v734
                %v736 = vld [vmem:[%s716 + $0x24] sm:$0xf]
                %737 = vst [vmem:[%s717 + $0x24] sm:$0xf] %v736
                %v738 = vld [vmem:[%s716 + $0x28] sm:$0xf]
                %739 = vst [vmem:[%s717 + $0x28] sm:$0xf] %v738
                %v740 = vld [vmem:[%s716 + $0x2c] sm:$0xf]
                %741 = vst [vmem:[%s717 + $0x2c] sm:$0xf] %v740
                %v742 = vld [vmem:[%s716 + $0x30] sm:$0xf]
                %743 = vst [vmem:[%s717 + $0x30] sm:$0xf] %v742
                %v744 = vld [vmem:[%s716 + $0x34] sm:$0xf]
                %745 = vst [vmem:[%s717 + $0x34] sm:$0xf] %v744
                %v746 = vld [vmem:[%s716 + $0x38] sm:$0xf]
                %747 = vst [vmem:[%s717 + $0x38] sm:$0xf] %v746
                %v748 = vld [vmem:[%s716 + $0x3c] sm:$0xf]
                %749 = vst [vmem:[%s717 + $0x3c] sm:$0xf] %v748
                %v750 = vld [vmem:[%s716 + $0x40] sm:$0xf]
                %751 = vst [vmem:[%s717 + $0x40] sm:$0xf] %v750
                %v752 = vld [vmem:[%s716 + $0x44] sm:$0xf]
                %753 = vst [vmem:[%s717 + $0x44] sm:$0xf] %v752
                %v754 = vld [vmem:[%s716 + $0x48] sm:$0xf]
                %755 = vst [vmem:[%s717 + $0x48] sm:$0xf] %v754
                %v756 = vld [vmem:[%s716 + $0x4c] sm:$0xf]
                %757 = vst [vmem:[%s717 + $0x4c] sm:$0xf] %v756
                %v758 = vld [vmem:[%s716 + $0x50] sm:$0xf]
                %759 = vst [vmem:[%s717 + $0x50] sm:$0xf] %v758
                %v760 = vld [vmem:[%s716 + $0x54] sm:$0xf]
                %761 = vst [vmem:[%s717 + $0x54] sm:$0xf] %v760
                %s762 = sadd.s32 1, %s715
                %p763 = scmp.ge.s32.totalorder %s762, %s707
                %s764 = scalar_select %p763, 0, %s762
                %s765 = smul.u32 %s764, 88
                %s766 = smul.u32 %s764, 88
                %s767 = scalar_lea.vmem %s687, %s765 [#allocation2]
                %s768 = scalar_lea.vmem %s698, %s766
              $region53: #{_lambda_.9} parent=47 // loop_footer
                %s712 = sadd.s32 %s710, 1
              $region54: #{_lambda_.9} parent=47 // loop_footer_branch
                %709 = sbr.rel target = $region50
              $region55: #{_lambda_.9} parent=47 // loop_exit
                _
              %s769 = sdiv.u32.pop %s694, 22
              %s770 = srem.u32.pop %s694, 22
              %s771 = smul.u32 %s769, 22
              %s772 = smul.u32 4, %s771
              %s773 = scalar_lea.vmem %s687, %s772 [#allocation2]
              %s774 = smul.u32 4, %s771
              %s775 = scalar_lea.vmem %s698, %s774
              // While loop
              $region56: #{_lambda_.9} parent=47 // loop_pre_header
                _
              $region57: #{_lambda_.9} parent=47 // loop_header
                %s777 = sphi 0, %s779
                %p778 = scmp.ge.s32.totalorder %s777, %s770
                %s782 = sphi 0, %s789
                %s783 = sphi %s773, %s792
                %s784 = sphi %s775, %s793
              $region58: #{_lambda_.9} parent=47 // loop_header_branch
                %781 = sbr.rel (%p778) target = $region62
              $region59: #{_lambda_.9} parent=47 // loop_body
                %v785 = vld [vmem:[%s783] sm:$0xf]
                %786 = vst [vmem:[%s784] sm:$0xf] %v785
                %s787 = sadd.s32 1, %s782
                %p788 = scmp.ge.s32.totalorder %s787, %s770
                %s789 = scalar_select %p788, 0, %s787
                %s790 = smul.u32 %s789, 4
                %s791 = smul.u32 %s789, 4
                %s792 = scalar_lea.vmem %s773, %s790 [#allocation2]
                %s793 = scalar_lea.vmem %s775, %s791
              $region60: #{_lambda_.9} parent=47 // loop_footer
                %s779 = sadd.s32 %s777, 1
              $region61: #{_lambda_.9} parent=47 // loop_footer_branch
                %776 = sbr.rel target = $region57
              $region62: #{_lambda_.9} parent=47 // loop_exit
                _
            $region48: #{_lambda_.9} parent=39 // pred_fallthru
              _
          $region40: #{_lambda_.9} parent=35 // pred_fallthru
            _
          %884 = vnop
        $region36: #{_lambda_.9} parent=31 // pred_fallthru
          _
      $region32: #{_lambda_.9} parent=5 // pred_fallthru
        _
      %p885 = scmp.le.s32.totalorder 2, %s9
      // Predicated region
      $region81: #{_lambda_.9} parent=5 // pred_check
        %p886 = pneg %p885
      $region82: #{_lambda_.9} parent=5 // pred_check_branch
        %888 = sbr.rel (%p886) target = $region84
      $region83: #{_lambda_.9} parent=5 // pred_region
        %s889 = ssub.s32 %s9, 2
        // Predicated region
        $region85: #{_lambda_.9} parent=83 // pred_check
          %p890 = pneg %p106
        $region86: #{_lambda_.9} parent=83 // pred_check_branch
          %892 = sbr.rel (%p890) target = $region88
        $region87: #{_lambda_.9} parent=83 // pred_region
          %s893 = sand.u32 %s91, 1
          %s894 = sand.u32 %s91, 1
          %s895 = smul.addr %s894, 88
          %s896 = scalar_lea.vmem [#allocation2], %s895
        $region88: #{_lambda_.9} parent=83 // pred_fallthru
          _
      $region84: #{_lambda_.9} parent=5 // pred_fallthru
        _
    $region6: #{_lambda_.9} parent=1 // loop_footer
      %s13 = sadd.s32 1, %s9
    $region7: #{_lambda_.9} parent=1 // loop_footer_branch
      %8 = sbr.rel target = $region3
    $region8: #{_lambda_.9} parent=1 // loop_exit
      _

</llo_original>
